<compile_context>
chip_gen: v5e
topology: v5e:2x2
jax: 0.10.0
libtpu: 0.0.40
codegen_flags: <defaults>
</compile_context>

<pallas_src>
import math

import numpy as np
import jax
import jax.numpy as jnp
from jax.experimental import pallas as pl
from jax.experimental.pallas import tpu as pltpu


# ----------------------------------------------------------------------------
# In-kernel building blocks (operate on VMEM-resident values)
# ----------------------------------------------------------------------------
def _mm(a, w):
    """bf16 MXU matmul with f32 accumulation (w is stored bf16)."""
    return jnp.dot(a.astype(jnp.bfloat16), w, preferred_element_type=jnp.float32)


def _layer_norm(x, g, b, eps=1e-5):                       # PyTorch LayerNorm eps
    mean = jnp.mean(x, axis=-1, keepdims=True)
    var = jnp.mean(jnp.square(x - mean), axis=-1, keepdims=True)
    return (x - mean) * jax.lax.rsqrt(var + eps) * g + b


def _attend(q, k, v, n_heads, mask_add):
    """Scaled dot-product attention over heads.

    q: [B, Lq, D], k/v: [B, Lk, D] (f32).  Returns context [B, Lq, D] f32.
    Per-head scores use batched einsums; head outputs are concatenated once
    so the caller can do ONE output projection.
    """
    B, Lq, D = q.shape
    Lk = k.shape[1]
    E = D // n_heads
    scale = 1.0 / math.sqrt(E)                            # FullAttention default
    qb = q.astype(jnp.bfloat16)
    kb = k.astype(jnp.bfloat16)
    vb = v.astype(jnp.bfloat16)
    if mask_add is not None:                              # hoisted out of head loop
        mask_full = jnp.broadcast_to(mask_add, (B, Lq, Lk))
    heads = []
    for h in range(n_heads):                              # static unroll (H small)
        sl = slice(h * E, (h + 1) * E)
        s = jnp.einsum("bqe,bke->bqk", qb[..., sl], kb[..., sl],
                       preferred_element_type=jnp.float32) * scale
        if mask_add is not None:
            s = s + mask_full                             # additive -1e30 mask
        s = s - jnp.max(s, axis=-1, keepdims=True)
        p = jnp.exp(s)
        p = p * pl.reciprocal(jnp.sum(p, axis=-1, keepdims=True), approx=True)
        heads.append(jnp.einsum("bqk,bke->bqe", p.astype(jnp.bfloat16), vb[..., sl],
                                preferred_element_type=jnp.float32))
    return jnp.concatenate(heads, axis=-1)                # [B, Lq, D]


def _self_attention(x2, B, L, p, H, mask_add, prefix=""):
    wqkv, bqkv = p[prefix + "wqkv"], p[prefix + "bqkv"]
    wo, bo = p[prefix + "wo"], p[prefix + "bo"]
    D = wo.shape[0]
    qkv = (_mm(x2, wqkv) + bqkv).reshape(B, L, 3 * D)     # fused QKV projection
    q, k, v = qkv[..., :D], qkv[..., D:2 * D], qkv[..., 2 * D:]
    ctx = _attend(q, k, v, H, mask_add).reshape(B * L, D)
    return _mm(ctx, wo) + bo                              # single output projection


def _cross_attention(xq2, B, Lq, xkv2, Lk, p, H):
    D = p["cross_wo"].shape[0]
    q = (_mm(xq2, p["cross_wq"]) + p["cross_bq"]).reshape(B, Lq, D)
    kv = (_mm(xkv2, p["cross_wkv"]) + p["cross_bkv"]).reshape(B, Lk, 2 * D)
    k, v = kv[..., :D], kv[..., D:]
    ctx = _attend(q, k, v, H, None).reshape(B * Lq, D)
    return _mm(ctx, p["cross_wo"]) + p["cross_bo"]


def _ffn(x2, w1, b1, w2, b2):
    y = jnp.maximum(_mm(x2, w1) + b1, 0.0)                # activation='relu'
    return _mm(y, w2) + b2


def _embedding(x_cat2, x_mark2, token_w, temp_w, pe2):
    """TokenEmbedding (circular Conv1d k=3 as matmul, no bias)
    + PositionalEmbedding + TimeFeatureEmbedding (Linear, no bias)."""
    return _mm(x_cat2, token_w) + _mm(x_mark2, temp_w) + pe2   # dropout = identity


def _encoder_layer(x2, B, L, p, H):
    x2 = x2 + _self_attention(x2, B, L, p, H, None)
    x2 = _layer_norm(x2, p["norm1_g"], p["norm1_b"])
    y = _ffn(x2, p["conv1_w"], p["conv1_b"], p["conv2_w"], p["conv2_b"])
    return _layer_norm(x2 + y, p["norm2_g"], p["norm2_b"])


def _decoder_layer(x2, B, Ld, cross2, Lk, p, H, mask_add):
    x2 = x2 + _self_attention(x2, B, Ld, p, H, mask_add, prefix="self_")
    x2 = _layer_norm(x2, p["norm1_g"], p["norm1_b"])
    x2 = x2 + _cross_attention(x2, B, Ld, cross2, Lk, p, H)
    x2 = _layer_norm(x2, p["norm2_g"], p["norm2_b"])
    y = _ffn(x2, p["conv1_w"], p["conv1_b"], p["conv2_w"], p["conv2_b"])
    return _layer_norm(x2 + y, p["norm3_g"], p["norm3_b"])


# ----------------------------------------------------------------------------
# Fully fused forward pass: one gridless pallas_call (single-buffered VMEM).
# ----------------------------------------------------------------------------
def transformer_forward(params, cfg, x_enc, x_mark_enc, x_dec, x_mark_dec):
    B, L_enc, _ = x_enc.shape
    _, L_dec, _ = x_dec.shape
    D = cfg["d_model"]
    H = cfg["n_heads"]
    pred_len = cfg["pred_len"]
    out_size = cfg["out_size"]
    OUT_PAD = 128                                          # lane-dense output width

    # Circular k=3 Conv1d (padding=1) as a matmul: gather [x_{t-1}, x_t, x_{t+1}]
    # along channels, flatten the batch into rows, cast to bf16 (data prep fused
    # by jit, cheap at these sizes).
    def circ_cat(x):
        x = x.astype(jnp.float32)
        cat = jnp.concatenate([jnp.roll(x, 1, axis=1), x, jnp.roll(x, -1, axis=1)],
                              axis=-1)
        return cat.reshape(B * x.shape[1], -1).astype(jnp.bfloat16)

    # Additive causal mask (decoder self-attention), built once host-side.
    tri = np.triu(np.ones((L_dec, L_dec), np.float32), k=1) * np.float32(-1e30)

    data = {
        "x_enc_cat": circ_cat(x_enc),
        "x_mark_enc": x_mark_enc.astype(jnp.bfloat16).reshape(B * L_enc, -1),
        "x_dec_cat": circ_cat(x_dec),
        "x_mark_dec": x_mark_dec.astype(jnp.bfloat16).reshape(B * L_dec, -1),
        "mask_add": jnp.asarray(tri),
        "pe_enc": jnp.tile(params["pe"][:L_enc], (B, 1)),     # [B*L_enc, D] f32
        "pe_dec": jnp.tile(params["pe"][:L_dec], (B, 1)),     # [B*L_dec, D] f32
    }
    weights = {k: v for k, v in params.items()
               if k not in ("pe", "proj_w", "proj_b")}
    # Pad the projection to 128 output lanes so the final store is lane-dense;
    # the extra columns are zero and sliced away in the wrapper.
    weights["proj_w"] = jnp.zeros((D, OUT_PAD), jnp.bfloat16) \
        .at[:, :out_size].set(params["proj_w"])
    weights["proj_b"] = jnp.zeros((1, OUT_PAD), jnp.float32) \
        .at[:, :out_size].set(params["proj_b"])

    inputs = {"d": data, "w": weights}
    leaves, treedef = jax.tree_util.tree_flatten(inputs)

    def kernel(*refs):
        out_ref = refs[-1]
        t = jax.tree_util.tree_unflatten(treedef, [r[...] for r in refs[:-1]])
        d, w = t["d"], t["w"]

        # ---------------- encoder ----------------
        enc = _embedding(d["x_enc_cat"], d["x_mark_enc"],
                         w["enc_emb"]["token_w"], w["enc_emb"]["temp_w"],
                         d["pe_enc"])
        for lp in w["enc_layers"]:
            enc = _encoder_layer(enc, B, L_enc, lp, H)
        enc = _layer_norm(enc, w["enc_norm_g"], w["enc_norm_b"])

        # ---------------- decoder ----------------
        dec = _embedding(d["x_dec_cat"], d["x_mark_dec"],
                         w["dec_emb"]["token_w"], w["dec_emb"]["temp_w"],
                         d["pe_dec"])
        for lp in w["dec_layers"]:
            dec = _decoder_layer(dec, B, L_dec, enc, L_enc, lp, H, d["mask_add"])
        dec = _layer_norm(dec, w["dec_norm_g"], w["dec_norm_b"])

        # ---- projection: only the last pred_len rows per batch, lane-dense ----
        for b in range(B):                                 # B small, static unroll
            start = b * L_dec + (L_dec - pred_len)
            tail = dec[start:start + pred_len, :]          # [pred_len, D]
            out_ref[b] = _mm(tail, w["proj_w"]) + w["proj_b"]

    out = pl.pallas_call(
        kernel,
        out_shape=jax.ShapeDtypeStruct((B, pred_len, OUT_PAD), jnp.float32),
        compiler_params=pltpu.CompilerParams(
            vmem_limit_bytes=32 * 1024 * 1024),            # explicit, with headroom
    )(*leaves)
    return out[:, :, :out_size]


# ----------------------------------------------------------------------------
# Deterministic parameter initialization
# ----------------------------------------------------------------------------
class KeyGen:
    def __init__(self, key):
        self._key = key

    def __call__(self):
        self._key, sub = jax.random.split(self._key)
        return sub


def _w(kg, shape, dtype=jnp.bfloat16, scale=0.05):
    return (scale * jax.random.normal(kg(), shape, dtype=jnp.float32)).astype(dtype)


def sinusoid_pe(max_len, d_model):
    position = np.arange(max_len, dtype=np.float32)[:, None]
    div_term = np.exp(np.arange(0, d_model, 2, dtype=np.float32)
                      * -(np.log(10000.0) / d_model))
    pe = np.zeros((max_len, d_model), np.float32)
    pe[:, 0::2] = np.sin(position * div_term)
    pe[:, 1::2] = np.cos(position * div_term)
    return jnp.asarray(pe)


def init_ffn_norm_params(kg, d_model, d_ff, n_norms):
    p = {
        "conv1_w": _w(kg, (d_model, d_ff)),
        "conv1_b": _w(kg, (1, d_ff), jnp.float32),
        "conv2_w": _w(kg, (d_ff, d_model)),
        "conv2_b": _w(kg, (1, d_model), jnp.float32),
    }
    for i in range(1, n_norms + 1):
        p[f"norm{i}_g"] = jnp.ones((1, d_model), jnp.float32)
        p[f"norm{i}_b"] = jnp.zeros((1, d_model), jnp.float32)
    return p


def init_params(key, cfg):
    kg = KeyGen(key)
    D, FF = cfg["d_model"], cfg["d_ff"]
    params = {
        "pe": sinusoid_pe(cfg["max_len"], D),
        # token_w is the circular Conv1d(k=3, pad=1, bias=False) weight laid out
        # as the [3C, D] matmul acting on [x_{t-1}, x_t, x_{t+1}].
        "enc_emb": {"token_w": _w(kg, (3 * cfg["enc_in"], D)),
                    "temp_w": _w(kg, (cfg["mark_in"], D))},
        "dec_emb": {"token_w": _w(kg, (3 * cfg["dec_in"], D)),
                    "temp_w": _w(kg, (cfg["mark_in"], D))},
        "enc_layers": [],
        "dec_layers": [],
        "enc_norm_g": jnp.ones((1, D), jnp.float32),
        "enc_norm_b": jnp.zeros((1, D), jnp.float32),
        "dec_norm_g": jnp.ones((1, D), jnp.float32),
        "dec_norm_b": jnp.zeros((1, D), jnp.float32),
        "proj_w": _w(kg, (D, cfg["out_size"])),
        "proj_b": _w(kg, (1, cfg["out_size"]), jnp.float32),
    }
    for _ in range(cfg["e_layers"]):
        lp = {
            "wqkv": _w(kg, (D, 3 * D)), "bqkv": _w(kg, (1, 3 * D), jnp.float32),
            "wo": _w(kg, (D, D)), "bo": _w(kg, (1, D), jnp.float32),
        }
        lp.update(init_ffn_norm_params(kg, D, FF, n_norms=2))
        params["enc_layers"].append(lp)
    for _ in range(cfg["d_layers"]):
        lp = {
            "self_wqkv": _w(kg, (D, 3 * D)),
            "self_bqkv": _w(kg, (1, 3 * D), jnp.float32),
            "self_wo": _w(kg, (D, D)), "self_bo": _w(kg, (1, D), jnp.float32),
            # cross-attention Q and KV weights kept separate (no in-kernel slicing)
            "cross_wq": _w(kg, (D, D)), "cross_bq": _w(kg, (1, D), jnp.float32),
            "cross_wkv": _w(kg, (D, 2 * D)),
            "cross_bkv": _w(kg, (1, 2 * D), jnp.float32),
            "cross_wo": _w(kg, (D, D)), "cross_bo": _w(kg, (1, D), jnp.float32),
        }
        lp.update(init_ffn_norm_params(kg, D, FF, n_norms=3))
        params["dec_layers"].append(lp)
    return params


# ----------------------------------------------------------------------------
if __name__ == "__main__":
    cfg = dict(
        enc_in=4, dec_in=4, out_size=4, mark_in=4,      # freq='h' -> 4 time features
        d_model=32, n_heads=4, e_layers=2, d_layers=1, d_ff=64,
        pred_len=4, max_len=64,
        # dropout=0.0 (identity), activation='relu', output_attention=False
    )
    B, L_enc, label_len = 2, 8, 4
    L_dec = label_len + cfg["pred_len"]   # 8

    key = jax.random.PRNGKey(0)
    k_par, k1, k2, k3, k4 = jax.random.split(key, 5)
    params = init_params(k_par, cfg)

    x_enc = jax.random.normal(k1, (B, L_enc, cfg["enc_in"]), dtype=jnp.float32)
    x_mark_enc = jax.random.normal(k2, (B, L_enc, cfg["mark_in"]), dtype=jnp.float32)
    x_dec = jax.random.normal(k3, (B, L_dec, cfg["dec_in"]), dtype=jnp.float32)
    x_mark_dec = jax.random.normal(k4, (B, L_dec, cfg["mark_in"]), dtype=jnp.float32)

    fwd = jax.jit(lambda p, xe, me, xd, md:
                  transformer_forward(p, cfg, xe, me, xd, md))
    out = fwd(params, x_enc, x_mark_enc, x_dec, x_mark_dec)
    out = jax.block_until_ready(out)
    assert out.shape == (B, cfg["pred_len"], cfg["out_size"]), out.shape
    assert bool(jnp.all(jnp.isfinite(out)))
    print("KERNEL_OK")
</pallas_src>

<mosaic_0001>
module attributes {stable_mosaic.version = 11 : i64} {
  func.func @kernel(%arg0: memref<8x8xf32, #tpu.memory_space<vmem>>, %arg1: memref<16x32xf32, #tpu.memory_space<vmem>>, %arg2: memref<16x32xf32, #tpu.memory_space<vmem>>, %arg3: memref<16x12xbf16, #tpu.memory_space<vmem>>, %arg4: memref<16x12xbf16, #tpu.memory_space<vmem>>, %arg5: memref<16x4xbf16, #tpu.memory_space<vmem>>, %arg6: memref<16x4xbf16, #tpu.memory_space<vmem>>, %arg7: memref<4x32xbf16, #tpu.memory_space<vmem>>, %arg8: memref<12x32xbf16, #tpu.memory_space<vmem>>, %arg9: memref<1x64xf32, #tpu.memory_space<vmem>>, %arg10: memref<32x64xbf16, #tpu.memory_space<vmem>>, %arg11: memref<1x32xf32, #tpu.memory_space<vmem>>, %arg12: memref<64x32xbf16, #tpu.memory_space<vmem>>, %arg13: memref<1x64xf32, #tpu.memory_space<vmem>>, %arg14: memref<1x32xf32, #tpu.memory_space<vmem>>, %arg15: memref<1x32xf32, #tpu.memory_space<vmem>>, %arg16: memref<32x64xbf16, #tpu.memory_space<vmem>>, %arg17: memref<32x32xbf16, #tpu.memory_space<vmem>>, %arg18: memref<32x32xbf16, #tpu.memory_space<vmem>>, %arg19: memref<1x32xf32, #tpu.memory_space<vmem>>, %arg20: memref<1x32xf32, #tpu.memory_space<vmem>>, %arg21: memref<1x32xf32, #tpu.memory_space<vmem>>, %arg22: memref<1x32xf32, #tpu.memory_space<vmem>>, %arg23: memref<1x32xf32, #tpu.memory_space<vmem>>, %arg24: memref<1x32xf32, #tpu.memory_space<vmem>>, %arg25: memref<1x32xf32, #tpu.memory_space<vmem>>, %arg26: memref<1x96xf32, #tpu.memory_space<vmem>>, %arg27: memref<32x32xbf16, #tpu.memory_space<vmem>>, %arg28: memref<32x96xbf16, #tpu.memory_space<vmem>>, %arg29: memref<1x32xf32, #tpu.memory_space<vmem>>, %arg30: memref<1x32xf32, #tpu.memory_space<vmem>>, %arg31: memref<4x32xbf16, #tpu.memory_space<vmem>>, %arg32: memref<12x32xbf16, #tpu.memory_space<vmem>>, %arg33: memref<1x32xf32, #tpu.memory_space<vmem>>, %arg34: memref<1x96xf32, #tpu.memory_space<vmem>>, %arg35: memref<1x64xf32, #tpu.memory_space<vmem>>, %arg36: memref<32x64xbf16, #tpu.memory_space<vmem>>, %arg37: memref<1x32xf32, #tpu.memory_space<vmem>>, %arg38: memref<64x32xbf16, #tpu.memory_space<vmem>>, %arg39: memref<1x32xf32, #tpu.memory_space<vmem>>, %arg40: memref<1x32xf32, #tpu.memory_space<vmem>>, %arg41: memref<1x32xf32, #tpu.memory_space<vmem>>, %arg42: memref<1x32xf32, #tpu.memory_space<vmem>>, %arg43: memref<32x32xbf16, #tpu.memory_space<vmem>>, %arg44: memref<32x96xbf16, #tpu.memory_space<vmem>>, %arg45: memref<1x32xf32, #tpu.memory_space<vmem>>, %arg46: memref<1x96xf32, #tpu.memory_space<vmem>>, %arg47: memref<1x64xf32, #tpu.memory_space<vmem>>, %arg48: memref<32x64xbf16, #tpu.memory_space<vmem>>, %arg49: memref<1x32xf32, #tpu.memory_space<vmem>>, %arg50: memref<64x32xbf16, #tpu.memory_space<vmem>>, %arg51: memref<1x32xf32, #tpu.memory_space<vmem>>, %arg52: memref<1x32xf32, #tpu.memory_space<vmem>>, %arg53: memref<1x32xf32, #tpu.memory_space<vmem>>, %arg54: memref<1x32xf32, #tpu.memory_space<vmem>>, %arg55: memref<32x32xbf16, #tpu.memory_space<vmem>>, %arg56: memref<32x96xbf16, #tpu.memory_space<vmem>>, %arg57: memref<1x32xf32, #tpu.memory_space<vmem>>, %arg58: memref<1x32xf32, #tpu.memory_space<vmem>>, %arg59: memref<1x128xf32, #tpu.memory_space<vmem>>, %arg60: memref<32x128xbf16, #tpu.memory_space<vmem>>, %arg61: memref<2x4x128xf32, #tpu.memory_space<vmem>>) attributes {dimension_semantics = [], scalar_prefetch = 0 : i64, scratch_operands = 0 : i64, tpu.core_type = #tpu.core_type<tc>} {
    %c0 = arith.constant 0 : index
    %c0_0 = arith.constant 0 : index
    %0 = vector.load %arg0[%c0, %c0_0] : memref<8x8xf32, #tpu.memory_space<vmem>>, vector<8x8xf32>
    %c0_1 = arith.constant 0 : index
    %c0_2 = arith.constant 0 : index
    %1 = vector.load %arg1[%c0_1, %c0_2] : memref<16x32xf32, #tpu.memory_space<vmem>>, vector<16x32xf32>
    %c0_3 = arith.constant 0 : index
    %c0_4 = arith.constant 0 : index
    %2 = vector.load %arg2[%c0_3, %c0_4] : memref<16x32xf32, #tpu.memory_space<vmem>>, vector<16x32xf32>
    %c0_5 = arith.constant 0 : index
    %c0_6 = arith.constant 0 : index
    %3 = vector.load %arg3[%c0_5, %c0_6] : memref<16x12xbf16, #tpu.memory_space<vmem>>, vector<16x12xbf16>
    %c0_7 = arith.constant 0 : index
    %c0_8 = arith.constant 0 : index
    %4 = vector.load %arg4[%c0_7, %c0_8] : memref<16x12xbf16, #tpu.memory_space<vmem>>, vector<16x12xbf16>
    %c0_9 = arith.constant 0 : index
    %c0_10 = arith.constant 0 : index
    %5 = vector.load %arg5[%c0_9, %c0_10] : memref<16x4xbf16, #tpu.memory_space<vmem>>, vector<16x4xbf16>
    %c0_11 = arith.constant 0 : index
    %c0_12 = arith.constant 0 : index
    %6 = vector.load %arg6[%c0_11, %c0_12] : memref<16x4xbf16, #tpu.memory_space<vmem>>, vector<16x4xbf16>
    %c0_13 = arith.constant 0 : index
    %c0_14 = arith.constant 0 : index
    %7 = vector.load %arg7[%c0_13, %c0_14] : memref<4x32xbf16, #tpu.memory_space<vmem>>, vector<4x32xbf16>
    %c0_15 = arith.constant 0 : index
    %c0_16 = arith.constant 0 : index
    %8 = vector.load %arg8[%c0_15, %c0_16] : memref<12x32xbf16, #tpu.memory_space<vmem>>, vector<12x32xbf16>
    %c0_17 = arith.constant 0 : index
    %c0_18 = arith.constant 0 : index
    %9 = vector.load %arg9[%c0_17, %c0_18] : memref<1x64xf32, #tpu.memory_space<vmem>>, vector<1x64xf32>
    %c0_19 = arith.constant 0 : index
    %c0_20 = arith.constant 0 : index
    %10 = vector.load %arg10[%c0_19, %c0_20] : memref<32x64xbf16, #tpu.memory_space<vmem>>, vector<32x64xbf16>
    %c0_21 = arith.constant 0 : index
    %c0_22 = arith.constant 0 : index
    %11 = vector.load %arg11[%c0_21, %c0_22] : memref<1x32xf32, #tpu.memory_space<vmem>>, vector<1x32xf32>
    %c0_23 = arith.constant 0 : index
    %c0_24 = arith.constant 0 : index
    %12 = vector.load %arg12[%c0_23, %c0_24] : memref<64x32xbf16, #tpu.memory_space<vmem>>, vector<64x32xbf16>
    %c0_25 = arith.constant 0 : index
    %c0_26 = arith.constant 0 : index
    %13 = vector.load %arg13[%c0_25, %c0_26] : memref<1x64xf32, #tpu.memory_space<vmem>>, vector<1x64xf32>
    %c0_27 = arith.constant 0 : index
    %c0_28 = arith.constant 0 : index
    %14 = vector.load %arg14[%c0_27, %c0_28] : memref<1x32xf32, #tpu.memory_space<vmem>>, vector<1x32xf32>
    %c0_29 = arith.constant 0 : index
    %c0_30 = arith.constant 0 : index
    %15 = vector.load %arg15[%c0_29, %c0_30] : memref<1x32xf32, #tpu.memory_space<vmem>>, vector<1x32xf32>
    %c0_31 = arith.constant 0 : index
    %c0_32 = arith.constant 0 : index
    %16 = vector.load %arg16[%c0_31, %c0_32] : memref<32x64xbf16, #tpu.memory_space<vmem>>, vector<32x64xbf16>
    %c0_33 = arith.constant 0 : index
    %c0_34 = arith.constant 0 : index
    %17 = vector.load %arg17[%c0_33, %c0_34] : memref<32x32xbf16, #tpu.memory_space<vmem>>, vector<32x32xbf16>
    %c0_35 = arith.constant 0 : index
    %c0_36 = arith.constant 0 : index
    %18 = vector.load %arg18[%c0_35, %c0_36] : memref<32x32xbf16, #tpu.memory_space<vmem>>, vector<32x32xbf16>
    %c0_37 = arith.constant 0 : index
    %c0_38 = arith.constant 0 : index
    %19 = vector.load %arg19[%c0_37, %c0_38] : memref<1x32xf32, #tpu.memory_space<vmem>>, vector<1x32xf32>
    %c0_39 = arith.constant 0 : index
    %c0_40 = arith.constant 0 : index
    %20 = vector.load %arg20[%c0_39, %c0_40] : memref<1x32xf32, #tpu.memory_space<vmem>>, vector<1x32xf32>
    %c0_41 = arith.constant 0 : index
    %c0_42 = arith.constant 0 : index
    %21 = vector.load %arg21[%c0_41, %c0_42] : memref<1x32xf32, #tpu.memory_space<vmem>>, vector<1x32xf32>
    %c0_43 = arith.constant 0 : index
    %c0_44 = arith.constant 0 : index
    %22 = vector.load %arg22[%c0_43, %c0_44] : memref<1x32xf32, #tpu.memory_space<vmem>>, vector<1x32xf32>
    %c0_45 = arith.constant 0 : index
    %c0_46 = arith.constant 0 : index
    %23 = vector.load %arg23[%c0_45, %c0_46] : memref<1x32xf32, #tpu.memory_space<vmem>>, vector<1x32xf32>
    %c0_47 = arith.constant 0 : index
    %c0_48 = arith.constant 0 : index
    %24 = vector.load %arg24[%c0_47, %c0_48] : memref<1x32xf32, #tpu.memory_space<vmem>>, vector<1x32xf32>
    %c0_49 = arith.constant 0 : index
    %c0_50 = arith.constant 0 : index
    %25 = vector.load %arg25[%c0_49, %c0_50] : memref<1x32xf32, #tpu.memory_space<vmem>>, vector<1x32xf32>
    %c0_51 = arith.constant 0 : index
    %c0_52 = arith.constant 0 : index
    %26 = vector.load %arg26[%c0_51, %c0_52] : memref<1x96xf32, #tpu.memory_space<vmem>>, vector<1x96xf32>
    %c0_53 = arith.constant 0 : index
    %c0_54 = arith.constant 0 : index
    %27 = vector.load %arg27[%c0_53, %c0_54] : memref<32x32xbf16, #tpu.memory_space<vmem>>, vector<32x32xbf16>
    %c0_55 = arith.constant 0 : index
    %c0_56 = arith.constant 0 : index
    %28 = vector.load %arg28[%c0_55, %c0_56] : memref<32x96xbf16, #tpu.memory_space<vmem>>, vector<32x96xbf16>
    %c0_57 = arith.constant 0 : index
    %c0_58 = arith.constant 0 : index
    %29 = vector.load %arg29[%c0_57, %c0_58] : memref<1x32xf32, #tpu.memory_space<vmem>>, vector<1x32xf32>
    %c0_59 = arith.constant 0 : index
    %c0_60 = arith.constant 0 : index
    %30 = vector.load %arg30[%c0_59, %c0_60] : memref<1x32xf32, #tpu.memory_space<vmem>>, vector<1x32xf32>
    %c0_61 = arith.constant 0 : index
    %c0_62 = arith.constant 0 : index
    %31 = vector.load %arg31[%c0_61, %c0_62] : memref<4x32xbf16, #tpu.memory_space<vmem>>, vector<4x32xbf16>
    %c0_63 = arith.constant 0 : index
    %c0_64 = arith.constant 0 : index
    %32 = vector.load %arg32[%c0_63, %c0_64] : memref<12x32xbf16, #tpu.memory_space<vmem>>, vector<12x32xbf16>
    %c0_65 = arith.constant 0 : index
    %c0_66 = arith.constant 0 : index
    %33 = vector.load %arg33[%c0_65, %c0_66] : memref<1x32xf32, #tpu.memory_space<vmem>>, vector<1x32xf32>
    %c0_67 = arith.constant 0 : index
    %c0_68 = arith.constant 0 : index
    %34 = vector.load %arg34[%c0_67, %c0_68] : memref<1x96xf32, #tpu.memory_space<vmem>>, vector<1x96xf32>
    %c0_69 = arith.constant 0 : index
    %c0_70 = arith.constant 0 : index
    %35 = vector.load %arg35[%c0_69, %c0_70] : memref<1x64xf32, #tpu.memory_space<vmem>>, vector<1x64xf32>
    %c0_71 = arith.constant 0 : index
    %c0_72 = arith.constant 0 : index
    %36 = vector.load %arg36[%c0_71, %c0_72] : memref<32x64xbf16, #tpu.memory_space<vmem>>, vector<32x64xbf16>
    %c0_73 = arith.constant 0 : index
    %c0_74 = arith.constant 0 : index
    %37 = vector.load %arg37[%c0_73, %c0_74] : memref<1x32xf32, #tpu.memory_space<vmem>>, vector<1x32xf32>
    %c0_75 = arith.constant 0 : index
    %c0_76 = arith.constant 0 : index
    %38 = vector.load %arg38[%c0_75, %c0_76] : memref<64x32xbf16, #tpu.memory_space<vmem>>, vector<64x32xbf16>
    %c0_77 = arith.constant 0 : index
    %c0_78 = arith.constant 0 : index
    %39 = vector.load %arg39[%c0_77, %c0_78] : memref<1x32xf32, #tpu.memory_space<vmem>>, vector<1x32xf32>
    %c0_79 = arith.constant 0 : index
    %c0_80 = arith.constant 0 : index
    %40 = vector.load %arg40[%c0_79, %c0_80] : memref<1x32xf32, #tpu.memory_space<vmem>>, vector<1x32xf32>
    %c0_81 = arith.constant 0 : index
    %c0_82 = arith.constant 0 : index
    %41 = vector.load %arg41[%c0_81, %c0_82] : memref<1x32xf32, #tpu.memory_space<vmem>>, vector<1x32xf32>
    %c0_83 = arith.constant 0 : index
    %c0_84 = arith.constant 0 : index
    %42 = vector.load %arg42[%c0_83, %c0_84] : memref<1x32xf32, #tpu.memory_space<vmem>>, vector<1x32xf32>
    %c0_85 = arith.constant 0 : index
    %c0_86 = arith.constant 0 : index
    %43 = vector.load %arg43[%c0_85, %c0_86] : memref<32x32xbf16, #tpu.memory_space<vmem>>, vector<32x32xbf16>
    %c0_87 = arith.constant 0 : index
    %c0_88 = arith.constant 0 : index
    %44 = vector.load %arg44[%c0_87, %c0_88] : memref<32x96xbf16, #tpu.memory_space<vmem>>, vector<32x96xbf16>
    %c0_89 = arith.constant 0 : index
    %c0_90 = arith.constant 0 : index
    %45 = vector.load %arg45[%c0_89, %c0_90] : memref<1x32xf32, #tpu.memory_space<vmem>>, vector<1x32xf32>
    %c0_91 = arith.constant 0 : index
    %c0_92 = arith.constant 0 : index
    %46 = vector.load %arg46[%c0_91, %c0_92] : memref<1x96xf32, #tpu.memory_space<vmem>>, vector<1x96xf32>
    %c0_93 = arith.constant 0 : index
    %c0_94 = arith.constant 0 : index
    %47 = vector.load %arg47[%c0_93, %c0_94] : memref<1x64xf32, #tpu.memory_space<vmem>>, vector<1x64xf32>
    %c0_95 = arith.constant 0 : index
    %c0_96 = arith.constant 0 : index
    %48 = vector.load %arg48[%c0_95, %c0_96] : memref<32x64xbf16, #tpu.memory_space<vmem>>, vector<32x64xbf16>
    %c0_97 = arith.constant 0 : index
    %c0_98 = arith.constant 0 : index
    %49 = vector.load %arg49[%c0_97, %c0_98] : memref<1x32xf32, #tpu.memory_space<vmem>>, vector<1x32xf32>
    %c0_99 = arith.constant 0 : index
    %c0_100 = arith.constant 0 : index
    %50 = vector.load %arg50[%c0_99, %c0_100] : memref<64x32xbf16, #tpu.memory_space<vmem>>, vector<64x32xbf16>
    %c0_101 = arith.constant 0 : index
    %c0_102 = arith.constant 0 : index
    %51 = vector.load %arg51[%c0_101, %c0_102] : memref<1x32xf32, #tpu.memory_space<vmem>>, vector<1x32xf32>
    %c0_103 = arith.constant 0 : index
    %c0_104 = arith.constant 0 : index
    %52 = vector.load %arg52[%c0_103, %c0_104] : memref<1x32xf32, #tpu.memory_space<vmem>>, vector<1x32xf32>
    %c0_105 = arith.constant 0 : index
    %c0_106 = arith.constant 0 : index
    %53 = vector.load %arg53[%c0_105, %c0_106] : memref<1x32xf32, #tpu.memory_space<vmem>>, vector<1x32xf32>
    %c0_107 = arith.constant 0 : index
    %c0_108 = arith.constant 0 : index
    %54 = vector.load %arg54[%c0_107, %c0_108] : memref<1x32xf32, #tpu.memory_space<vmem>>, vector<1x32xf32>
    %c0_109 = arith.constant 0 : index
    %c0_110 = arith.constant 0 : index
    %55 = vector.load %arg55[%c0_109, %c0_110] : memref<32x32xbf16, #tpu.memory_space<vmem>>, vector<32x32xbf16>
    %c0_111 = arith.constant 0 : index
    %c0_112 = arith.constant 0 : index
    %56 = vector.load %arg56[%c0_111, %c0_112] : memref<32x96xbf16, #tpu.memory_space<vmem>>, vector<32x96xbf16>
    %c0_113 = arith.constant 0 : index
    %c0_114 = arith.constant 0 : index
    %57 = vector.load %arg57[%c0_113, %c0_114] : memref<1x32xf32, #tpu.memory_space<vmem>>, vector<1x32xf32>
    %c0_115 = arith.constant 0 : index
    %c0_116 = arith.constant 0 : index
    %58 = vector.load %arg58[%c0_115, %c0_116] : memref<1x32xf32, #tpu.memory_space<vmem>>, vector<1x32xf32>
    %c0_117 = arith.constant 0 : index
    %c0_118 = arith.constant 0 : index
    %59 = vector.load %arg59[%c0_117, %c0_118] : memref<1x128xf32, #tpu.memory_space<vmem>>, vector<1x128xf32>
    %c0_119 = arith.constant 0 : index
    %c0_120 = arith.constant 0 : index
    %60 = vector.load %arg60[%c0_119, %c0_120] : memref<32x128xbf16, #tpu.memory_space<vmem>>, vector<32x128xbf16>
    %cst = arith.constant dense<0.000000e+00> : vector<16x32xf32>
    %61 = tpu.matmul %4, %32, %cst {dimension_numbers = #tpu.dot_dimension_numbers<[1], [0], [0], [1], [0, 0, 1, 1], [], []>} : vector<16x12xbf16>, vector<12x32xbf16>, vector<16x32xf32> -> vector<16x32xf32>
    %cst_121 = arith.constant dense<0.000000e+00> : vector<16x32xf32>
    %62 = tpu.matmul %6, %31, %cst_121 {dimension_numbers = #tpu.dot_dimension_numbers<[1], [0], [0], [1], [0, 0, 1, 1], [], []>} : vector<16x4xbf16>, vector<4x32xbf16>, vector<16x32xf32> -> vector<16x32xf32>
    %63 = arith.addf %61, %62 : vector<16x32xf32>
    %64 = arith.addf %63, %2 : vector<16x32xf32>
    %65 = arith.truncf %64 : vector<16x32xf32> to vector<16x32xbf16>
    %cst_122 = arith.constant dense<0.000000e+00> : vector<16x96xf32>
    %66 = tpu.matmul %65, %44, %cst_122 {dimension_numbers = #tpu.dot_dimension_numbers<[1], [0], [0], [1], [0, 0, 1, 1], [], []>} : vector<16x32xbf16>, vector<32x96xbf16>, vector<16x96xf32> -> vector<16x96xf32>
    %67 = vector.broadcast %34 : vector<1x96xf32> to vector<16x96xf32>
    %68 = arith.addf %66, %67 : vector<16x96xf32>
    %69 = vector.shape_cast %68 : vector<16x96xf32> to vector<2x8x96xf32>
    %70 = vector.extract_strided_slice %69 {offsets = [0, 0, 0], sizes = [2, 8, 32], strides = [1, 1, 1]} : vector<2x8x96xf32> to vector<2x8x32xf32>
    %71 = vector.extract_strided_slice %69 {offsets = [0, 0, 32], sizes = [2, 8, 32], strides = [1, 1, 1]} : vector<2x8x96xf32> to vector<2x8x32xf32>
    %72 = vector.extract_strided_slice %69 {offsets = [0, 0, 64], sizes = [2, 8, 32], strides = [1, 1, 1]} : vector<2x8x96xf32> to vector<2x8x32xf32>
    %73 = arith.truncf %70 : vector<2x8x32xf32> to vector<2x8x32xbf16>
    %74 = arith.truncf %71 : vector<2x8x32xf32> to vector<2x8x32xbf16>
    %75 = arith.truncf %72 : vector<2x8x32xf32> to vector<2x8x32xbf16>
    %76 = vector.extract_strided_slice %73 {offsets = [0, 0, 0], sizes = [2, 8, 8], strides = [1, 1, 1]} : vector<2x8x32xbf16> to vector<2x8x8xbf16>
    %77 = vector.extract_strided_slice %74 {offsets = [0, 0, 0], sizes = [2, 8, 8], strides = [1, 1, 1]} : vector<2x8x32xbf16> to vector<2x8x8xbf16>
    "tpu.trace_start"() <{level = 10 : i32, message = "bqe,bke->bqk"}> : () -> ()
    %cst_123 = arith.constant dense<0.000000e+00> : vector<2x8x8xf32>
    %78 = tpu.matmul %76, %77, %cst_123 {dimension_numbers = #tpu.dot_dimension_numbers<[2], [2], [1], [1], [0, 0, 0, 1, 1, 1], [0], [0]>} : vector<2x8x8xbf16>, vector<2x8x8xbf16>, vector<2x8x8xf32> -> vector<2x8x8xf32>
    "tpu.trace_stop"() : () -> ()
    %cst_124 = arith.constant 0.353553385 : f32
    %79 = vector.broadcast %cst_124 : f32 to vector<2x8x8xf32>
    %80 = arith.mulf %78, %79 : vector<2x8x8xf32>
    %cst_125 = arith.constant dense<0xFF800000> : vector<2x8xf32>
    %81 = vector.multi_reduction <maximumf>, %80, %cst_125 [2] : vector<2x8x8xf32> to vector<2x8xf32>
    %82 = vector.shape_cast %81 : vector<2x8xf32> to vector<2x8x1xf32>
    %83 = vector.broadcast %82 : vector<2x8x1xf32> to vector<2x8x8xf32>
    %84 = arith.subf %80, %83 : vector<2x8x8xf32>
    %85 = math.exp %84 : vector<2x8x8xf32>
    %cst_126 = arith.constant dense<0.000000e+00> : vector<2x8xf32>
    %86 = vector.multi_reduction <add>, %85, %cst_126 [2] : vector<2x8x8xf32> to vector<2x8xf32>
    %87 = vector.shape_cast %86 : vector<2x8xf32> to vector<2x8x1xf32>
    %88 = tpu.reciprocal %87 {approx = true} : vector<2x8x1xf32> -> vector<2x8x1xf32>
    %89 = vector.broadcast %88 : vector<2x8x1xf32> to vector<2x8x8xf32>
    %90 = arith.mulf %85, %89 : vector<2x8x8xf32>
    %91 = arith.truncf %90 : vector<2x8x8xf32> to vector<2x8x8xbf16>
    %92 = vector.extract_strided_slice %75 {offsets = [0, 0, 0], sizes = [2, 8, 8], strides = [1, 1, 1]} : vector<2x8x32xbf16> to vector<2x8x8xbf16>
    "tpu.trace_start"() <{level = 10 : i32, message = "bqk,bke->bqe"}> : () -> ()
    %cst_127 = arith.constant dense<0.000000e+00> : vector<2x8x8xf32>
    %93 = tpu.matmul %91, %92, %cst_127 {dimension_numbers = #tpu.dot_dimension_numbers<[2], [1], [1], [2], [0, 0, 0, 1, 1, 2], [0], [0]>} : vector<2x8x8xbf16>, vector<2x8x8xbf16>, vector<2x8x8xf32> -> vector<2x8x8xf32>
    "tpu.trace_stop"() : () -> ()
    %94 = vector.extract_strided_slice %73 {offsets = [0, 0, 8], sizes = [2, 8, 8], strides = [1, 1, 1]} : vector<2x8x32xbf16> to vector<2x8x8xbf16>
    %95 = vector.extract_strided_slice %74 {offsets = [0, 0, 8], sizes = [2, 8, 8], strides = [1, 1, 1]} : vector<2x8x32xbf16> to vector<2x8x8xbf16>
    "tpu.trace_start"() <{level = 10 : i32, message = "bqe,bke->bqk"}> : () -> ()
    %cst_128 = arith.constant dense<0.000000e+00> : vector<2x8x8xf32>
    %96 = tpu.matmul %94, %95, %cst_128 {dimension_numbers = #tpu.dot_dimension_numbers<[2], [2], [1], [1], [0, 0, 0, 1, 1, 1], [0], [0]>} : vector<2x8x8xbf16>, vector<2x8x8xbf16>, vector<2x8x8xf32> -> vector<2x8x8xf32>
    "tpu.trace_stop"() : () -> ()
    %cst_129 = arith.constant 0.353553385 : f32
    %97 = vector.broadcast %cst_129 : f32 to vector<2x8x8xf32>
    %98 = arith.mulf %96, %97 : vector<2x8x8xf32>
    %cst_130 = arith.constant dense<0xFF800000> : vector<2x8xf32>
    %99 = vector.multi_reduction <maximumf>, %98, %cst_130 [2] : vector<2x8x8xf32> to vector<2x8xf32>
    %100 = vector.shape_cast %99 : vector<2x8xf32> to vector<2x8x1xf32>
    %101 = vector.broadcast %100 : vector<2x8x1xf32> to vector<2x8x8xf32>
    %102 = arith.subf %98, %101 : vector<2x8x8xf32>
    %103 = math.exp %102 : vector<2x8x8xf32>
    %cst_131 = arith.constant dense<0.000000e+00> : vector<2x8xf32>
    %104 = vector.multi_reduction <add>, %103, %cst_131 [2] : vector<2x8x8xf32> to vector<2x8xf32>
    %105 = vector.shape_cast %104 : vector<2x8xf32> to vector<2x8x1xf32>
    %106 = tpu.reciprocal %105 {approx = true} : vector<2x8x1xf32> -> vector<2x8x1xf32>
    %107 = vector.broadcast %106 : vector<2x8x1xf32> to vector<2x8x8xf32>
    %108 = arith.mulf %103, %107 : vector<2x8x8xf32>
    %109 = arith.truncf %108 : vector<2x8x8xf32> to vector<2x8x8xbf16>
    %110 = vector.extract_strided_slice %75 {offsets = [0, 0, 8], sizes = [2, 8, 8], strides = [1, 1, 1]} : vector<2x8x32xbf16> to vector<2x8x8xbf16>
    "tpu.trace_start"() <{level = 10 : i32, message = "bqk,bke->bqe"}> : () -> ()
    %cst_132 = arith.constant dense<0.000000e+00> : vector<2x8x8xf32>
    %111 = tpu.matmul %109, %110, %cst_132 {dimension_numbers = #tpu.dot_dimension_numbers<[2], [1], [1], [2], [0, 0, 0, 1, 1, 2], [0], [0]>} : vector<2x8x8xbf16>, vector<2x8x8xbf16>, vector<2x8x8xf32> -> vector<2x8x8xf32>
    "tpu.trace_stop"() : () -> ()
    %112 = vector.extract_strided_slice %73 {offsets = [0, 0, 16], sizes = [2, 8, 8], strides = [1, 1, 1]} : vector<2x8x32xbf16> to vector<2x8x8xbf16>
    %113 = vector.extract_strided_slice %74 {offsets = [0, 0, 16], sizes = [2, 8, 8], strides = [1, 1, 1]} : vector<2x8x32xbf16> to vector<2x8x8xbf16>
    "tpu.trace_start"() <{level = 10 : i32, message = "bqe,bke->bqk"}> : () -> ()
    %cst_133 = arith.constant dense<0.000000e+00> : vector<2x8x8xf32>
    %114 = tpu.matmul %112, %113, %cst_133 {dimension_numbers = #tpu.dot_dimension_numbers<[2], [2], [1], [1], [0, 0, 0, 1, 1, 1], [0], [0]>} : vector<2x8x8xbf16>, vector<2x8x8xbf16>, vector<2x8x8xf32> -> vector<2x8x8xf32>
    "tpu.trace_stop"() : () -> ()
    %cst_134 = arith.constant 0.353553385 : f32
    %115 = vector.broadcast %cst_134 : f32 to vector<2x8x8xf32>
    %116 = arith.mulf %114, %115 : vector<2x8x8xf32>
    %cst_135 = arith.constant dense<0xFF800000> : vector<2x8xf32>
    %117 = vector.multi_reduction <maximumf>, %116, %cst_135 [2] : vector<2x8x8xf32> to vector<2x8xf32>
    %118 = vector.shape_cast %117 : vector<2x8xf32> to vector<2x8x1xf32>
    %119 = vector.broadcast %118 : vector<2x8x1xf32> to vector<2x8x8xf32>
    %120 = arith.subf %116, %119 : vector<2x8x8xf32>
    %121 = math.exp %120 : vector<2x8x8xf32>
    %cst_136 = arith.constant dense<0.000000e+00> : vector<2x8xf32>
    %122 = vector.multi_reduction <add>, %121, %cst_136 [2] : vector<2x8x8xf32> to vector<2x8xf32>
    %123 = vector.shape_cast %122 : vector<2x8xf32> to vector<2x8x1xf32>
    %124 = tpu.reciprocal %123 {approx = true} : vector<2x8x1xf32> -> vector<2x8x1xf32>
    %125 = vector.broadcast %124 : vector<2x8x1xf32> to vector<2x8x8xf32>
    %126 = arith.mulf %121, %125 : vector<2x8x8xf32>
    %127 = arith.truncf %126 : vector<2x8x8xf32> to vector<2x8x8xbf16>
    %128 = vector.extract_strided_slice %75 {offsets = [0, 0, 16], sizes = [2, 8, 8], strides = [1, 1, 1]} : vector<2x8x32xbf16> to vector<2x8x8xbf16>
    "tpu.trace_start"() <{level = 10 : i32, message = "bqk,bke->bqe"}> : () -> ()
    %cst_137 = arith.constant dense<0.000000e+00> : vector<2x8x8xf32>
    %129 = tpu.matmul %127, %128, %cst_137 {dimension_numbers = #tpu.dot_dimension_numbers<[2], [1], [1], [2], [0, 0, 0, 1, 1, 2], [0], [0]>} : vector<2x8x8xbf16>, vector<2x8x8xbf16>, vector<2x8x8xf32> -> vector<2x8x8xf32>
    "tpu.trace_stop"() : () -> ()
    %130 = vector.extract_strided_slice %73 {offsets = [0, 0, 24], sizes = [2, 8, 8], strides = [1, 1, 1]} : vector<2x8x32xbf16> to vector<2x8x8xbf16>
    %131 = vector.extract_strided_slice %74 {offsets = [0, 0, 24], sizes = [2, 8, 8], strides = [1, 1, 1]} : vector<2x8x32xbf16> to vector<2x8x8xbf16>
    "tpu.trace_start"() <{level = 10 : i32, message = "bqe,bke->bqk"}> : () -> ()
    %cst_138 = arith.constant dense<0.000000e+00> : vector<2x8x8xf32>
    %132 = tpu.matmul %130, %131, %cst_138 {dimension_numbers = #tpu.dot_dimension_numbers<[2], [2], [1], [1], [0, 0, 0, 1, 1, 1], [0], [0]>} : vector<2x8x8xbf16>, vector<2x8x8xbf16>, vector<2x8x8xf32> -> vector<2x8x8xf32>
    "tpu.trace_stop"() : () -> ()
    %cst_139 = arith.constant 0.353553385 : f32
    %133 = vector.broadcast %cst_139 : f32 to vector<2x8x8xf32>
    %134 = arith.mulf %132, %133 : vector<2x8x8xf32>
    %cst_140 = arith.constant dense<0xFF800000> : vector<2x8xf32>
    %135 = vector.multi_reduction <maximumf>, %134, %cst_140 [2] : vector<2x8x8xf32> to vector<2x8xf32>
    %136 = vector.shape_cast %135 : vector<2x8xf32> to vector<2x8x1xf32>
    %137 = vector.broadcast %136 : vector<2x8x1xf32> to vector<2x8x8xf32>
    %138 = arith.subf %134, %137 : vector<2x8x8xf32>
    %139 = math.exp %138 : vector<2x8x8xf32>
    %cst_141 = arith.constant dense<0.000000e+00> : vector<2x8xf32>
    %140 = vector.multi_reduction <add>, %139, %cst_141 [2] : vector<2x8x8xf32> to vector<2x8xf32>
    %141 = vector.shape_cast %140 : vector<2x8xf32> to vector<2x8x1xf32>
    %142 = tpu.reciprocal %141 {approx = true} : vector<2x8x1xf32> -> vector<2x8x1xf32>
    %143 = vector.broadcast %142 : vector<2x8x1xf32> to vector<2x8x8xf32>
    %144 = arith.mulf %139, %143 : vector<2x8x8xf32>
    %145 = arith.truncf %144 : vector<2x8x8xf32> to vector<2x8x8xbf16>
    %146 = vector.extract_strided_slice %75 {offsets = [0, 0, 24], sizes = [2, 8, 8], strides = [1, 1, 1]} : vector<2x8x32xbf16> to vector<2x8x8xbf16>
    "tpu.trace_start"() <{level = 10 : i32, message = "bqk,bke->bqe"}> : () -> ()
    %cst_142 = arith.constant dense<0.000000e+00> : vector<2x8x8xf32>
    %147 = tpu.matmul %145, %146, %cst_142 {dimension_numbers = #tpu.dot_dimension_numbers<[2], [1], [1], [2], [0, 0, 0, 1, 1, 2], [0], [0]>} : vector<2x8x8xbf16>, vector<2x8x8xbf16>, vector<2x8x8xf32> -> vector<2x8x8xf32>
    "tpu.trace_stop"() : () -> ()
    %148 = tpu.concatenate %93, %111, %129, %147 in 2 : vector<2x8x8xf32>, vector<2x8x8xf32>, vector<2x8x8xf32>, vector<2x8x8xf32> -> vector<2x8x32xf32>
    %149 = vector.shape_cast %148 : vector<2x8x32xf32> to vector<16x32xf32>
    %150 = arith.truncf %149 : vector<16x32xf32> to vector<16x32xbf16>
    %cst_143 = arith.constant dense<0.000000e+00> : vector<16x32xf32>
    %151 = tpu.matmul %150, %43, %cst_143 {dimension_numbers = #tpu.dot_dimension_numbers<[1], [0], [0], [1], [0, 0, 1, 1], [], []>} : vector<16x32xbf16>, vector<32x32xbf16>, vector<16x32xf32> -> vector<16x32xf32>
    %152 = vector.broadcast %33 : vector<1x32xf32> to vector<16x32xf32>
    %153 = arith.addf %151, %152 : vector<16x32xf32>
    %154 = arith.addf %64, %153 : vector<16x32xf32>
    %cst_144 = arith.constant dense<0.000000e+00> : vector<16xf32>
    %155 = vector.multi_reduction <add>, %154, %cst_144 [1] : vector<16x32xf32> to vector<16xf32>
    %156 = vector.shape_cast %155 : vector<16xf32> to vector<16x1xf32>
    %cst_145 = arith.constant 3.200000e+01 : f32
    %157 = vector.broadcast %cst_145 : f32 to vector<16x1xf32>
    %158 = arith.divf %156, %157 : vector<16x1xf32>
    %159 = vector.broadcast %158 : vector<16x1xf32> to vector<16x32xf32>
    %160 = arith.subf %154, %159 : vector<16x32xf32>
    %161 = arith.mulf %160, %160 : vector<16x32xf32>
    %cst_146 = arith.constant dense<0.000000e+00> : vector<16xf32>
    %162 = vector.multi_reduction <add>, %161, %cst_146 [1] : vector<16x32xf32> to vector<16xf32>
    %163 = vector.shape_cast %162 : vector<16xf32> to vector<16x1xf32>
    %cst_147 = arith.constant 3.200000e+01 : f32
    %164 = vector.broadcast %cst_147 : f32 to vector<16x1xf32>
    %165 = arith.divf %163, %164 : vector<16x1xf32>
    %166 = vector.broadcast %158 : vector<16x1xf32> to vector<16x32xf32>
    %167 = arith.subf %154, %166 : vector<16x32xf32>
    %cst_148 = arith.constant 9.99999974E-6 : f32
    %168 = vector.broadcast %cst_148 : f32 to vector<16x1xf32>
    %169 = arith.addf %165, %168 : vector<16x1xf32>
    %170 = math.rsqrt %169 : vector<16x1xf32>
    %171 = vector.broadcast %170 : vector<16x1xf32> to vector<16x32xf32>
    %172 = arith.mulf %167, %171 : vector<16x32xf32>
    %173 = vector.broadcast %40 : vector<1x32xf32> to vector<16x32xf32>
    %174 = arith.mulf %172, %173 : vector<16x32xf32>
    %175 = vector.broadcast %39 : vector<1x32xf32> to vector<16x32xf32>
    %176 = arith.addf %174, %175 : vector<16x32xf32>
    %177 = arith.truncf %176 : vector<16x32xf32> to vector<16x32xbf16>
    %cst_149 = arith.constant dense<0.000000e+00> : vector<16x64xf32>
    %178 = tpu.matmul %177, %36, %cst_149 {dimension_numbers = #tpu.dot_dimension_numbers<[1], [0], [0], [1], [0, 0, 1, 1], [], []>} : vector<16x32xbf16>, vector<32x64xbf16>, vector<16x64xf32> -> vector<16x64xf32>
    %179 = vector.broadcast %35 : vector<1x64xf32> to vector<16x64xf32>
    %180 = arith.addf %178, %179 : vector<16x64xf32>
    %cst_150 = arith.constant 0.000000e+00 : f32
    %181 = vector.broadcast %cst_150 : f32 to vector<16x64xf32>
    %182 = arith.maximumf %180, %181 : vector<16x64xf32>
    %183 = arith.truncf %182 : vector<16x64xf32> to vector<16x64xbf16>
    %cst_151 = arith.constant dense<0.000000e+00> : vector<16x32xf32>
    %184 = tpu.matmul %183, %38, %cst_151 {dimension_numbers = #tpu.dot_dimension_numbers<[1], [0], [0], [1], [0, 0, 1, 1], [], []>} : vector<16x64xbf16>, vector<64x32xbf16>, vector<16x32xf32> -> vector<16x32xf32>
    %185 = vector.broadcast %37 : vector<1x32xf32> to vector<16x32xf32>
    %186 = arith.addf %184, %185 : vector<16x32xf32>
    %187 = arith.addf %176, %186 : vector<16x32xf32>
    %cst_152 = arith.constant dense<0.000000e+00> : vector<16xf32>
    %188 = vector.multi_reduction <add>, %187, %cst_152 [1] : vector<16x32xf32> to vector<16xf32>
    %189 = vector.shape_cast %188 : vector<16xf32> to vector<16x1xf32>
    %cst_153 = arith.constant 3.200000e+01 : f32
    %190 = vector.broadcast %cst_153 : f32 to vector<16x1xf32>
    %191 = arith.divf %189, %190 : vector<16x1xf32>
    %192 = vector.broadcast %191 : vector<16x1xf32> to vector<16x32xf32>
    %193 = arith.subf %187, %192 : vector<16x32xf32>
    %194 = arith.mulf %193, %193 : vector<16x32xf32>
    %cst_154 = arith.constant dense<0.000000e+00> : vector<16xf32>
    %195 = vector.multi_reduction <add>, %194, %cst_154 [1] : vector<16x32xf32> to vector<16xf32>
    %196 = vector.shape_cast %195 : vector<16xf32> to vector<16x1xf32>
    %cst_155 = arith.constant 3.200000e+01 : f32
    %197 = vector.broadcast %cst_155 : f32 to vector<16x1xf32>
    %198 = arith.divf %196, %197 : vector<16x1xf32>
    %199 = vector.broadcast %191 : vector<16x1xf32> to vector<16x32xf32>
    %200 = arith.subf %187, %199 : vector<16x32xf32>
    %cst_156 = arith.constant 9.99999974E-6 : f32
    %201 = vector.broadcast %cst_156 : f32 to vector<16x1xf32>
    %202 = arith.addf %198, %201 : vector<16x1xf32>
    %203 = math.rsqrt %202 : vector<16x1xf32>
    %204 = vector.broadcast %203 : vector<16x1xf32> to vector<16x32xf32>
    %205 = arith.mulf %200, %204 : vector<16x32xf32>
    %206 = vector.broadcast %42 : vector<1x32xf32> to vector<16x32xf32>
    %207 = arith.mulf %205, %206 : vector<16x32xf32>
    %208 = vector.broadcast %41 : vector<1x32xf32> to vector<16x32xf32>
    %209 = arith.addf %207, %208 : vector<16x32xf32>
    %210 = arith.truncf %209 : vector<16x32xf32> to vector<16x32xbf16>
    %cst_157 = arith.constant dense<0.000000e+00> : vector<16x96xf32>
    %211 = tpu.matmul %210, %56, %cst_157 {dimension_numbers = #tpu.dot_dimension_numbers<[1], [0], [0], [1], [0, 0, 1, 1], [], []>} : vector<16x32xbf16>, vector<32x96xbf16>, vector<16x96xf32> -> vector<16x96xf32>
    %212 = vector.broadcast %46 : vector<1x96xf32> to vector<16x96xf32>
    %213 = arith.addf %211, %212 : vector<16x96xf32>
    %214 = vector.shape_cast %213 : vector<16x96xf32> to vector<2x8x96xf32>
    %215 = vector.extract_strided_slice %214 {offsets = [0, 0, 0], sizes = [2, 8, 32], strides = [1, 1, 1]} : vector<2x8x96xf32> to vector<2x8x32xf32>
    %216 = vector.extract_strided_slice %214 {offsets = [0, 0, 32], sizes = [2, 8, 32], strides = [1, 1, 1]} : vector<2x8x96xf32> to vector<2x8x32xf32>
    %217 = vector.extract_strided_slice %214 {offsets = [0, 0, 64], sizes = [2, 8, 32], strides = [1, 1, 1]} : vector<2x8x96xf32> to vector<2x8x32xf32>
    %218 = arith.truncf %215 : vector<2x8x32xf32> to vector<2x8x32xbf16>
    %219 = arith.truncf %216 : vector<2x8x32xf32> to vector<2x8x32xbf16>
    %220 = arith.truncf %217 : vector<2x8x32xf32> to vector<2x8x32xbf16>
    %221 = vector.extract_strided_slice %218 {offsets = [0, 0, 0], sizes = [2, 8, 8], strides = [1, 1, 1]} : vector<2x8x32xbf16> to vector<2x8x8xbf16>
    %222 = vector.extract_strided_slice %219 {offsets = [0, 0, 0], sizes = [2, 8, 8], strides = [1, 1, 1]} : vector<2x8x32xbf16> to vector<2x8x8xbf16>
    "tpu.trace_start"() <{level = 10 : i32, message = "bqe,bke->bqk"}> : () -> ()
    %cst_158 = arith.constant dense<0.000000e+00> : vector<2x8x8xf32>
    %223 = tpu.matmul %221, %222, %cst_158 {dimension_numbers = #tpu.dot_dimension_numbers<[2], [2], [1], [1], [0, 0, 0, 1, 1, 1], [0], [0]>} : vector<2x8x8xbf16>, vector<2x8x8xbf16>, vector<2x8x8xf32> -> vector<2x8x8xf32>
    "tpu.trace_stop"() : () -> ()
    %cst_159 = arith.constant 0.353553385 : f32
    %224 = vector.broadcast %cst_159 : f32 to vector<2x8x8xf32>
    %225 = arith.mulf %223, %224 : vector<2x8x8xf32>
    %cst_160 = arith.constant dense<0xFF800000> : vector<2x8xf32>
    %226 = vector.multi_reduction <maximumf>, %225, %cst_160 [2] : vector<2x8x8xf32> to vector<2x8xf32>
    %227 = vector.shape_cast %226 : vector<2x8xf32> to vector<2x8x1xf32>
    %228 = vector.broadcast %227 : vector<2x8x1xf32> to vector<2x8x8xf32>
    %229 = arith.subf %225, %228 : vector<2x8x8xf32>
    %230 = math.exp %229 : vector<2x8x8xf32>
    %cst_161 = arith.constant dense<0.000000e+00> : vector<2x8xf32>
    %231 = vector.multi_reduction <add>, %230, %cst_161 [2] : vector<2x8x8xf32> to vector<2x8xf32>
    %232 = vector.shape_cast %231 : vector<2x8xf32> to vector<2x8x1xf32>
    %233 = tpu.reciprocal %232 {approx = true} : vector<2x8x1xf32> -> vector<2x8x1xf32>
    %234 = vector.broadcast %233 : vector<2x8x1xf32> to vector<2x8x8xf32>
    %235 = arith.mulf %230, %234 : vector<2x8x8xf32>
    %236 = arith.truncf %235 : vector<2x8x8xf32> to vector<2x8x8xbf16>
    %237 = vector.extract_strided_slice %220 {offsets = [0, 0, 0], sizes = [2, 8, 8], strides = [1, 1, 1]} : vector<2x8x32xbf16> to vector<2x8x8xbf16>
    "tpu.trace_start"() <{level = 10 : i32, message = "bqk,bke->bqe"}> : () -> ()
    %cst_162 = arith.constant dense<0.000000e+00> : vector<2x8x8xf32>
    %238 = tpu.matmul %236, %237, %cst_162 {dimension_numbers = #tpu.dot_dimension_numbers<[2], [1], [1], [2], [0, 0, 0, 1, 1, 2], [0], [0]>} : vector<2x8x8xbf16>, vector<2x8x8xbf16>, vector<2x8x8xf32> -> vector<2x8x8xf32>
    "tpu.trace_stop"() : () -> ()
    %239 = vector.extract_strided_slice %218 {offsets = [0, 0, 8], sizes = [2, 8, 8], strides = [1, 1, 1]} : vector<2x8x32xbf16> to vector<2x8x8xbf16>
    %240 = vector.extract_strided_slice %219 {offsets = [0, 0, 8], sizes = [2, 8, 8], strides = [1, 1, 1]} : vector<2x8x32xbf16> to vector<2x8x8xbf16>
    "tpu.trace_start"() <{level = 10 : i32, message = "bqe,bke->bqk"}> : () -> ()
    %cst_163 = arith.constant dense<0.000000e+00> : vector<2x8x8xf32>
    %241 = tpu.matmul %239, %240, %cst_163 {dimension_numbers = #tpu.dot_dimension_numbers<[2], [2], [1], [1], [0, 0, 0, 1, 1, 1], [0], [0]>} : vector<2x8x8xbf16>, vector<2x8x8xbf16>, vector<2x8x8xf32> -> vector<2x8x8xf32>
    "tpu.trace_stop"() : () -> ()
    %cst_164 = arith.constant 0.353553385 : f32
    %242 = vector.broadcast %cst_164 : f32 to vector<2x8x8xf32>
    %243 = arith.mulf %241, %242 : vector<2x8x8xf32>
    %cst_165 = arith.constant dense<0xFF800000> : vector<2x8xf32>
    %244 = vector.multi_reduction <maximumf>, %243, %cst_165 [2] : vector<2x8x8xf32> to vector<2x8xf32>
    %245 = vector.shape_cast %244 : vector<2x8xf32> to vector<2x8x1xf32>
    %246 = vector.broadcast %245 : vector<2x8x1xf32> to vector<2x8x8xf32>
    %247 = arith.subf %243, %246 : vector<2x8x8xf32>
    %248 = math.exp %247 : vector<2x8x8xf32>
    %cst_166 = arith.constant dense<0.000000e+00> : vector<2x8xf32>
    %249 = vector.multi_reduction <add>, %248, %cst_166 [2] : vector<2x8x8xf32> to vector<2x8xf32>
    %250 = vector.shape_cast %249 : vector<2x8xf32> to vector<2x8x1xf32>
    %251 = tpu.reciprocal %250 {approx = true} : vector<2x8x1xf32> -> vector<2x8x1xf32>
    %252 = vector.broadcast %251 : vector<2x8x1xf32> to vector<2x8x8xf32>
    %253 = arith.mulf %248, %252 : vector<2x8x8xf32>
    %254 = arith.truncf %253 : vector<2x8x8xf32> to vector<2x8x8xbf16>
    %255 = vector.extract_strided_slice %220 {offsets = [0, 0, 8], sizes = [2, 8, 8], strides = [1, 1, 1]} : vector<2x8x32xbf16> to vector<2x8x8xbf16>
    "tpu.trace_start"() <{level = 10 : i32, message = "bqk,bke->bqe"}> : () -> ()
    %cst_167 = arith.constant dense<0.000000e+00> : vector<2x8x8xf32>
    %256 = tpu.matmul %254, %255, %cst_167 {dimension_numbers = #tpu.dot_dimension_numbers<[2], [1], [1], [2], [0, 0, 0, 1, 1, 2], [0], [0]>} : vector<2x8x8xbf16>, vector<2x8x8xbf16>, vector<2x8x8xf32> -> vector<2x8x8xf32>
    "tpu.trace_stop"() : () -> ()
    %257 = vector.extract_strided_slice %218 {offsets = [0, 0, 16], sizes = [2, 8, 8], strides = [1, 1, 1]} : vector<2x8x32xbf16> to vector<2x8x8xbf16>
    %258 = vector.extract_strided_slice %219 {offsets = [0, 0, 16], sizes = [2, 8, 8], strides = [1, 1, 1]} : vector<2x8x32xbf16> to vector<2x8x8xbf16>
    "tpu.trace_start"() <{level = 10 : i32, message = "bqe,bke->bqk"}> : () -> ()
    %cst_168 = arith.constant dense<0.000000e+00> : vector<2x8x8xf32>
    %259 = tpu.matmul %257, %258, %cst_168 {dimension_numbers = #tpu.dot_dimension_numbers<[2], [2], [1], [1], [0, 0, 0, 1, 1, 1], [0], [0]>} : vector<2x8x8xbf16>, vector<2x8x8xbf16>, vector<2x8x8xf32> -> vector<2x8x8xf32>
    "tpu.trace_stop"() : () -> ()
    %cst_169 = arith.constant 0.353553385 : f32
    %260 = vector.broadcast %cst_169 : f32 to vector<2x8x8xf32>
    %261 = arith.mulf %259, %260 : vector<2x8x8xf32>
    %cst_170 = arith.constant dense<0xFF800000> : vector<2x8xf32>
    %262 = vector.multi_reduction <maximumf>, %261, %cst_170 [2] : vector<2x8x8xf32> to vector<2x8xf32>
    %263 = vector.shape_cast %262 : vector<2x8xf32> to vector<2x8x1xf32>
    %264 = vector.broadcast %263 : vector<2x8x1xf32> to vector<2x8x8xf32>
    %265 = arith.subf %261, %264 : vector<2x8x8xf32>
    %266 = math.exp %265 : vector<2x8x8xf32>
    %cst_171 = arith.constant dense<0.000000e+00> : vector<2x8xf32>
    %267 = vector.multi_reduction <add>, %266, %cst_171 [2] : vector<2x8x8xf32> to vector<2x8xf32>
    %268 = vector.shape_cast %267 : vector<2x8xf32> to vector<2x8x1xf32>
    %269 = tpu.reciprocal %268 {approx = true} : vector<2x8x1xf32> -> vector<2x8x1xf32>
    %270 = vector.broadcast %269 : vector<2x8x1xf32> to vector<2x8x8xf32>
    %271 = arith.mulf %266, %270 : vector<2x8x8xf32>
    %272 = arith.truncf %271 : vector<2x8x8xf32> to vector<2x8x8xbf16>
    %273 = vector.extract_strided_slice %220 {offsets = [0, 0, 16], sizes = [2, 8, 8], strides = [1, 1, 1]} : vector<2x8x32xbf16> to vector<2x8x8xbf16>
    "tpu.trace_start"() <{level = 10 : i32, message = "bqk,bke->bqe"}> : () -> ()
    %cst_172 = arith.constant dense<0.000000e+00> : vector<2x8x8xf32>
    %274 = tpu.matmul %272, %273, %cst_172 {dimension_numbers = #tpu.dot_dimension_numbers<[2], [1], [1], [2], [0, 0, 0, 1, 1, 2], [0], [0]>} : vector<2x8x8xbf16>, vector<2x8x8xbf16>, vector<2x8x8xf32> -> vector<2x8x8xf32>
    "tpu.trace_stop"() : () -> ()
    %275 = vector.extract_strided_slice %218 {offsets = [0, 0, 24], sizes = [2, 8, 8], strides = [1, 1, 1]} : vector<2x8x32xbf16> to vector<2x8x8xbf16>
    %276 = vector.extract_strided_slice %219 {offsets = [0, 0, 24], sizes = [2, 8, 8], strides = [1, 1, 1]} : vector<2x8x32xbf16> to vector<2x8x8xbf16>
    "tpu.trace_start"() <{level = 10 : i32, message = "bqe,bke->bqk"}> : () -> ()
    %cst_173 = arith.constant dense<0.000000e+00> : vector<2x8x8xf32>
    %277 = tpu.matmul %275, %276, %cst_173 {dimension_numbers = #tpu.dot_dimension_numbers<[2], [2], [1], [1], [0, 0, 0, 1, 1, 1], [0], [0]>} : vector<2x8x8xbf16>, vector<2x8x8xbf16>, vector<2x8x8xf32> -> vector<2x8x8xf32>
    "tpu.trace_stop"() : () -> ()
    %cst_174 = arith.constant 0.353553385 : f32
    %278 = vector.broadcast %cst_174 : f32 to vector<2x8x8xf32>
    %279 = arith.mulf %277, %278 : vector<2x8x8xf32>
    %cst_175 = arith.constant dense<0xFF800000> : vector<2x8xf32>
    %280 = vector.multi_reduction <maximumf>, %279, %cst_175 [2] : vector<2x8x8xf32> to vector<2x8xf32>
    %281 = vector.shape_cast %280 : vector<2x8xf32> to vector<2x8x1xf32>
    %282 = vector.broadcast %281 : vector<2x8x1xf32> to vector<2x8x8xf32>
    %283 = arith.subf %279, %282 : vector<2x8x8xf32>
    %284 = math.exp %283 : vector<2x8x8xf32>
    %cst_176 = arith.constant dense<0.000000e+00> : vector<2x8xf32>
    %285 = vector.multi_reduction <add>, %284, %cst_176 [2] : vector<2x8x8xf32> to vector<2x8xf32>
    %286 = vector.shape_cast %285 : vector<2x8xf32> to vector<2x8x1xf32>
    %287 = tpu.reciprocal %286 {approx = true} : vector<2x8x1xf32> -> vector<2x8x1xf32>
    %288 = vector.broadcast %287 : vector<2x8x1xf32> to vector<2x8x8xf32>
    %289 = arith.mulf %284, %288 : vector<2x8x8xf32>
    %290 = arith.truncf %289 : vector<2x8x8xf32> to vector<2x8x8xbf16>
    %291 = vector.extract_strided_slice %220 {offsets = [0, 0, 24], sizes = [2, 8, 8], strides = [1, 1, 1]} : vector<2x8x32xbf16> to vector<2x8x8xbf16>
    "tpu.trace_start"() <{level = 10 : i32, message = "bqk,bke->bqe"}> : () -> ()
    %cst_177 = arith.constant dense<0.000000e+00> : vector<2x8x8xf32>
    %292 = tpu.matmul %290, %291, %cst_177 {dimension_numbers = #tpu.dot_dimension_numbers<[2], [1], [1], [2], [0, 0, 0, 1, 1, 2], [0], [0]>} : vector<2x8x8xbf16>, vector<2x8x8xbf16>, vector<2x8x8xf32> -> vector<2x8x8xf32>
    "tpu.trace_stop"() : () -> ()
    %293 = tpu.concatenate %238, %256, %274, %292 in 2 : vector<2x8x8xf32>, vector<2x8x8xf32>, vector<2x8x8xf32>, vector<2x8x8xf32> -> vector<2x8x32xf32>
    %294 = vector.shape_cast %293 : vector<2x8x32xf32> to vector<16x32xf32>
    %295 = arith.truncf %294 : vector<16x32xf32> to vector<16x32xbf16>
    %cst_178 = arith.constant dense<0.000000e+00> : vector<16x32xf32>
    %296 = tpu.matmul %295, %55, %cst_178 {dimension_numbers = #tpu.dot_dimension_numbers<[1], [0], [0], [1], [0, 0, 1, 1], [], []>} : vector<16x32xbf16>, vector<32x32xbf16>, vector<16x32xf32> -> vector<16x32xf32>
    %297 = vector.broadcast %45 : vector<1x32xf32> to vector<16x32xf32>
    %298 = arith.addf %296, %297 : vector<16x32xf32>
    %299 = arith.addf %209, %298 : vector<16x32xf32>
    %cst_179 = arith.constant dense<0.000000e+00> : vector<16xf32>
    %300 = vector.multi_reduction <add>, %299, %cst_179 [1] : vector<16x32xf32> to vector<16xf32>
    %301 = vector.shape_cast %300 : vector<16xf32> to vector<16x1xf32>
    %cst_180 = arith.constant 3.200000e+01 : f32
    %302 = vector.broadcast %cst_180 : f32 to vector<16x1xf32>
    %303 = arith.divf %301, %302 : vector<16x1xf32>
    %304 = vector.broadcast %303 : vector<16x1xf32> to vector<16x32xf32>
    %305 = arith.subf %299, %304 : vector<16x32xf32>
    %306 = arith.mulf %305, %305 : vector<16x32xf32>
    %cst_181 = arith.constant dense<0.000000e+00> : vector<16xf32>
    %307 = vector.multi_reduction <add>, %306, %cst_181 [1] : vector<16x32xf32> to vector<16xf32>
    %308 = vector.shape_cast %307 : vector<16xf32> to vector<16x1xf32>
    %cst_182 = arith.constant 3.200000e+01 : f32
    %309 = vector.broadcast %cst_182 : f32 to vector<16x1xf32>
    %310 = arith.divf %308, %309 : vector<16x1xf32>
    %311 = vector.broadcast %303 : vector<16x1xf32> to vector<16x32xf32>
    %312 = arith.subf %299, %311 : vector<16x32xf32>
    %cst_183 = arith.constant 9.99999974E-6 : f32
    %313 = vector.broadcast %cst_183 : f32 to vector<16x1xf32>
    %314 = arith.addf %310, %313 : vector<16x1xf32>
    %315 = math.rsqrt %314 : vector<16x1xf32>
    %316 = vector.broadcast %315 : vector<16x1xf32> to vector<16x32xf32>
    %317 = arith.mulf %312, %316 : vector<16x32xf32>
    %318 = vector.broadcast %52 : vector<1x32xf32> to vector<16x32xf32>
    %319 = arith.mulf %317, %318 : vector<16x32xf32>
    %320 = vector.broadcast %51 : vector<1x32xf32> to vector<16x32xf32>
    %321 = arith.addf %319, %320 : vector<16x32xf32>
    %322 = arith.truncf %321 : vector<16x32xf32> to vector<16x32xbf16>
    %cst_184 = arith.constant dense<0.000000e+00> : vector<16x64xf32>
    %323 = tpu.matmul %322, %48, %cst_184 {dimension_numbers = #tpu.dot_dimension_numbers<[1], [0], [0], [1], [0, 0, 1, 1], [], []>} : vector<16x32xbf16>, vector<32x64xbf16>, vector<16x64xf32> -> vector<16x64xf32>
    %324 = vector.broadcast %47 : vector<1x64xf32> to vector<16x64xf32>
    %325 = arith.addf %323, %324 : vector<16x64xf32>
    %cst_185 = arith.constant 0.000000e+00 : f32
    %326 = vector.broadcast %cst_185 : f32 to vector<16x64xf32>
    %327 = arith.maximumf %325, %326 : vector<16x64xf32>
    %328 = arith.truncf %327 : vector<16x64xf32> to vector<16x64xbf16>
    %cst_186 = arith.constant dense<0.000000e+00> : vector<16x32xf32>
    %329 = tpu.matmul %328, %50, %cst_186 {dimension_numbers = #tpu.dot_dimension_numbers<[1], [0], [0], [1], [0, 0, 1, 1], [], []>} : vector<16x64xbf16>, vector<64x32xbf16>, vector<16x32xf32> -> vector<16x32xf32>
    %330 = vector.broadcast %49 : vector<1x32xf32> to vector<16x32xf32>
    %331 = arith.addf %329, %330 : vector<16x32xf32>
    %332 = arith.addf %321, %331 : vector<16x32xf32>
    %cst_187 = arith.constant dense<0.000000e+00> : vector<16xf32>
    %333 = vector.multi_reduction <add>, %332, %cst_187 [1] : vector<16x32xf32> to vector<16xf32>
    %334 = vector.shape_cast %333 : vector<16xf32> to vector<16x1xf32>
    %cst_188 = arith.constant 3.200000e+01 : f32
    %335 = vector.broadcast %cst_188 : f32 to vector<16x1xf32>
    %336 = arith.divf %334, %335 : vector<16x1xf32>
    %337 = vector.broadcast %336 : vector<16x1xf32> to vector<16x32xf32>
    %338 = arith.subf %332, %337 : vector<16x32xf32>
    %339 = arith.mulf %338, %338 : vector<16x32xf32>
    %cst_189 = arith.constant dense<0.000000e+00> : vector<16xf32>
    %340 = vector.multi_reduction <add>, %339, %cst_189 [1] : vector<16x32xf32> to vector<16xf32>
    %341 = vector.shape_cast %340 : vector<16xf32> to vector<16x1xf32>
    %cst_190 = arith.constant 3.200000e+01 : f32
    %342 = vector.broadcast %cst_190 : f32 to vector<16x1xf32>
    %343 = arith.divf %341, %342 : vector<16x1xf32>
    %344 = vector.broadcast %336 : vector<16x1xf32> to vector<16x32xf32>
    %345 = arith.subf %332, %344 : vector<16x32xf32>
    %cst_191 = arith.constant 9.99999974E-6 : f32
    %346 = vector.broadcast %cst_191 : f32 to vector<16x1xf32>
    %347 = arith.addf %343, %346 : vector<16x1xf32>
    %348 = math.rsqrt %347 : vector<16x1xf32>
    %349 = vector.broadcast %348 : vector<16x1xf32> to vector<16x32xf32>
    %350 = arith.mulf %345, %349 : vector<16x32xf32>
    %351 = vector.broadcast %54 : vector<1x32xf32> to vector<16x32xf32>
    %352 = arith.mulf %350, %351 : vector<16x32xf32>
    %353 = vector.broadcast %53 : vector<1x32xf32> to vector<16x32xf32>
    %354 = arith.addf %352, %353 : vector<16x32xf32>
    %cst_192 = arith.constant dense<0.000000e+00> : vector<16xf32>
    %355 = vector.multi_reduction <add>, %354, %cst_192 [1] : vector<16x32xf32> to vector<16xf32>
    %356 = vector.shape_cast %355 : vector<16xf32> to vector<16x1xf32>
    %cst_193 = arith.constant 3.200000e+01 : f32
    %357 = vector.broadcast %cst_193 : f32 to vector<16x1xf32>
    %358 = arith.divf %356, %357 : vector<16x1xf32>
    %359 = vector.broadcast %358 : vector<16x1xf32> to vector<16x32xf32>
    %360 = arith.subf %354, %359 : vector<16x32xf32>
    %361 = arith.mulf %360, %360 : vector<16x32xf32>
    %cst_194 = arith.constant dense<0.000000e+00> : vector<16xf32>
    %362 = vector.multi_reduction <add>, %361, %cst_194 [1] : vector<16x32xf32> to vector<16xf32>
    %363 = vector.shape_cast %362 : vector<16xf32> to vector<16x1xf32>
    %cst_195 = arith.constant 3.200000e+01 : f32
    %364 = vector.broadcast %cst_195 : f32 to vector<16x1xf32>
    %365 = arith.divf %363, %364 : vector<16x1xf32>
    %366 = vector.broadcast %358 : vector<16x1xf32> to vector<16x32xf32>
    %367 = arith.subf %354, %366 : vector<16x32xf32>
    %cst_196 = arith.constant 9.99999974E-6 : f32
    %368 = vector.broadcast %cst_196 : f32 to vector<16x1xf32>
    %369 = arith.addf %365, %368 : vector<16x1xf32>
    %370 = math.rsqrt %369 : vector<16x1xf32>
    %371 = vector.broadcast %370 : vector<16x1xf32> to vector<16x32xf32>
    %372 = arith.mulf %367, %371 : vector<16x32xf32>
    %373 = vector.broadcast %58 : vector<1x32xf32> to vector<16x32xf32>
    %374 = arith.mulf %372, %373 : vector<16x32xf32>
    %375 = vector.broadcast %57 : vector<1x32xf32> to vector<16x32xf32>
    %376 = arith.addf %374, %375 : vector<16x32xf32>
    %cst_197 = arith.constant dense<0.000000e+00> : vector<16x32xf32>
    %377 = tpu.matmul %3, %8, %cst_197 {dimension_numbers = #tpu.dot_dimension_numbers<[1], [0], [0], [1], [0, 0, 1, 1], [], []>} : vector<16x12xbf16>, vector<12x32xbf16>, vector<16x32xf32> -> vector<16x32xf32>
    %cst_198 = arith.constant dense<0.000000e+00> : vector<16x32xf32>
    %378 = tpu.matmul %5, %7, %cst_198 {dimension_numbers = #tpu.dot_dimension_numbers<[1], [0], [0], [1], [0, 0, 1, 1], [], []>} : vector<16x4xbf16>, vector<4x32xbf16>, vector<16x32xf32> -> vector<16x32xf32>
    %379 = arith.addf %377, %378 : vector<16x32xf32>
    %380 = arith.addf %379, %1 : vector<16x32xf32>
    %381 = arith.truncf %380 : vector<16x32xf32> to vector<16x32xbf16>
    %cst_199 = arith.constant dense<0.000000e+00> : vector<16x96xf32>
    %382 = tpu.matmul %381, %28, %cst_199 {dimension_numbers = #tpu.dot_dimension_numbers<[1], [0], [0], [1], [0, 0, 1, 1], [], []>} : vector<16x32xbf16>, vector<32x96xbf16>, vector<16x96xf32> -> vector<16x96xf32>
    %383 = vector.broadcast %26 : vector<1x96xf32> to vector<16x96xf32>
    %384 = arith.addf %382, %383 : vector<16x96xf32>
    %385 = vector.shape_cast %384 : vector<16x96xf32> to vector<2x8x96xf32>
    %386 = vector.extract_strided_slice %385 {offsets = [0, 0, 0], sizes = [2, 8, 32], strides = [1, 1, 1]} : vector<2x8x96xf32> to vector<2x8x32xf32>
    %387 = vector.extract_strided_slice %385 {offsets = [0, 0, 32], sizes = [2, 8, 32], strides = [1, 1, 1]} : vector<2x8x96xf32> to vector<2x8x32xf32>
    %388 = vector.extract_strided_slice %385 {offsets = [0, 0, 64], sizes = [2, 8, 32], strides = [1, 1, 1]} : vector<2x8x96xf32> to vector<2x8x32xf32>
    %389 = arith.truncf %386 : vector<2x8x32xf32> to vector<2x8x32xbf16>
    %390 = arith.truncf %387 : vector<2x8x32xf32> to vector<2x8x32xbf16>
    %391 = arith.truncf %388 : vector<2x8x32xf32> to vector<2x8x32xbf16>
    %392 = vector.shape_cast %0 : vector<8x8xf32> to vector<1x8x8xf32>
    %393 = vector.broadcast %392 : vector<1x8x8xf32> to vector<2x8x8xf32>
    %394 = vector.extract_strided_slice %389 {offsets = [0, 0, 0], sizes = [2, 8, 8], strides = [1, 1, 1]} : vector<2x8x32xbf16> to vector<2x8x8xbf16>
    %395 = vector.extract_strided_slice %390 {offsets = [0, 0, 0], sizes = [2, 8, 8], strides = [1, 1, 1]} : vector<2x8x32xbf16> to vector<2x8x8xbf16>
    "tpu.trace_start"() <{level = 10 : i32, message = "bqe,bke->bqk"}> : () -> ()
    %cst_200 = arith.constant dense<0.000000e+00> : vector<2x8x8xf32>
    %396 = tpu.matmul %394, %395, %cst_200 {dimension_numbers = #tpu.dot_dimension_numbers<[2], [2], [1], [1], [0, 0, 0, 1, 1, 1], [0], [0]>} : vector<2x8x8xbf16>, vector<2x8x8xbf16>, vector<2x8x8xf32> -> vector<2x8x8xf32>
    "tpu.trace_stop"() : () -> ()
    %cst_201 = arith.constant 0.353553385 : f32
    %397 = vector.broadcast %cst_201 : f32 to vector<2x8x8xf32>
    %398 = arith.mulf %396, %397 : vector<2x8x8xf32>
    %399 = arith.addf %398, %393 : vector<2x8x8xf32>
    %cst_202 = arith.constant dense<0xFF800000> : vector<2x8xf32>
    %400 = vector.multi_reduction <maximumf>, %399, %cst_202 [2] : vector<2x8x8xf32> to vector<2x8xf32>
    %401 = vector.shape_cast %400 : vector<2x8xf32> to vector<2x8x1xf32>
    %402 = vector.broadcast %401 : vector<2x8x1xf32> to vector<2x8x8xf32>
    %403 = arith.subf %399, %402 : vector<2x8x8xf32>
    %404 = math.exp %403 : vector<2x8x8xf32>
    %cst_203 = arith.constant dense<0.000000e+00> : vector<2x8xf32>
    %405 = vector.multi_reduction <add>, %404, %cst_203 [2] : vector<2x8x8xf32> to vector<2x8xf32>
    %406 = vector.shape_cast %405 : vector<2x8xf32> to vector<2x8x1xf32>
    %407 = tpu.reciprocal %406 {approx = true} : vector<2x8x1xf32> -> vector<2x8x1xf32>
    %408 = vector.broadcast %407 : vector<2x8x1xf32> to vector<2x8x8xf32>
    %409 = arith.mulf %404, %408 : vector<2x8x8xf32>
    %410 = arith.truncf %409 : vector<2x8x8xf32> to vector<2x8x8xbf16>
    %411 = vector.extract_strided_slice %391 {offsets = [0, 0, 0], sizes = [2, 8, 8], strides = [1, 1, 1]} : vector<2x8x32xbf16> to vector<2x8x8xbf16>
    "tpu.trace_start"() <{level = 10 : i32, message = "bqk,bke->bqe"}> : () -> ()
    %cst_204 = arith.constant dense<0.000000e+00> : vector<2x8x8xf32>
    %412 = tpu.matmul %410, %411, %cst_204 {dimension_numbers = #tpu.dot_dimension_numbers<[2], [1], [1], [2], [0, 0, 0, 1, 1, 2], [0], [0]>} : vector<2x8x8xbf16>, vector<2x8x8xbf16>, vector<2x8x8xf32> -> vector<2x8x8xf32>
    "tpu.trace_stop"() : () -> ()
    %413 = vector.extract_strided_slice %389 {offsets = [0, 0, 8], sizes = [2, 8, 8], strides = [1, 1, 1]} : vector<2x8x32xbf16> to vector<2x8x8xbf16>
    %414 = vector.extract_strided_slice %390 {offsets = [0, 0, 8], sizes = [2, 8, 8], strides = [1, 1, 1]} : vector<2x8x32xbf16> to vector<2x8x8xbf16>
    "tpu.trace_start"() <{level = 10 : i32, message = "bqe,bke->bqk"}> : () -> ()
    %cst_205 = arith.constant dense<0.000000e+00> : vector<2x8x8xf32>
    %415 = tpu.matmul %413, %414, %cst_205 {dimension_numbers = #tpu.dot_dimension_numbers<[2], [2], [1], [1], [0, 0, 0, 1, 1, 1], [0], [0]>} : vector<2x8x8xbf16>, vector<2x8x8xbf16>, vector<2x8x8xf32> -> vector<2x8x8xf32>
    "tpu.trace_stop"() : () -> ()
    %cst_206 = arith.constant 0.353553385 : f32
    %416 = vector.broadcast %cst_206 : f32 to vector<2x8x8xf32>
    %417 = arith.mulf %415, %416 : vector<2x8x8xf32>
    %418 = arith.addf %417, %393 : vector<2x8x8xf32>
    %cst_207 = arith.constant dense<0xFF800000> : vector<2x8xf32>
    %419 = vector.multi_reduction <maximumf>, %418, %cst_207 [2] : vector<2x8x8xf32> to vector<2x8xf32>
    %420 = vector.shape_cast %419 : vector<2x8xf32> to vector<2x8x1xf32>
    %421 = vector.broadcast %420 : vector<2x8x1xf32> to vector<2x8x8xf32>
    %422 = arith.subf %418, %421 : vector<2x8x8xf32>
    %423 = math.exp %422 : vector<2x8x8xf32>
    %cst_208 = arith.constant dense<0.000000e+00> : vector<2x8xf32>
    %424 = vector.multi_reduction <add>, %423, %cst_208 [2] : vector<2x8x8xf32> to vector<2x8xf32>
    %425 = vector.shape_cast %424 : vector<2x8xf32> to vector<2x8x1xf32>
    %426 = tpu.reciprocal %425 {approx = true} : vector<2x8x1xf32> -> vector<2x8x1xf32>
    %427 = vector.broadcast %426 : vector<2x8x1xf32> to vector<2x8x8xf32>
    %428 = arith.mulf %423, %427 : vector<2x8x8xf32>
    %429 = arith.truncf %428 : vector<2x8x8xf32> to vector<2x8x8xbf16>
    %430 = vector.extract_strided_slice %391 {offsets = [0, 0, 8], sizes = [2, 8, 8], strides = [1, 1, 1]} : vector<2x8x32xbf16> to vector<2x8x8xbf16>
    "tpu.trace_start"() <{level = 10 : i32, message = "bqk,bke->bqe"}> : () -> ()
    %cst_209 = arith.constant dense<0.000000e+00> : vector<2x8x8xf32>
    %431 = tpu.matmul %429, %430, %cst_209 {dimension_numbers = #tpu.dot_dimension_numbers<[2], [1], [1], [2], [0, 0, 0, 1, 1, 2], [0], [0]>} : vector<2x8x8xbf16>, vector<2x8x8xbf16>, vector<2x8x8xf32> -> vector<2x8x8xf32>
    "tpu.trace_stop"() : () -> ()
    %432 = vector.extract_strided_slice %389 {offsets = [0, 0, 16], sizes = [2, 8, 8], strides = [1, 1, 1]} : vector<2x8x32xbf16> to vector<2x8x8xbf16>
    %433 = vector.extract_strided_slice %390 {offsets = [0, 0, 16], sizes = [2, 8, 8], strides = [1, 1, 1]} : vector<2x8x32xbf16> to vector<2x8x8xbf16>
    "tpu.trace_start"() <{level = 10 : i32, message = "bqe,bke->bqk"}> : () -> ()
    %cst_210 = arith.constant dense<0.000000e+00> : vector<2x8x8xf32>
    %434 = tpu.matmul %432, %433, %cst_210 {dimension_numbers = #tpu.dot_dimension_numbers<[2], [2], [1], [1], [0, 0, 0, 1, 1, 1], [0], [0]>} : vector<2x8x8xbf16>, vector<2x8x8xbf16>, vector<2x8x8xf32> -> vector<2x8x8xf32>
    "tpu.trace_stop"() : () -> ()
    %cst_211 = arith.constant 0.353553385 : f32
    %435 = vector.broadcast %cst_211 : f32 to vector<2x8x8xf32>
    %436 = arith.mulf %434, %435 : vector<2x8x8xf32>
    %437 = arith.addf %436, %393 : vector<2x8x8xf32>
    %cst_212 = arith.constant dense<0xFF800000> : vector<2x8xf32>
    %438 = vector.multi_reduction <maximumf>, %437, %cst_212 [2] : vector<2x8x8xf32> to vector<2x8xf32>
    %439 = vector.shape_cast %438 : vector<2x8xf32> to vector<2x8x1xf32>
    %440 = vector.broadcast %439 : vector<2x8x1xf32> to vector<2x8x8xf32>
    %441 = arith.subf %437, %440 : vector<2x8x8xf32>
    %442 = math.exp %441 : vector<2x8x8xf32>
    %cst_213 = arith.constant dense<0.000000e+00> : vector<2x8xf32>
    %443 = vector.multi_reduction <add>, %442, %cst_213 [2] : vector<2x8x8xf32> to vector<2x8xf32>
    %444 = vector.shape_cast %443 : vector<2x8xf32> to vector<2x8x1xf32>
    %445 = tpu.reciprocal %444 {approx = true} : vector<2x8x1xf32> -> vector<2x8x1xf32>
    %446 = vector.broadcast %445 : vector<2x8x1xf32> to vector<2x8x8xf32>
    %447 = arith.mulf %442, %446 : vector<2x8x8xf32>
    %448 = arith.truncf %447 : vector<2x8x8xf32> to vector<2x8x8xbf16>
    %449 = vector.extract_strided_slice %391 {offsets = [0, 0, 16], sizes = [2, 8, 8], strides = [1, 1, 1]} : vector<2x8x32xbf16> to vector<2x8x8xbf16>
    "tpu.trace_start"() <{level = 10 : i32, message = "bqk,bke->bqe"}> : () -> ()
    %cst_214 = arith.constant dense<0.000000e+00> : vector<2x8x8xf32>
    %450 = tpu.matmul %448, %449, %cst_214 {dimension_numbers = #tpu.dot_dimension_numbers<[2], [1], [1], [2], [0, 0, 0, 1, 1, 2], [0], [0]>} : vector<2x8x8xbf16>, vector<2x8x8xbf16>, vector<2x8x8xf32> -> vector<2x8x8xf32>
    "tpu.trace_stop"() : () -> ()
    %451 = vector.extract_strided_slice %389 {offsets = [0, 0, 24], sizes = [2, 8, 8], strides = [1, 1, 1]} : vector<2x8x32xbf16> to vector<2x8x8xbf16>
    %452 = vector.extract_strided_slice %390 {offsets = [0, 0, 24], sizes = [2, 8, 8], strides = [1, 1, 1]} : vector<2x8x32xbf16> to vector<2x8x8xbf16>
    "tpu.trace_start"() <{level = 10 : i32, message = "bqe,bke->bqk"}> : () -> ()
    %cst_215 = arith.constant dense<0.000000e+00> : vector<2x8x8xf32>
    %453 = tpu.matmul %451, %452, %cst_215 {dimension_numbers = #tpu.dot_dimension_numbers<[2], [2], [1], [1], [0, 0, 0, 1, 1, 1], [0], [0]>} : vector<2x8x8xbf16>, vector<2x8x8xbf16>, vector<2x8x8xf32> -> vector<2x8x8xf32>
    "tpu.trace_stop"() : () -> ()
    %cst_216 = arith.constant 0.353553385 : f32
    %454 = vector.broadcast %cst_216 : f32 to vector<2x8x8xf32>
    %455 = arith.mulf %453, %454 : vector<2x8x8xf32>
    %456 = arith.addf %455, %393 : vector<2x8x8xf32>
    %cst_217 = arith.constant dense<0xFF800000> : vector<2x8xf32>
    %457 = vector.multi_reduction <maximumf>, %456, %cst_217 [2] : vector<2x8x8xf32> to vector<2x8xf32>
    %458 = vector.shape_cast %457 : vector<2x8xf32> to vector<2x8x1xf32>
    %459 = vector.broadcast %458 : vector<2x8x1xf32> to vector<2x8x8xf32>
    %460 = arith.subf %456, %459 : vector<2x8x8xf32>
    %461 = math.exp %460 : vector<2x8x8xf32>
    %cst_218 = arith.constant dense<0.000000e+00> : vector<2x8xf32>
    %462 = vector.multi_reduction <add>, %461, %cst_218 [2] : vector<2x8x8xf32> to vector<2x8xf32>
    %463 = vector.shape_cast %462 : vector<2x8xf32> to vector<2x8x1xf32>
    %464 = tpu.reciprocal %463 {approx = true} : vector<2x8x1xf32> -> vector<2x8x1xf32>
    %465 = vector.broadcast %464 : vector<2x8x1xf32> to vector<2x8x8xf32>
    %466 = arith.mulf %461, %465 : vector<2x8x8xf32>
    %467 = arith.truncf %466 : vector<2x8x8xf32> to vector<2x8x8xbf16>
    %468 = vector.extract_strided_slice %391 {offsets = [0, 0, 24], sizes = [2, 8, 8], strides = [1, 1, 1]} : vector<2x8x32xbf16> to vector<2x8x8xbf16>
    "tpu.trace_start"() <{level = 10 : i32, message = "bqk,bke->bqe"}> : () -> ()
    %cst_219 = arith.constant dense<0.000000e+00> : vector<2x8x8xf32>
    %469 = tpu.matmul %467, %468, %cst_219 {dimension_numbers = #tpu.dot_dimension_numbers<[2], [1], [1], [2], [0, 0, 0, 1, 1, 2], [0], [0]>} : vector<2x8x8xbf16>, vector<2x8x8xbf16>, vector<2x8x8xf32> -> vector<2x8x8xf32>
    "tpu.trace_stop"() : () -> ()
    %470 = tpu.concatenate %412, %431, %450, %469 in 2 : vector<2x8x8xf32>, vector<2x8x8xf32>, vector<2x8x8xf32>, vector<2x8x8xf32> -> vector<2x8x32xf32>
    %471 = vector.shape_cast %470 : vector<2x8x32xf32> to vector<16x32xf32>
    %472 = arith.truncf %471 : vector<16x32xf32> to vector<16x32xbf16>
    %cst_220 = arith.constant dense<0.000000e+00> : vector<16x32xf32>
    %473 = tpu.matmul %472, %27, %cst_220 {dimension_numbers = #tpu.dot_dimension_numbers<[1], [0], [0], [1], [0, 0, 1, 1], [], []>} : vector<16x32xbf16>, vector<32x32xbf16>, vector<16x32xf32> -> vector<16x32xf32>
    %474 = vector.broadcast %25 : vector<1x32xf32> to vector<16x32xf32>
    %475 = arith.addf %473, %474 : vector<16x32xf32>
    %476 = arith.addf %380, %475 : vector<16x32xf32>
    %cst_221 = arith.constant dense<0.000000e+00> : vector<16xf32>
    %477 = vector.multi_reduction <add>, %476, %cst_221 [1] : vector<16x32xf32> to vector<16xf32>
    %478 = vector.shape_cast %477 : vector<16xf32> to vector<16x1xf32>
    %cst_222 = arith.constant 3.200000e+01 : f32
    %479 = vector.broadcast %cst_222 : f32 to vector<16x1xf32>
    %480 = arith.divf %478, %479 : vector<16x1xf32>
    %481 = vector.broadcast %480 : vector<16x1xf32> to vector<16x32xf32>
    %482 = arith.subf %476, %481 : vector<16x32xf32>
    %483 = arith.mulf %482, %482 : vector<16x32xf32>
    %cst_223 = arith.constant dense<0.000000e+00> : vector<16xf32>
    %484 = vector.multi_reduction <add>, %483, %cst_223 [1] : vector<16x32xf32> to vector<16xf32>
    %485 = vector.shape_cast %484 : vector<16xf32> to vector<16x1xf32>
    %cst_224 = arith.constant 3.200000e+01 : f32
    %486 = vector.broadcast %cst_224 : f32 to vector<16x1xf32>
    %487 = arith.divf %485, %486 : vector<16x1xf32>
    %488 = vector.broadcast %480 : vector<16x1xf32> to vector<16x32xf32>
    %489 = arith.subf %476, %488 : vector<16x32xf32>
    %cst_225 = arith.constant 9.99999974E-6 : f32
    %490 = vector.broadcast %cst_225 : f32 to vector<16x1xf32>
    %491 = arith.addf %487, %490 : vector<16x1xf32>
    %492 = math.rsqrt %491 : vector<16x1xf32>
    %493 = vector.broadcast %492 : vector<16x1xf32> to vector<16x32xf32>
    %494 = arith.mulf %489, %493 : vector<16x32xf32>
    %495 = vector.broadcast %20 : vector<1x32xf32> to vector<16x32xf32>
    %496 = arith.mulf %494, %495 : vector<16x32xf32>
    %497 = vector.broadcast %19 : vector<1x32xf32> to vector<16x32xf32>
    %498 = arith.addf %496, %497 : vector<16x32xf32>
    %499 = arith.truncf %498 : vector<16x32xf32> to vector<16x32xbf16>
    %cst_226 = arith.constant dense<0.000000e+00> : vector<16x32xf32>
    %500 = tpu.matmul %499, %18, %cst_226 {dimension_numbers = #tpu.dot_dimension_numbers<[1], [0], [0], [1], [0, 0, 1, 1], [], []>} : vector<16x32xbf16>, vector<32x32xbf16>, vector<16x32xf32> -> vector<16x32xf32>
    %501 = vector.broadcast %15 : vector<1x32xf32> to vector<16x32xf32>
    %502 = arith.addf %500, %501 : vector<16x32xf32>
    %503 = vector.shape_cast %502 : vector<16x32xf32> to vector<2x8x32xf32>
    %504 = arith.truncf %376 : vector<16x32xf32> to vector<16x32xbf16>
    %cst_227 = arith.constant dense<0.000000e+00> : vector<16x64xf32>
    %505 = tpu.matmul %504, %16, %cst_227 {dimension_numbers = #tpu.dot_dimension_numbers<[1], [0], [0], [1], [0, 0, 1, 1], [], []>} : vector<16x32xbf16>, vector<32x64xbf16>, vector<16x64xf32> -> vector<16x64xf32>
    %506 = vector.broadcast %13 : vector<1x64xf32> to vector<16x64xf32>
    %507 = arith.addf %505, %506 : vector<16x64xf32>
    %508 = vector.shape_cast %507 : vector<16x64xf32> to vector<2x8x64xf32>
    %509 = vector.extract_strided_slice %508 {offsets = [0, 0, 0], sizes = [2, 8, 32], strides = [1, 1, 1]} : vector<2x8x64xf32> to vector<2x8x32xf32>
    %510 = vector.extract_strided_slice %508 {offsets = [0, 0, 32], sizes = [2, 8, 32], strides = [1, 1, 1]} : vector<2x8x64xf32> to vector<2x8x32xf32>
    %511 = arith.truncf %503 : vector<2x8x32xf32> to vector<2x8x32xbf16>
    %512 = arith.truncf %509 : vector<2x8x32xf32> to vector<2x8x32xbf16>
    %513 = arith.truncf %510 : vector<2x8x32xf32> to vector<2x8x32xbf16>
    %514 = vector.extract_strided_slice %511 {offsets = [0, 0, 0], sizes = [2, 8, 8], strides = [1, 1, 1]} : vector<2x8x32xbf16> to vector<2x8x8xbf16>
    %515 = vector.extract_strided_slice %512 {offsets = [0, 0, 0], sizes = [2, 8, 8], strides = [1, 1, 1]} : vector<2x8x32xbf16> to vector<2x8x8xbf16>
    "tpu.trace_start"() <{level = 10 : i32, message = "bqe,bke->bqk"}> : () -> ()
    %cst_228 = arith.constant dense<0.000000e+00> : vector<2x8x8xf32>
    %516 = tpu.matmul %514, %515, %cst_228 {dimension_numbers = #tpu.dot_dimension_numbers<[2], [2], [1], [1], [0, 0, 0, 1, 1, 1], [0], [0]>} : vector<2x8x8xbf16>, vector<2x8x8xbf16>, vector<2x8x8xf32> -> vector<2x8x8xf32>
    "tpu.trace_stop"() : () -> ()
    %cst_229 = arith.constant 0.353553385 : f32
    %517 = vector.broadcast %cst_229 : f32 to vector<2x8x8xf32>
    %518 = arith.mulf %516, %517 : vector<2x8x8xf32>
    %cst_230 = arith.constant dense<0xFF800000> : vector<2x8xf32>
    %519 = vector.multi_reduction <maximumf>, %518, %cst_230 [2] : vector<2x8x8xf32> to vector<2x8xf32>
    %520 = vector.shape_cast %519 : vector<2x8xf32> to vector<2x8x1xf32>
    %521 = vector.broadcast %520 : vector<2x8x1xf32> to vector<2x8x8xf32>
    %522 = arith.subf %518, %521 : vector<2x8x8xf32>
    %523 = math.exp %522 : vector<2x8x8xf32>
    %cst_231 = arith.constant dense<0.000000e+00> : vector<2x8xf32>
    %524 = vector.multi_reduction <add>, %523, %cst_231 [2] : vector<2x8x8xf32> to vector<2x8xf32>
    %525 = vector.shape_cast %524 : vector<2x8xf32> to vector<2x8x1xf32>
    %526 = tpu.reciprocal %525 {approx = true} : vector<2x8x1xf32> -> vector<2x8x1xf32>
    %527 = vector.broadcast %526 : vector<2x8x1xf32> to vector<2x8x8xf32>
    %528 = arith.mulf %523, %527 : vector<2x8x8xf32>
    %529 = arith.truncf %528 : vector<2x8x8xf32> to vector<2x8x8xbf16>
    %530 = vector.extract_strided_slice %513 {offsets = [0, 0, 0], sizes = [2, 8, 8], strides = [1, 1, 1]} : vector<2x8x32xbf16> to vector<2x8x8xbf16>
    "tpu.trace_start"() <{level = 10 : i32, message = "bqk,bke->bqe"}> : () -> ()
    %cst_232 = arith.constant dense<0.000000e+00> : vector<2x8x8xf32>
    %531 = tpu.matmul %529, %530, %cst_232 {dimension_numbers = #tpu.dot_dimension_numbers<[2], [1], [1], [2], [0, 0, 0, 1, 1, 2], [0], [0]>} : vector<2x8x8xbf16>, vector<2x8x8xbf16>, vector<2x8x8xf32> -> vector<2x8x8xf32>
    "tpu.trace_stop"() : () -> ()
    %532 = vector.extract_strided_slice %511 {offsets = [0, 0, 8], sizes = [2, 8, 8], strides = [1, 1, 1]} : vector<2x8x32xbf16> to vector<2x8x8xbf16>
    %533 = vector.extract_strided_slice %512 {offsets = [0, 0, 8], sizes = [2, 8, 8], strides = [1, 1, 1]} : vector<2x8x32xbf16> to vector<2x8x8xbf16>
    "tpu.trace_start"() <{level = 10 : i32, message = "bqe,bke->bqk"}> : () -> ()
    %cst_233 = arith.constant dense<0.000000e+00> : vector<2x8x8xf32>
    %534 = tpu.matmul %532, %533, %cst_233 {dimension_numbers = #tpu.dot_dimension_numbers<[2], [2], [1], [1], [0, 0, 0, 1, 1, 1], [0], [0]>} : vector<2x8x8xbf16>, vector<2x8x8xbf16>, vector<2x8x8xf32> -> vector<2x8x8xf32>
    "tpu.trace_stop"() : () -> ()
    %cst_234 = arith.constant 0.353553385 : f32
    %535 = vector.broadcast %cst_234 : f32 to vector<2x8x8xf32>
    %536 = arith.mulf %534, %535 : vector<2x8x8xf32>
    %cst_235 = arith.constant dense<0xFF800000> : vector<2x8xf32>
    %537 = vector.multi_reduction <maximumf>, %536, %cst_235 [2] : vector<2x8x8xf32> to vector<2x8xf32>
    %538 = vector.shape_cast %537 : vector<2x8xf32> to vector<2x8x1xf32>
    %539 = vector.broadcast %538 : vector<2x8x1xf32> to vector<2x8x8xf32>
    %540 = arith.subf %536, %539 : vector<2x8x8xf32>
    %541 = math.exp %540 : vector<2x8x8xf32>
    %cst_236 = arith.constant dense<0.000000e+00> : vector<2x8xf32>
    %542 = vector.multi_reduction <add>, %541, %cst_236 [2] : vector<2x8x8xf32> to vector<2x8xf32>
    %543 = vector.shape_cast %542 : vector<2x8xf32> to vector<2x8x1xf32>
    %544 = tpu.reciprocal %543 {approx = true} : vector<2x8x1xf32> -> vector<2x8x1xf32>
    %545 = vector.broadcast %544 : vector<2x8x1xf32> to vector<2x8x8xf32>
    %546 = arith.mulf %541, %545 : vector<2x8x8xf32>
    %547 = arith.truncf %546 : vector<2x8x8xf32> to vector<2x8x8xbf16>
    %548 = vector.extract_strided_slice %513 {offsets = [0, 0, 8], sizes = [2, 8, 8], strides = [1, 1, 1]} : vector<2x8x32xbf16> to vector<2x8x8xbf16>
    "tpu.trace_start"() <{level = 10 : i32, message = "bqk,bke->bqe"}> : () -> ()
    %cst_237 = arith.constant dense<0.000000e+00> : vector<2x8x8xf32>
    %549 = tpu.matmul %547, %548, %cst_237 {dimension_numbers = #tpu.dot_dimension_numbers<[2], [1], [1], [2], [0, 0, 0, 1, 1, 2], [0], [0]>} : vector<2x8x8xbf16>, vector<2x8x8xbf16>, vector<2x8x8xf32> -> vector<2x8x8xf32>
    "tpu.trace_stop"() : () -> ()
    %550 = vector.extract_strided_slice %511 {offsets = [0, 0, 16], sizes = [2, 8, 8], strides = [1, 1, 1]} : vector<2x8x32xbf16> to vector<2x8x8xbf16>
    %551 = vector.extract_strided_slice %512 {offsets = [0, 0, 16], sizes = [2, 8, 8], strides = [1, 1, 1]} : vector<2x8x32xbf16> to vector<2x8x8xbf16>
    "tpu.trace_start"() <{level = 10 : i32, message = "bqe,bke->bqk"}> : () -> ()
    %cst_238 = arith.constant dense<0.000000e+00> : vector<2x8x8xf32>
    %552 = tpu.matmul %550, %551, %cst_238 {dimension_numbers = #tpu.dot_dimension_numbers<[2], [2], [1], [1], [0, 0, 0, 1, 1, 1], [0], [0]>} : vector<2x8x8xbf16>, vector<2x8x8xbf16>, vector<2x8x8xf32> -> vector<2x8x8xf32>
    "tpu.trace_stop"() : () -> ()
    %cst_239 = arith.constant 0.353553385 : f32
    %553 = vector.broadcast %cst_239 : f32 to vector<2x8x8xf32>
    %554 = arith.mulf %552, %553 : vector<2x8x8xf32>
    %cst_240 = arith.constant dense<0xFF800000> : vector<2x8xf32>
    %555 = vector.multi_reduction <maximumf>, %554, %cst_240 [2] : vector<2x8x8xf32> to vector<2x8xf32>
    %556 = vector.shape_cast %555 : vector<2x8xf32> to vector<2x8x1xf32>
    %557 = vector.broadcast %556 : vector<2x8x1xf32> to vector<2x8x8xf32>
    %558 = arith.subf %554, %557 : vector<2x8x8xf32>
    %559 = math.exp %558 : vector<2x8x8xf32>
    %cst_241 = arith.constant dense<0.000000e+00> : vector<2x8xf32>
    %560 = vector.multi_reduction <add>, %559, %cst_241 [2] : vector<2x8x8xf32> to vector<2x8xf32>
    %561 = vector.shape_cast %560 : vector<2x8xf32> to vector<2x8x1xf32>
    %562 = tpu.reciprocal %561 {approx = true} : vector<2x8x1xf32> -> vector<2x8x1xf32>
    %563 = vector.broadcast %562 : vector<2x8x1xf32> to vector<2x8x8xf32>
    %564 = arith.mulf %559, %563 : vector<2x8x8xf32>
    %565 = arith.truncf %564 : vector<2x8x8xf32> to vector<2x8x8xbf16>
    %566 = vector.extract_strided_slice %513 {offsets = [0, 0, 16], sizes = [2, 8, 8], strides = [1, 1, 1]} : vector<2x8x32xbf16> to vector<2x8x8xbf16>
    "tpu.trace_start"() <{level = 10 : i32, message = "bqk,bke->bqe"}> : () -> ()
    %cst_242 = arith.constant dense<0.000000e+00> : vector<2x8x8xf32>
    %567 = tpu.matmul %565, %566, %cst_242 {dimension_numbers = #tpu.dot_dimension_numbers<[2], [1], [1], [2], [0, 0, 0, 1, 1, 2], [0], [0]>} : vector<2x8x8xbf16>, vector<2x8x8xbf16>, vector<2x8x8xf32> -> vector<2x8x8xf32>
    "tpu.trace_stop"() : () -> ()
    %568 = vector.extract_strided_slice %511 {offsets = [0, 0, 24], sizes = [2, 8, 8], strides = [1, 1, 1]} : vector<2x8x32xbf16> to vector<2x8x8xbf16>
    %569 = vector.extract_strided_slice %512 {offsets = [0, 0, 24], sizes = [2, 8, 8], strides = [1, 1, 1]} : vector<2x8x32xbf16> to vector<2x8x8xbf16>
    "tpu.trace_start"() <{level = 10 : i32, message = "bqe,bke->bqk"}> : () -> ()
    %cst_243 = arith.constant dense<0.000000e+00> : vector<2x8x8xf32>
    %570 = tpu.matmul %568, %569, %cst_243 {dimension_numbers = #tpu.dot_dimension_numbers<[2], [2], [1], [1], [0, 0, 0, 1, 1, 1], [0], [0]>} : vector<2x8x8xbf16>, vector<2x8x8xbf16>, vector<2x8x8xf32> -> vector<2x8x8xf32>
    "tpu.trace_stop"() : () -> ()
    %cst_244 = arith.constant 0.353553385 : f32
    %571 = vector.broadcast %cst_244 : f32 to vector<2x8x8xf32>
    %572 = arith.mulf %570, %571 : vector<2x8x8xf32>
    %cst_245 = arith.constant dense<0xFF800000> : vector<2x8xf32>
    %573 = vector.multi_reduction <maximumf>, %572, %cst_245 [2] : vector<2x8x8xf32> to vector<2x8xf32>
    %574 = vector.shape_cast %573 : vector<2x8xf32> to vector<2x8x1xf32>
    %575 = vector.broadcast %574 : vector<2x8x1xf32> to vector<2x8x8xf32>
    %576 = arith.subf %572, %575 : vector<2x8x8xf32>
    %577 = math.exp %576 : vector<2x8x8xf32>
    %cst_246 = arith.constant dense<0.000000e+00> : vector<2x8xf32>
    %578 = vector.multi_reduction <add>, %577, %cst_246 [2] : vector<2x8x8xf32> to vector<2x8xf32>
    %579 = vector.shape_cast %578 : vector<2x8xf32> to vector<2x8x1xf32>
    %580 = tpu.reciprocal %579 {approx = true} : vector<2x8x1xf32> -> vector<2x8x1xf32>
    %581 = vector.broadcast %580 : vector<2x8x1xf32> to vector<2x8x8xf32>
    %582 = arith.mulf %577, %581 : vector<2x8x8xf32>
    %583 = arith.truncf %582 : vector<2x8x8xf32> to vector<2x8x8xbf16>
    %584 = vector.extract_strided_slice %513 {offsets = [0, 0, 24], sizes = [2, 8, 8], strides = [1, 1, 1]} : vector<2x8x32xbf16> to vector<2x8x8xbf16>
    "tpu.trace_start"() <{level = 10 : i32, message = "bqk,bke->bqe"}> : () -> ()
    %cst_247 = arith.constant dense<0.000000e+00> : vector<2x8x8xf32>
    %585 = tpu.matmul %583, %584, %cst_247 {dimension_numbers = #tpu.dot_dimension_numbers<[2], [1], [1], [2], [0, 0, 0, 1, 1, 2], [0], [0]>} : vector<2x8x8xbf16>, vector<2x8x8xbf16>, vector<2x8x8xf32> -> vector<2x8x8xf32>
    "tpu.trace_stop"() : () -> ()
    %586 = tpu.concatenate %531, %549, %567, %585 in 2 : vector<2x8x8xf32>, vector<2x8x8xf32>, vector<2x8x8xf32>, vector<2x8x8xf32> -> vector<2x8x32xf32>
    %587 = vector.shape_cast %586 : vector<2x8x32xf32> to vector<16x32xf32>
    %588 = arith.truncf %587 : vector<16x32xf32> to vector<16x32xbf16>
    %cst_248 = arith.constant dense<0.000000e+00> : vector<16x32xf32>
    %589 = tpu.matmul %588, %17, %cst_248 {dimension_numbers = #tpu.dot_dimension_numbers<[1], [0], [0], [1], [0, 0, 1, 1], [], []>} : vector<16x32xbf16>, vector<32x32xbf16>, vector<16x32xf32> -> vector<16x32xf32>
    %590 = vector.broadcast %14 : vector<1x32xf32> to vector<16x32xf32>
    %591 = arith.addf %589, %590 : vector<16x32xf32>
    %592 = arith.addf %498, %591 : vector<16x32xf32>
    %cst_249 = arith.constant dense<0.000000e+00> : vector<16xf32>
    %593 = vector.multi_reduction <add>, %592, %cst_249 [1] : vector<16x32xf32> to vector<16xf32>
    %594 = vector.shape_cast %593 : vector<16xf32> to vector<16x1xf32>
    %cst_250 = arith.constant 3.200000e+01 : f32
    %595 = vector.broadcast %cst_250 : f32 to vector<16x1xf32>
    %596 = arith.divf %594, %595 : vector<16x1xf32>
    %597 = vector.broadcast %596 : vector<16x1xf32> to vector<16x32xf32>
    %598 = arith.subf %592, %597 : vector<16x32xf32>
    %599 = arith.mulf %598, %598 : vector<16x32xf32>
    %cst_251 = arith.constant dense<0.000000e+00> : vector<16xf32>
    %600 = vector.multi_reduction <add>, %599, %cst_251 [1] : vector<16x32xf32> to vector<16xf32>
    %601 = vector.shape_cast %600 : vector<16xf32> to vector<16x1xf32>
    %cst_252 = arith.constant 3.200000e+01 : f32
    %602 = vector.broadcast %cst_252 : f32 to vector<16x1xf32>
    %603 = arith.divf %601, %602 : vector<16x1xf32>
    %604 = vector.broadcast %596 : vector<16x1xf32> to vector<16x32xf32>
    %605 = arith.subf %592, %604 : vector<16x32xf32>
    %cst_253 = arith.constant 9.99999974E-6 : f32
    %606 = vector.broadcast %cst_253 : f32 to vector<16x1xf32>
    %607 = arith.addf %603, %606 : vector<16x1xf32>
    %608 = math.rsqrt %607 : vector<16x1xf32>
    %609 = vector.broadcast %608 : vector<16x1xf32> to vector<16x32xf32>
    %610 = arith.mulf %605, %609 : vector<16x32xf32>
    %611 = vector.broadcast %22 : vector<1x32xf32> to vector<16x32xf32>
    %612 = arith.mulf %610, %611 : vector<16x32xf32>
    %613 = vector.broadcast %21 : vector<1x32xf32> to vector<16x32xf32>
    %614 = arith.addf %612, %613 : vector<16x32xf32>
    %615 = arith.truncf %614 : vector<16x32xf32> to vector<16x32xbf16>
    %cst_254 = arith.constant dense<0.000000e+00> : vector<16x64xf32>
    %616 = tpu.matmul %615, %10, %cst_254 {dimension_numbers = #tpu.dot_dimension_numbers<[1], [0], [0], [1], [0, 0, 1, 1], [], []>} : vector<16x32xbf16>, vector<32x64xbf16>, vector<16x64xf32> -> vector<16x64xf32>
    %617 = vector.broadcast %9 : vector<1x64xf32> to vector<16x64xf32>
    %618 = arith.addf %616, %617 : vector<16x64xf32>
    %cst_255 = arith.constant 0.000000e+00 : f32
    %619 = vector.broadcast %cst_255 : f32 to vector<16x64xf32>
    %620 = arith.maximumf %618, %619 : vector<16x64xf32>
    %621 = arith.truncf %620 : vector<16x64xf32> to vector<16x64xbf16>
    %cst_256 = arith.constant dense<0.000000e+00> : vector<16x32xf32>
    %622 = tpu.matmul %621, %12, %cst_256 {dimension_numbers = #tpu.dot_dimension_numbers<[1], [0], [0], [1], [0, 0, 1, 1], [], []>} : vector<16x64xbf16>, vector<64x32xbf16>, vector<16x32xf32> -> vector<16x32xf32>
    %623 = vector.broadcast %11 : vector<1x32xf32> to vector<16x32xf32>
    %624 = arith.addf %622, %623 : vector<16x32xf32>
    %625 = arith.addf %614, %624 : vector<16x32xf32>
    %cst_257 = arith.constant dense<0.000000e+00> : vector<16xf32>
    %626 = vector.multi_reduction <add>, %625, %cst_257 [1] : vector<16x32xf32> to vector<16xf32>
    %627 = vector.shape_cast %626 : vector<16xf32> to vector<16x1xf32>
    %cst_258 = arith.constant 3.200000e+01 : f32
    %628 = vector.broadcast %cst_258 : f32 to vector<16x1xf32>
    %629 = arith.divf %627, %628 : vector<16x1xf32>
    %630 = vector.broadcast %629 : vector<16x1xf32> to vector<16x32xf32>
    %631 = arith.subf %625, %630 : vector<16x32xf32>
    %632 = arith.mulf %631, %631 : vector<16x32xf32>
    %cst_259 = arith.constant dense<0.000000e+00> : vector<16xf32>
    %633 = vector.multi_reduction <add>, %632, %cst_259 [1] : vector<16x32xf32> to vector<16xf32>
    %634 = vector.shape_cast %633 : vector<16xf32> to vector<16x1xf32>
    %cst_260 = arith.constant 3.200000e+01 : f32
    %635 = vector.broadcast %cst_260 : f32 to vector<16x1xf32>
    %636 = arith.divf %634, %635 : vector<16x1xf32>
    %637 = vector.broadcast %629 : vector<16x1xf32> to vector<16x32xf32>
    %638 = arith.subf %625, %637 : vector<16x32xf32>
    %cst_261 = arith.constant 9.99999974E-6 : f32
    %639 = vector.broadcast %cst_261 : f32 to vector<16x1xf32>
    %640 = arith.addf %636, %639 : vector<16x1xf32>
    %641 = math.rsqrt %640 : vector<16x1xf32>
    %642 = vector.broadcast %641 : vector<16x1xf32> to vector<16x32xf32>
    %643 = arith.mulf %638, %642 : vector<16x32xf32>
    %644 = vector.broadcast %24 : vector<1x32xf32> to vector<16x32xf32>
    %645 = arith.mulf %643, %644 : vector<16x32xf32>
    %646 = vector.broadcast %23 : vector<1x32xf32> to vector<16x32xf32>
    %647 = arith.addf %645, %646 : vector<16x32xf32>
    %cst_262 = arith.constant dense<0.000000e+00> : vector<16xf32>
    %648 = vector.multi_reduction <add>, %647, %cst_262 [1] : vector<16x32xf32> to vector<16xf32>
    %649 = vector.shape_cast %648 : vector<16xf32> to vector<16x1xf32>
    %cst_263 = arith.constant 3.200000e+01 : f32
    %650 = vector.broadcast %cst_263 : f32 to vector<16x1xf32>
    %651 = arith.divf %649, %650 : vector<16x1xf32>
    %652 = vector.broadcast %651 : vector<16x1xf32> to vector<16x32xf32>
    %653 = arith.subf %647, %652 : vector<16x32xf32>
    %654 = arith.mulf %653, %653 : vector<16x32xf32>
    %cst_264 = arith.constant dense<0.000000e+00> : vector<16xf32>
    %655 = vector.multi_reduction <add>, %654, %cst_264 [1] : vector<16x32xf32> to vector<16xf32>
    %656 = vector.shape_cast %655 : vector<16xf32> to vector<16x1xf32>
    %cst_265 = arith.constant 3.200000e+01 : f32
    %657 = vector.broadcast %cst_265 : f32 to vector<16x1xf32>
    %658 = arith.divf %656, %657 : vector<16x1xf32>
    %659 = vector.broadcast %651 : vector<16x1xf32> to vector<16x32xf32>
    %660 = arith.subf %647, %659 : vector<16x32xf32>
    %cst_266 = arith.constant 9.99999974E-6 : f32
    %661 = vector.broadcast %cst_266 : f32 to vector<16x1xf32>
    %662 = arith.addf %658, %661 : vector<16x1xf32>
    %663 = math.rsqrt %662 : vector<16x1xf32>
    %664 = vector.broadcast %663 : vector<16x1xf32> to vector<16x32xf32>
    %665 = arith.mulf %660, %664 : vector<16x32xf32>
    %666 = vector.broadcast %30 : vector<1x32xf32> to vector<16x32xf32>
    %667 = arith.mulf %665, %666 : vector<16x32xf32>
    %668 = vector.broadcast %29 : vector<1x32xf32> to vector<16x32xf32>
    %669 = arith.addf %667, %668 : vector<16x32xf32>
    %670 = vector.extract_strided_slice %669 {offsets = [4, 0], sizes = [4, 32], strides = [1, 1]} : vector<16x32xf32> to vector<4x32xf32>
    %671 = arith.truncf %670 : vector<4x32xf32> to vector<4x32xbf16>
    %cst_267 = arith.constant dense<0.000000e+00> : vector<4x128xf32>
    %672 = tpu.matmul %671, %60, %cst_267 {dimension_numbers = #tpu.dot_dimension_numbers<[1], [0], [0], [1], [0, 0, 1, 1], [], []>} : vector<4x32xbf16>, vector<32x128xbf16>, vector<4x128xf32> -> vector<4x128xf32>
    %673 = vector.broadcast %59 : vector<1x128xf32> to vector<4x128xf32>
    %674 = arith.addf %672, %673 : vector<4x128xf32>
    %c0_268 = arith.constant 0 : index
    %c0_269 = arith.constant 0 : index
    %c0_270 = arith.constant 0 : index
    %675 = vector.load %arg61[%c0_268, %c0_269, %c0_270] : memref<2x4x128xf32, #tpu.memory_space<vmem>>, vector<1x4x128xf32>
    %676 = vector.shape_cast %675 : vector<1x4x128xf32> to vector<4x128xf32>
    %677 = vector.shape_cast %674 : vector<4x128xf32> to vector<1x4x128xf32>
    tpu.vector_store %arg61[%c0_268, %c0_269, %c0_270], %677 {strides = array<i32>} : memref<2x4x128xf32, #tpu.memory_space<vmem>>, vector<1x4x128xf32>,
    %678 = vector.extract_strided_slice %669 {offsets = [12, 0], sizes = [4, 32], strides = [1, 1]} : vector<16x32xf32> to vector<4x32xf32>
    %679 = arith.truncf %678 : vector<4x32xf32> to vector<4x32xbf16>
    %cst_271 = arith.constant dense<0.000000e+00> : vector<4x128xf32>
    %680 = tpu.matmul %679, %60, %cst_271 {dimension_numbers = #tpu.dot_dimension_numbers<[1], [0], [0], [1], [0, 0, 1, 1], [], []>} : vector<4x32xbf16>, vector<32x128xbf16>, vector<4x128xf32> -> vector<4x128xf32>
    %681 = vector.broadcast %59 : vector<1x128xf32> to vector<4x128xf32>
    %682 = arith.addf %680, %681 : vector<4x128xf32>
    %c1 = arith.constant 1 : index
    %c0_272 = arith.constant 0 : index
    %c0_273 = arith.constant 0 : index
    %683 = vector.load %arg61[%c1, %c0_272, %c0_273] : memref<2x4x128xf32, #tpu.memory_space<vmem>>, vector<1x4x128xf32>
    %684 = vector.shape_cast %683 : vector<1x4x128xf32> to vector<4x128xf32>
    %685 = vector.shape_cast %682 : vector<4x128xf32> to vector<1x4x128xf32>
    tpu.vector_store %arg61[%c1, %c0_272, %c0_273], %685 {strides = array<i32>} : memref<2x4x128xf32, #tpu.memory_space<vmem>>, vector<1x4x128xf32>,
    return
  }
}

</mosaic_0001>

<llo_original>
// kernel: _lambda_.1
$region0: #{_lambda_.1}
  #allocation0 [shape = 'u32[]', space=smem, size = 0x4, offset = 0x4, fixed_abs, tag = 'smem constant byte address 0x4 - core index']
  #allocation1 [shape = 'u32[72,128]{1,0:T(1,128)}', space=vmem, size = 0x9000, scoped, tag = 'internal scratch']
  %s0 = inlined_call_operand.smem [shape: u32[62], index: -1, kind: input, shape index: {}]
  %s1 = sld [smem:[%s0]]
  %s2 = scalar_lea.smem %s0, 1
  %s3 = sld [smem:[%s2]]
  %s4 = scalar_lea.smem %s0, 2
  %s5 = sld [smem:[%s4]]
  %s6 = scalar_lea.smem %s0, 3
  %s7 = sld [smem:[%s6]]
  %s8 = scalar_lea.smem %s0, 4
  %s9 = sld [smem:[%s8]]
  %s10 = scalar_lea.smem %s0, 5
  %s11 = sld [smem:[%s10]]
  %s12 = scalar_lea.smem %s0, 6
  %s13 = sld [smem:[%s12]]
  %s14 = scalar_lea.smem %s0, 7
  %s15 = sld [smem:[%s14]]
  %s16 = scalar_lea.smem %s0, 8
  %s17 = sld [smem:[%s16]]
  %s18 = scalar_lea.smem %s0, 9
  %s19 = sld [smem:[%s18]]
  %s20 = scalar_lea.smem %s0, 10
  %s21 = sld [smem:[%s20]]
  %s22 = scalar_lea.smem %s0, 11
  %s23 = sld [smem:[%s22]]
  %s24 = scalar_lea.smem %s0, 12
  %s25 = sld [smem:[%s24]]
  %s26 = scalar_lea.smem %s0, 13
  %s27 = sld [smem:[%s26]]
  %s28 = scalar_lea.smem %s0, 14
  %s29 = sld [smem:[%s28]]
  %s30 = scalar_lea.smem %s0, 15
  %s31 = sld [smem:[%s30]]
  %s32 = scalar_lea.smem %s0, 16
  %s33 = sld [smem:[%s32]]
  %s34 = scalar_lea.smem %s0, 17
  %s35 = sld [smem:[%s34]]
  %s36 = scalar_lea.smem %s0, 18
  %s37 = sld [smem:[%s36]]
  %s38 = scalar_lea.smem %s0, 19
  %s39 = sld [smem:[%s38]]
  %s40 = scalar_lea.smem %s0, 20
  %s41 = sld [smem:[%s40]]
  %s42 = scalar_lea.smem %s0, 21
  %s43 = sld [smem:[%s42]]
  %s44 = scalar_lea.smem %s0, 22
  %s45 = sld [smem:[%s44]]
  %s46 = scalar_lea.smem %s0, 23
  %s47 = sld [smem:[%s46]]
  %s48 = scalar_lea.smem %s0, 24
  %s49 = sld [smem:[%s48]]
  %s50 = scalar_lea.smem %s0, 25
  %s51 = sld [smem:[%s50]]
  %s52 = scalar_lea.smem %s0, 26
  %s53 = sld [smem:[%s52]]
  %s54 = scalar_lea.smem %s0, 27
  %s55 = sld [smem:[%s54]]
  %s56 = scalar_lea.smem %s0, 28
  %s57 = sld [smem:[%s56]]
  %s58 = scalar_lea.smem %s0, 29
  %s59 = sld [smem:[%s58]]
  %s60 = scalar_lea.smem %s0, 30
  %s61 = sld [smem:[%s60]]
  %s62 = scalar_lea.smem %s0, 31
  %s63 = sld [smem:[%s62]]
  %s64 = scalar_lea.smem %s0, 32
  %s65 = sld [smem:[%s64]]
  %s66 = scalar_lea.smem %s0, 33
  %s67 = sld [smem:[%s66]]
  %s68 = scalar_lea.smem %s0, 34
  %s69 = sld [smem:[%s68]]
  %s70 = scalar_lea.smem %s0, 35
  %s71 = sld [smem:[%s70]]
  %s72 = scalar_lea.smem %s0, 36
  %s73 = sld [smem:[%s72]]
  %s74 = scalar_lea.smem %s0, 37
  %s75 = sld [smem:[%s74]]
  %s76 = scalar_lea.smem %s0, 38
  %s77 = sld [smem:[%s76]]
  %s78 = scalar_lea.smem %s0, 39
  %s79 = sld [smem:[%s78]]
  %s80 = scalar_lea.smem %s0, 40
  %s81 = sld [smem:[%s80]]
  %s82 = scalar_lea.smem %s0, 41
  %s83 = sld [smem:[%s82]]
  %s84 = scalar_lea.smem %s0, 42
  %s85 = sld [smem:[%s84]]
  %s86 = scalar_lea.smem %s0, 43
  %s87 = sld [smem:[%s86]]
  %s88 = scalar_lea.smem %s0, 44
  %s89 = sld [smem:[%s88]]
  %s90 = scalar_lea.smem %s0, 45
  %s91 = sld [smem:[%s90]]
  %s92 = scalar_lea.smem %s0, 46
  %s93 = sld [smem:[%s92]]
  %s94 = scalar_lea.smem %s0, 47
  %s95 = sld [smem:[%s94]]
  %s96 = scalar_lea.smem %s0, 48
  %s97 = sld [smem:[%s96]]
  %s98 = scalar_lea.smem %s0, 49
  %s99 = sld [smem:[%s98]]
  %s100 = scalar_lea.smem %s0, 50
  %s101 = sld [smem:[%s100]]
  %s102 = scalar_lea.smem %s0, 51
  %s103 = sld [smem:[%s102]]
  %s104 = scalar_lea.smem %s0, 52
  %s105 = sld [smem:[%s104]]
  %s106 = scalar_lea.smem %s0, 53
  %s107 = sld [smem:[%s106]]
  %s108 = scalar_lea.smem %s0, 54
  %s109 = sld [smem:[%s108]]
  %s110 = scalar_lea.smem %s0, 55
  %s111 = sld [smem:[%s110]]
  %s112 = scalar_lea.smem %s0, 56
  %s113 = sld [smem:[%s112]]
  %s114 = scalar_lea.smem %s0, 57
  %s115 = sld [smem:[%s114]]
  %s116 = scalar_lea.smem %s0, 58
  %s117 = sld [smem:[%s116]]
  %s118 = scalar_lea.smem %s0, 59
  %s119 = sld [smem:[%s118]]
  %s120 = scalar_lea.smem %s0, 60
  %s121 = sld [smem:[%s120]]
  %s122 = scalar_lea.smem %s0, 61
  %s123 = sld [smem:[%s122]]
  %s124 = sld [smem:[#allocation0]]
  $region310: #{_lambda_.1} parent=0
    _
  %s126 = ssub.s32 1, %s124
  %s127 = scalar_select 0, %s126, %s124
  $region1: #{_lambda_.1} parent=0
    #allocation2 [shape = 'u8[512]{0}', space=vmem, size = 0x400, scoped, tag = 'input window, operand 39, single buffered']
    #allocation3 [shape = 's32[1]{0}', space=sflag, size = 0x4, scoped, tag = 'scoped memory for _lambda_.1']
    #allocation4 [shape = 's32[1]{0}', space=sflag, size = 0x4, scoped, tag = 'scoped memory for _lambda_.1']
    #allocation5 [shape = 'u8[512]{0}', space=vmem, size = 0x400, scoped, tag = 'input window, operand 40, single buffered']
    #allocation6 [shape = 's32[1]{0}', space=sflag, size = 0x4, scoped, tag = 'scoped memory for _lambda_.1']
    #allocation7 [shape = 'u8[512]{0}', space=vmem, size = 0x400, scoped, tag = 'input window, operand 41, single buffered']
    #allocation8 [shape = 'u8[512]{0}', space=vmem, size = 0x400, scoped, tag = 'input window, operand 42, single buffered']
    #allocation9 [shape = 's32[1]{0}', space=sflag, size = 0x4, scoped, tag = 'scoped memory for _lambda_.1']
    #allocation10 [shape = 'u8[512]{0}', space=vmem, size = 0x400, scoped, tag = 'input window, operand 45, single buffered']
    #allocation11 [shape = 'u8[512]{0}', space=vmem, size = 0x400, scoped, tag = 'input window, operand 46, single buffered']
    #allocation12 [shape = 's32[1]{0}', space=sflag, size = 0x4, scoped, tag = 'scoped memory for _lambda_.1']
    #allocation13 [shape = 'u8[512]{0}', space=vmem, size = 0x400, scoped, tag = 'input window, operand 47, single buffered']
    #allocation14 [shape = 'u8[512]{0}', space=vmem, size = 0x400, scoped, tag = 'input window, operand 49, single buffered']
    #allocation15 [shape = 's32[1]{0}', space=sflag, size = 0x4, scoped, tag = 'scoped memory for _lambda_.1']
    #allocation16 [shape = 'u8[512]{0}', space=vmem, size = 0x400, scoped, tag = 'input window, operand 51, single buffered']
    #allocation17 [shape = 'u8[512]{0}', space=vmem, size = 0x400, scoped, tag = 'input window, operand 52, single buffered']
    #allocation18 [shape = 's32[1]{0}', space=sflag, size = 0x4, scoped, tag = 'scoped memory for _lambda_.1']
    #allocation19 [shape = 'u8[512]{0}', space=vmem, size = 0x400, scoped, tag = 'input window, operand 53, single buffered']
    #allocation20 [shape = 'u8[512]{0}', space=vmem, size = 0x400, scoped, tag = 'input window, operand 54, single buffered']
    #allocation21 [shape = 's32[1]{0}', space=sflag, size = 0x4, scoped, tag = 'scoped memory for _lambda_.1']
    #allocation22 [shape = 'u8[512]{0}', space=vmem, size = 0x400, scoped, tag = 'input window, operand 57, single buffered']
    #allocation23 [shape = 'u8[512]{0}', space=vmem, size = 0x400, scoped, tag = 'input window, operand 58, single buffered']
    #allocation24 [shape = 's32[1]{0}', space=sflag, size = 0x4, scoped, tag = 'scoped memory for _lambda_.1']
    #allocation25 [shape = 'u8[4096]{0}', space=vmem, size = 0x1000, scoped, tag = 'output window, operand 0, single buffered']
    %128 = vsyncpa [#allocation3], 0
    %129 = vsyncpa [#allocation6], 0
    %130 = vsyncpa [#allocation9], 0
    %131 = vsyncpa [#allocation12], 0
    %132 = vsyncpa [#allocation15], 0
    %133 = vsyncpa [#allocation18], 0
    %134 = vsyncpa [#allocation21], 0
    %135 = vsyncpa [#allocation24], 0
    %136 = vsyncpa [#allocation4], 0
    // Predicated region
    $region2: #{_lambda_.1} parent=1 // pred_check
      _
    $region3: #{_lambda_.1} parent=1 // pred_check_branch
      %138 = sbr.rel (0) target = $region5
    $region4: #{_lambda_.1} parent=1 // pred_region
      _
    $region5: #{_lambda_.1} parent=1 // pred_fallthru
      _
    // Predicated region
    $region6: #{_lambda_.1} parent=1 // pred_check
      _
    $region7: #{_lambda_.1} parent=1 // pred_check_branch
      %140 = sbr.rel (0) target = $region9
    $region8: #{_lambda_.1} parent=1 // pred_region
      _
    $region9: #{_lambda_.1} parent=1 // pred_fallthru
      _
    // Predicated region
    $region10: #{_lambda_.1} parent=1 // pred_check
      _
    $region11: #{_lambda_.1} parent=1 // pred_check_branch
      %142 = sbr.rel (0) target = $region13
    $region12: #{_lambda_.1} parent=1 // pred_region
      _
    $region13: #{_lambda_.1} parent=1 // pred_fallthru
      _
    // Predicated region
    $region14: #{_lambda_.1} parent=1 // pred_check
      _
    $region15: #{_lambda_.1} parent=1 // pred_check_branch
      %144 = sbr.rel (0) target = $region17
    $region16: #{_lambda_.1} parent=1 // pred_region
      _
    $region17: #{_lambda_.1} parent=1 // pred_fallthru
      _
    // Predicated region
    $region18: #{_lambda_.1} parent=1 // pred_check
      _
    $region19: #{_lambda_.1} parent=1 // pred_check_branch
      %146 = sbr.rel (0) target = $region21
    $region20: #{_lambda_.1} parent=1 // pred_region
      _
    $region21: #{_lambda_.1} parent=1 // pred_fallthru
      _
    // Predicated region
    $region22: #{_lambda_.1} parent=1 // pred_check
      _
    $region23: #{_lambda_.1} parent=1 // pred_check_branch
      %148 = sbr.rel (0) target = $region25
    $region24: #{_lambda_.1} parent=1 // pred_region
      _
    $region25: #{_lambda_.1} parent=1 // pred_fallthru
      _
    // Predicated region
    $region26: #{_lambda_.1} parent=1 // pred_check
      _
    $region27: #{_lambda_.1} parent=1 // pred_check_branch
      %150 = sbr.rel (0) target = $region29
    $region28: #{_lambda_.1} parent=1 // pred_region
      _
    $region29: #{_lambda_.1} parent=1 // pred_fallthru
      _
    // Predicated region
    $region30: #{_lambda_.1} parent=1 // pred_check
      _
    $region31: #{_lambda_.1} parent=1 // pred_check_branch
      %152 = sbr.rel (0) target = $region33
    $region32: #{_lambda_.1} parent=1 // pred_region
      _
    $region33: #{_lambda_.1} parent=1 // pred_fallthru
      _
    // Predicated region
    $region34: #{_lambda_.1} parent=1 // pred_check
      _
    $region35: #{_lambda_.1} parent=1 // pred_check_branch
      %154 = sbr.rel (0) target = $region37
    $region36: #{_lambda_.1} parent=1 // pred_region
      _
    $region37: #{_lambda_.1} parent=1 // pred_fallthru
      _
    // Predicated region
    $region38: #{_lambda_.1} parent=1 // pred_check
      _
    $region39: #{_lambda_.1} parent=1 // pred_check_branch
      %156 = sbr.rel (0) target = $region41
    $region40: #{_lambda_.1} parent=1 // pred_region
      _
    $region41: #{_lambda_.1} parent=1 // pred_fallthru
      _
    // Predicated region
    $region42: #{_lambda_.1} parent=1 // pred_check
      _
    $region43: #{_lambda_.1} parent=1 // pred_check_branch
      %158 = sbr.rel (0) target = $region45
    $region44: #{_lambda_.1} parent=1 // pred_region
      _
    $region45: #{_lambda_.1} parent=1 // pred_fallthru
      _
    // Predicated region
    $region46: #{_lambda_.1} parent=1 // pred_check
      _
    $region47: #{_lambda_.1} parent=1 // pred_check_branch
      %160 = sbr.rel (0) target = $region49
    $region48: #{_lambda_.1} parent=1 // pred_region
      _
    $region49: #{_lambda_.1} parent=1 // pred_fallthru
      _
    // Predicated region
    $region50: #{_lambda_.1} parent=1 // pred_check
      _
    $region51: #{_lambda_.1} parent=1 // pred_check_branch
      %162 = sbr.rel (0) target = $region53
    $region52: #{_lambda_.1} parent=1 // pred_region
      _
    $region53: #{_lambda_.1} parent=1 // pred_fallthru
      _
    // Predicated region
    $region54: #{_lambda_.1} parent=1 // pred_check
      _
    $region55: #{_lambda_.1} parent=1 // pred_check_branch
      %164 = sbr.rel (0) target = $region57
    $region56: #{_lambda_.1} parent=1 // pred_region
      _
    $region57: #{_lambda_.1} parent=1 // pred_fallthru
      _
    // Predicated region
    $region58: #{_lambda_.1} parent=1 // pred_check
      _
    $region59: #{_lambda_.1} parent=1 // pred_check_branch
      %166 = sbr.rel (0) target = $region61
    $region60: #{_lambda_.1} parent=1 // pred_region
      _
    $region61: #{_lambda_.1} parent=1 // pred_fallthru
      _
    // Predicated region
    $region62: #{_lambda_.1} parent=1 // pred_check
      _
    $region63: #{_lambda_.1} parent=1 // pred_check_branch
      %168 = sbr.rel (0) target = $region65
    $region64: #{_lambda_.1} parent=1 // pred_region
      _
    $region65: #{_lambda_.1} parent=1 // pred_fallthru
      _
    // Predicated region
    $region66: #{_lambda_.1} parent=1 // pred_check
      _
    $region67: #{_lambda_.1} parent=1 // pred_check_branch
      %170 = sbr.rel (0) target = $region69
    $region68: #{_lambda_.1} parent=1 // pred_region
      _
    $region69: #{_lambda_.1} parent=1 // pred_fallthru
      _
    // Predicated region
    $region70: #{_lambda_.1} parent=1 // pred_check
      _
    $region71: #{_lambda_.1} parent=1 // pred_check_branch
      %172 = sbr.rel (0) target = $region73
    $region72: #{_lambda_.1} parent=1 // pred_region
      _
    $region73: #{_lambda_.1} parent=1 // pred_fallthru
      _
    // Predicated region
    $region74: #{_lambda_.1} parent=1 // pred_check
      _
    $region75: #{_lambda_.1} parent=1 // pred_check_branch
      %174 = sbr.rel (0) target = $region77
    $region76: #{_lambda_.1} parent=1 // pred_region
      _
    $region77: #{_lambda_.1} parent=1 // pred_fallthru
      _
    // Predicated region
    $region78: #{_lambda_.1} parent=1 // pred_check
      _
    $region79: #{_lambda_.1} parent=1 // pred_check_branch
      %176 = sbr.rel (0) target = $region81
    $region80: #{_lambda_.1} parent=1 // pred_region
      _
    $region81: #{_lambda_.1} parent=1 // pred_fallthru
      _
    // Predicated region
    $region82: #{_lambda_.1} parent=1 // pred_check
      _
    $region83: #{_lambda_.1} parent=1 // pred_check_branch
      %178 = sbr.rel (0) target = $region85
    $region84: #{_lambda_.1} parent=1 // pred_region
      _
    $region85: #{_lambda_.1} parent=1 // pred_fallthru
      _
    // Predicated region
    $region86: #{_lambda_.1} parent=1 // pred_check
      _
    $region87: #{_lambda_.1} parent=1 // pred_check_branch
      %180 = sbr.rel (0) target = $region89
    $region88: #{_lambda_.1} parent=1 // pred_region
      _
    $region89: #{_lambda_.1} parent=1 // pred_fallthru
      _
    // Predicated region
    $region90: #{_lambda_.1} parent=1 // pred_check
      _
    $region91: #{_lambda_.1} parent=1 // pred_check_branch
      %182 = sbr.rel (0) target = $region93
    $region92: #{_lambda_.1} parent=1 // pred_region
      _
    $region93: #{_lambda_.1} parent=1 // pred_fallthru
      _
    // Predicated region
    $region94: #{_lambda_.1} parent=1 // pred_check
      _
    $region95: #{_lambda_.1} parent=1 // pred_check_branch
      %184 = sbr.rel (0) target = $region97
    $region96: #{_lambda_.1} parent=1 // pred_region
      _
    $region97: #{_lambda_.1} parent=1 // pred_fallthru
      _
    // Predicated region
    $region98: #{_lambda_.1} parent=1 // pred_check
      _
    $region99: #{_lambda_.1} parent=1 // pred_check_branch
      %186 = sbr.rel (0) target = $region101
    $region100: #{_lambda_.1} parent=1 // pred_region
      _
    $region101: #{_lambda_.1} parent=1 // pred_fallthru
      _
    // Predicated region
    $region102: #{_lambda_.1} parent=1 // pred_check
      _
    $region103: #{_lambda_.1} parent=1 // pred_check_branch
      %188 = sbr.rel (0) target = $region105
    $region104: #{_lambda_.1} parent=1 // pred_region
      _
    $region105: #{_lambda_.1} parent=1 // pred_fallthru
      _
    // Predicated region
    $region106: #{_lambda_.1} parent=1 // pred_check
      _
    $region107: #{_lambda_.1} parent=1 // pred_check_branch
      %190 = sbr.rel (0) target = $region109
    $region108: #{_lambda_.1} parent=1 // pred_region
      _
    $region109: #{_lambda_.1} parent=1 // pred_fallthru
      _
    // Predicated region
    $region110: #{_lambda_.1} parent=1 // pred_check
      _
    $region111: #{_lambda_.1} parent=1 // pred_check_branch
      %192 = sbr.rel (0) target = $region113
    $region112: #{_lambda_.1} parent=1 // pred_region
      _
    $region113: #{_lambda_.1} parent=1 // pred_fallthru
      _
    // Predicated region
    $region114: #{_lambda_.1} parent=1 // pred_check
      _
    $region115: #{_lambda_.1} parent=1 // pred_check_branch
      %194 = sbr.rel (0) target = $region117
    $region116: #{_lambda_.1} parent=1 // pred_region
      _
    $region117: #{_lambda_.1} parent=1 // pred_fallthru
      _
    // Predicated region
    $region118: #{_lambda_.1} parent=1 // pred_check
      _
    $region119: #{_lambda_.1} parent=1 // pred_check_branch
      %196 = sbr.rel (0) target = $region121
    $region120: #{_lambda_.1} parent=1 // pred_region
      _
    $region121: #{_lambda_.1} parent=1 // pred_fallthru
      _
    // Predicated region
    $region122: #{_lambda_.1} parent=1 // pred_check
      _
    $region123: #{_lambda_.1} parent=1 // pred_check_branch
      %198 = sbr.rel (0) target = $region125
    $region124: #{_lambda_.1} parent=1 // pred_region
      _
    $region125: #{_lambda_.1} parent=1 // pred_fallthru
      _
    // Predicated region
    $region126: #{_lambda_.1} parent=1 // pred_check
      _
    $region127: #{_lambda_.1} parent=1 // pred_check_branch
      %200 = sbr.rel (0) target = $region129
    $region128: #{_lambda_.1} parent=1 // pred_region
      _
    $region129: #{_lambda_.1} parent=1 // pred_fallthru
      _
    // Predicated region
    $region130: #{_lambda_.1} parent=1 // pred_check
      _
    $region131: #{_lambda_.1} parent=1 // pred_check_branch
      %202 = sbr.rel (0) target = $region133
    $region132: #{_lambda_.1} parent=1 // pred_region
      _
    $region133: #{_lambda_.1} parent=1 // pred_fallthru
      _
    // Predicated region
    $region134: #{_lambda_.1} parent=1 // pred_check
      _
    $region135: #{_lambda_.1} parent=1 // pred_check_branch
      %204 = sbr.rel (0) target = $region137
    $region136: #{_lambda_.1} parent=1 // pred_region
      _
    $region137: #{_lambda_.1} parent=1 // pred_fallthru
      _
    // Predicated region
    $region138: #{_lambda_.1} parent=1 // pred_check
      _
    $region139: #{_lambda_.1} parent=1 // pred_check_branch
      %206 = sbr.rel (0) target = $region141
    $region140: #{_lambda_.1} parent=1 // pred_region
      _
    $region141: #{_lambda_.1} parent=1 // pred_fallthru
      _
    // Predicated region
    $region142: #{_lambda_.1} parent=1 // pred_check
      _
    $region143: #{_lambda_.1} parent=1 // pred_check_branch
      %208 = sbr.rel (0) target = $region145
    $region144: #{_lambda_.1} parent=1 // pred_region
      _
    $region145: #{_lambda_.1} parent=1 // pred_fallthru
      _
    // Predicated region
    $region146: #{_lambda_.1} parent=1 // pred_check
      _
    $region147: #{_lambda_.1} parent=1 // pred_check_branch
      %210 = sbr.rel (0) target = $region149
    $region148: #{_lambda_.1} parent=1 // pred_region
      _
    $region149: #{_lambda_.1} parent=1 // pred_fallthru
      _
    // Predicated region
    $region150: #{_lambda_.1} parent=1 // pred_check
      _
    $region151: #{_lambda_.1} parent=1 // pred_check_branch
      %212 = sbr.rel (0) target = $region153
    $region152: #{_lambda_.1} parent=1 // pred_region
      _
    $region153: #{_lambda_.1} parent=1 // pred_fallthru
      _
    // Predicated region
    $region154: #{_lambda_.1} parent=1 // pred_check
      _
    $region155: #{_lambda_.1} parent=1 // pred_check_branch
      %214 = sbr.rel (0) target = $region157
    $region156: #{_lambda_.1} parent=1 // pred_region
      _
    $region157: #{_lambda_.1} parent=1 // pred_fallthru
      _
    // Predicated region
    $region158: #{_lambda_.1} parent=1 // pred_check
      _
    $region159: #{_lambda_.1} parent=1 // pred_check_branch
      %216 = sbr.rel (0) target = $region161
    $region160: #{_lambda_.1} parent=1 // pred_region
      %218 = vsyncadd [#allocation3], 0
      %s220 = sshll.u32 %s79, 4
      %s221 = int_to_ptr.hbm [resolvable:$true] %s220
      %s222 = sshll.u32 [#allocation2], 4
      %s223 = int_to_ptr.vmem [resolvable:$true] %s222
      %225 = dma.hbm_to_vmem [thread:$0]  %s221, 16, %s223, [#allocation3]
    $region161: #{_lambda_.1} parent=1 // pred_fallthru
      _
    // Predicated region
    $region162: #{_lambda_.1} parent=1 // pred_check
      _
    $region163: #{_lambda_.1} parent=1 // pred_check_branch
      %227 = sbr.rel (0) target = $region165
    $region164: #{_lambda_.1} parent=1 // pred_region
      %229 = vsyncadd [#allocation6], 0
      %s231 = sshll.u32 %s81, 4
      %s232 = int_to_ptr.hbm [resolvable:$true] %s231
      %s233 = sshll.u32 [#allocation5], 4
      %s234 = int_to_ptr.vmem [resolvable:$true] %s233
      %236 = dma.hbm_to_vmem [thread:$0]  %s232, 16, %s234, [#allocation6]
    $region165: #{_lambda_.1} parent=1 // pred_fallthru
      _
    // Predicated region
    $region166: #{_lambda_.1} parent=1 // pred_check
      _
    $region167: #{_lambda_.1} parent=1 // pred_check_branch
      %238 = sbr.rel (0) target = $region169
    $region168: #{_lambda_.1} parent=1 // pred_region
      %240 = vsyncadd [#allocation6], 0
      %s242 = sshll.u32 %s83, 4
      %s243 = int_to_ptr.hbm [resolvable:$true] %s242
      %s244 = sshll.u32 [#allocation7], 4
      %s245 = int_to_ptr.vmem [resolvable:$true] %s244
      %247 = dma.hbm_to_vmem [thread:$0]  %s243, 16, %s245, [#allocation6]
    $region169: #{_lambda_.1} parent=1 // pred_fallthru
      _
    // Predicated region
    $region170: #{_lambda_.1} parent=1 // pred_check
      _
    $region171: #{_lambda_.1} parent=1 // pred_check_branch
      %249 = sbr.rel (0) target = $region173
    $region172: #{_lambda_.1} parent=1 // pred_region
      %251 = vsyncadd [#allocation9], 0
      %s253 = sshll.u32 %s85, 4
      %s254 = int_to_ptr.hbm [resolvable:$true] %s253
      %s255 = sshll.u32 [#allocation8], 4
      %s256 = int_to_ptr.vmem [resolvable:$true] %s255
      %258 = dma.hbm_to_vmem [thread:$0]  %s254, 16, %s256, [#allocation9]
    $region173: #{_lambda_.1} parent=1 // pred_fallthru
      _
    // Predicated region
    $region174: #{_lambda_.1} parent=1 // pred_check
      _
    $region175: #{_lambda_.1} parent=1 // pred_check_branch
      %260 = sbr.rel (0) target = $region177
    $region176: #{_lambda_.1} parent=1 // pred_region
      _
    $region177: #{_lambda_.1} parent=1 // pred_fallthru
      _
    // Predicated region
    $region178: #{_lambda_.1} parent=1 // pred_check
      _
    $region179: #{_lambda_.1} parent=1 // pred_check_branch
      %262 = sbr.rel (0) target = $region181
    $region180: #{_lambda_.1} parent=1 // pred_region
      _
    $region181: #{_lambda_.1} parent=1 // pred_fallthru
      _
    // Predicated region
    $region182: #{_lambda_.1} parent=1 // pred_check
      _
    $region183: #{_lambda_.1} parent=1 // pred_check_branch
      %264 = sbr.rel (0) target = $region185
    $region184: #{_lambda_.1} parent=1 // pred_region
      %266 = vsyncadd [#allocation9], 0
      %s268 = sshll.u32 %s91, 4
      %s269 = int_to_ptr.hbm [resolvable:$true] %s268
      %s270 = sshll.u32 [#allocation10], 4
      %s271 = int_to_ptr.vmem [resolvable:$true] %s270
      %273 = dma.hbm_to_vmem [thread:$0]  %s269, 16, %s271, [#allocation9]
    $region185: #{_lambda_.1} parent=1 // pred_fallthru
      _
    // Predicated region
    $region186: #{_lambda_.1} parent=1 // pred_check
      _
    $region187: #{_lambda_.1} parent=1 // pred_check_branch
      %275 = sbr.rel (0) target = $region189
    $region188: #{_lambda_.1} parent=1 // pred_region
      %277 = vsyncadd [#allocation12], 0
      %s279 = sshll.u32 %s93, 4
      %s280 = int_to_ptr.hbm [resolvable:$true] %s279
      %s281 = sshll.u32 [#allocation11], 4
      %s282 = int_to_ptr.vmem [resolvable:$true] %s281
      %284 = dma.hbm_to_vmem [thread:$0]  %s280, 16, %s282, [#allocation12]
    $region189: #{_lambda_.1} parent=1 // pred_fallthru
      _
    // Predicated region
    $region190: #{_lambda_.1} parent=1 // pred_check
      _
    $region191: #{_lambda_.1} parent=1 // pred_check_branch
      %286 = sbr.rel (0) target = $region193
    $region192: #{_lambda_.1} parent=1 // pred_region
      %288 = vsyncadd [#allocation12], 0
      %s290 = sshll.u32 %s95, 4
      %s291 = int_to_ptr.hbm [resolvable:$true] %s290
      %s292 = sshll.u32 [#allocation13], 4
      %s293 = int_to_ptr.vmem [resolvable:$true] %s292
      %295 = dma.hbm_to_vmem [thread:$0]  %s291, 16, %s293, [#allocation12]
    $region193: #{_lambda_.1} parent=1 // pred_fallthru
      _
    // Predicated region
    $region194: #{_lambda_.1} parent=1 // pred_check
      _
    $region195: #{_lambda_.1} parent=1 // pred_check_branch
      %297 = sbr.rel (0) target = $region197
    $region196: #{_lambda_.1} parent=1 // pred_region
      _
    $region197: #{_lambda_.1} parent=1 // pred_fallthru
      _
    // Predicated region
    $region198: #{_lambda_.1} parent=1 // pred_check
      _
    $region199: #{_lambda_.1} parent=1 // pred_check_branch
      %299 = sbr.rel (0) target = $region201
    $region200: #{_lambda_.1} parent=1 // pred_region
      %301 = vsyncadd [#allocation15], 0
      %s303 = sshll.u32 %s99, 4
      %s304 = int_to_ptr.hbm [resolvable:$true] %s303
      %s305 = sshll.u32 [#allocation14], 4
      %s306 = int_to_ptr.vmem [resolvable:$true] %s305
      %308 = dma.hbm_to_vmem [thread:$0]  %s304, 16, %s306, [#allocation15]
    $region201: #{_lambda_.1} parent=1 // pred_fallthru
      _
    // Predicated region
    $region202: #{_lambda_.1} parent=1 // pred_check
      _
    $region203: #{_lambda_.1} parent=1 // pred_check_branch
      %310 = sbr.rel (0) target = $region205
    $region204: #{_lambda_.1} parent=1 // pred_region
      _
    $region205: #{_lambda_.1} parent=1 // pred_fallthru
      _
    // Predicated region
    $region206: #{_lambda_.1} parent=1 // pred_check
      _
    $region207: #{_lambda_.1} parent=1 // pred_check_branch
      %312 = sbr.rel (0) target = $region209
    $region208: #{_lambda_.1} parent=1 // pred_region
      %314 = vsyncadd [#allocation15], 0
      %s316 = sshll.u32 %s103, 4
      %s317 = int_to_ptr.hbm [resolvable:$true] %s316
      %s318 = sshll.u32 [#allocation16], 4
      %s319 = int_to_ptr.vmem [resolvable:$true] %s318
      %321 = dma.hbm_to_vmem [thread:$0]  %s317, 16, %s319, [#allocation15]
    $region209: #{_lambda_.1} parent=1 // pred_fallthru
      _
    // Predicated region
    $region210: #{_lambda_.1} parent=1 // pred_check
      _
    $region211: #{_lambda_.1} parent=1 // pred_check_branch
      %323 = sbr.rel (0) target = $region213
    $region212: #{_lambda_.1} parent=1 // pred_region
      %325 = vsyncadd [#allocation18], 0
      %s327 = sshll.u32 %s105, 4
      %s328 = int_to_ptr.hbm [resolvable:$true] %s327
      %s329 = sshll.u32 [#allocation17], 4
      %s330 = int_to_ptr.vmem [resolvable:$true] %s329
      %332 = dma.hbm_to_vmem [thread:$0]  %s328, 16, %s330, [#allocation18]
    $region213: #{_lambda_.1} parent=1 // pred_fallthru
      _
    // Predicated region
    $region214: #{_lambda_.1} parent=1 // pred_check
      _
    $region215: #{_lambda_.1} parent=1 // pred_check_branch
      %334 = sbr.rel (0) target = $region217
    $region216: #{_lambda_.1} parent=1 // pred_region
      %336 = vsyncadd [#allocation18], 0
      %s338 = sshll.u32 %s107, 4
      %s339 = int_to_ptr.hbm [resolvable:$true] %s338
      %s340 = sshll.u32 [#allocation19], 4
      %s341 = int_to_ptr.vmem [resolvable:$true] %s340
      %343 = dma.hbm_to_vmem [thread:$0]  %s339, 16, %s341, [#allocation18]
    $region217: #{_lambda_.1} parent=1 // pred_fallthru
      _
    // Predicated region
    $region218: #{_lambda_.1} parent=1 // pred_check
      _
    $region219: #{_lambda_.1} parent=1 // pred_check_branch
      %345 = sbr.rel (0) target = $region221
    $region220: #{_lambda_.1} parent=1 // pred_region
      %347 = vsyncadd [#allocation21], 0
      %s349 = sshll.u32 %s109, 4
      %s350 = int_to_ptr.hbm [resolvable:$true] %s349
      %s351 = sshll.u32 [#allocation20], 4
      %s352 = int_to_ptr.vmem [resolvable:$true] %s351
      %354 = dma.hbm_to_vmem [thread:$0]  %s350, 16, %s352, [#allocation21]
    $region221: #{_lambda_.1} parent=1 // pred_fallthru
      _
    // Predicated region
    $region222: #{_lambda_.1} parent=1 // pred_check
      _
    $region223: #{_lambda_.1} parent=1 // pred_check_branch
      %356 = sbr.rel (0) target = $region225
    $region224: #{_lambda_.1} parent=1 // pred_region
      _
    $region225: #{_lambda_.1} parent=1 // pred_fallthru
      _
    // Predicated region
    $region226: #{_lambda_.1} parent=1 // pred_check
      _
    $region227: #{_lambda_.1} parent=1 // pred_check_branch
      %358 = sbr.rel (0) target = $region229
    $region228: #{_lambda_.1} parent=1 // pred_region
      _
    $region229: #{_lambda_.1} parent=1 // pred_fallthru
      _
    // Predicated region
    $region230: #{_lambda_.1} parent=1 // pred_check
      _
    $region231: #{_lambda_.1} parent=1 // pred_check_branch
      %360 = sbr.rel (0) target = $region233
    $region232: #{_lambda_.1} parent=1 // pred_region
      %362 = vsyncadd [#allocation21], 0
      %s364 = sshll.u32 %s115, 4
      %s365 = int_to_ptr.hbm [resolvable:$true] %s364
      %s366 = sshll.u32 [#allocation22], 4
      %s367 = int_to_ptr.vmem [resolvable:$true] %s366
      %369 = dma.hbm_to_vmem [thread:$0]  %s365, 16, %s367, [#allocation21]
    $region233: #{_lambda_.1} parent=1 // pred_fallthru
      _
    // Predicated region
    $region234: #{_lambda_.1} parent=1 // pred_check
      _
    $region235: #{_lambda_.1} parent=1 // pred_check_branch
      %371 = sbr.rel (0) target = $region237
    $region236: #{_lambda_.1} parent=1 // pred_region
      %373 = vsyncadd [#allocation24], 0
      %s375 = sshll.u32 %s117, 4
      %s376 = int_to_ptr.hbm [resolvable:$true] %s375
      %s377 = sshll.u32 [#allocation23], 4
      %s378 = int_to_ptr.vmem [resolvable:$true] %s377
      %380 = dma.hbm_to_vmem [thread:$0]  %s376, 16, %s378, [#allocation24]
    $region237: #{_lambda_.1} parent=1 // pred_fallthru
      _
    // Predicated region
    $region238: #{_lambda_.1} parent=1 // pred_check
      _
    $region239: #{_lambda_.1} parent=1 // pred_check_branch
      %382 = sbr.rel (0) target = $region241
    $region240: #{_lambda_.1} parent=1 // pred_region
      _
    $region241: #{_lambda_.1} parent=1 // pred_fallthru
      _
    // Predicated region
    $region242: #{_lambda_.1} parent=1 // pred_check
      _
    $region243: #{_lambda_.1} parent=1 // pred_check_branch
      %384 = sbr.rel (0) target = $region245
    $region244: #{_lambda_.1} parent=1 // pred_region
      _
    $region245: #{_lambda_.1} parent=1 // pred_fallthru
      _
    // Predicated region
    $region246: #{_lambda_.1} parent=1 // pred_check
      _
    $region247: #{_lambda_.1} parent=1 // pred_check_branch
      %386 = sbr.rel (0) target = $region249
    $region248: #{_lambda_.1} parent=1 // pred_region
      %388 = dma.done [#allocation3], 16
    $region249: #{_lambda_.1} parent=1 // pred_fallthru
      _
    // Predicated region
    $region250: #{_lambda_.1} parent=1 // pred_check
      _
    $region251: #{_lambda_.1} parent=1 // pred_check_branch
      %390 = sbr.rel (0) target = $region253
    $region252: #{_lambda_.1} parent=1 // pred_region
      %392 = dma.done [#allocation6], 16
    $region253: #{_lambda_.1} parent=1 // pred_fallthru
      _
    // Predicated region
    $region254: #{_lambda_.1} parent=1 // pred_check
      _
    $region255: #{_lambda_.1} parent=1 // pred_check_branch
      %394 = sbr.rel (0) target = $region257
    $region256: #{_lambda_.1} parent=1 // pred_region
      %396 = dma.done [#allocation6], 16
    $region257: #{_lambda_.1} parent=1 // pred_fallthru
      _
    // Predicated region
    $region258: #{_lambda_.1} parent=1 // pred_check
      _
    $region259: #{_lambda_.1} parent=1 // pred_check_branch
      %398 = sbr.rel (0) target = $region261
    $region260: #{_lambda_.1} parent=1 // pred_region
      %400 = dma.done [#allocation9], 16
    $region261: #{_lambda_.1} parent=1 // pred_fallthru
      _
    // Predicated region
    $region262: #{_lambda_.1} parent=1 // pred_check
      _
    $region263: #{_lambda_.1} parent=1 // pred_check_branch
      %402 = sbr.rel (0) target = $region265
    $region264: #{_lambda_.1} parent=1 // pred_region
      %404 = dma.done [#allocation9], 16
    $region265: #{_lambda_.1} parent=1 // pred_fallthru
      _
    // Predicated region
    $region266: #{_lambda_.1} parent=1 // pred_check
      _
    $region267: #{_lambda_.1} parent=1 // pred_check_branch
      %406 = sbr.rel (0) target = $region269
    $region268: #{_lambda_.1} parent=1 // pred_region
      %408 = dma.done [#allocation12], 16
    $region269: #{_lambda_.1} parent=1 // pred_fallthru
      _
    // Predicated region
    $region270: #{_lambda_.1} parent=1 // pred_check
      _
    $region271: #{_lambda_.1} parent=1 // pred_check_branch
      %410 = sbr.rel (0) target = $region273
    $region272: #{_lambda_.1} parent=1 // pred_region
      %412 = dma.done [#allocation12], 16
    $region273: #{_lambda_.1} parent=1 // pred_fallthru
      _
    // Predicated region
    $region274: #{_lambda_.1} parent=1 // pred_check
      _
    $region275: #{_lambda_.1} parent=1 // pred_check_branch
      %414 = sbr.rel (0) target = $region277
    $region276: #{_lambda_.1} parent=1 // pred_region
      %416 = dma.done [#allocation15], 16
    $region277: #{_lambda_.1} parent=1 // pred_fallthru
      _
    // Predicated region
    $region278: #{_lambda_.1} parent=1 // pred_check
      _
    $region279: #{_lambda_.1} parent=1 // pred_check_branch
      %418 = sbr.rel (0) target = $region281
    $region280: #{_lambda_.1} parent=1 // pred_region
      %420 = dma.done [#allocation15], 16
    $region281: #{_lambda_.1} parent=1 // pred_fallthru
      _
    // Predicated region
    $region282: #{_lambda_.1} parent=1 // pred_check
      _
    $region283: #{_lambda_.1} parent=1 // pred_check_branch
      %422 = sbr.rel (0) target = $region285
    $region284: #{_lambda_.1} parent=1 // pred_region
      %424 = dma.done [#allocation18], 16
    $region285: #{_lambda_.1} parent=1 // pred_fallthru
      _
    // Predicated region
    $region286: #{_lambda_.1} parent=1 // pred_check
      _
    $region287: #{_lambda_.1} parent=1 // pred_check_branch
      %426 = sbr.rel (0) target = $region289
    $region288: #{_lambda_.1} parent=1 // pred_region
      %428 = dma.done [#allocation18], 16
    $region289: #{_lambda_.1} parent=1 // pred_fallthru
      _
    // Predicated region
    $region290: #{_lambda_.1} parent=1 // pred_check
      _
    $region291: #{_lambda_.1} parent=1 // pred_check_branch
      %430 = sbr.rel (0) target = $region293
    $region292: #{_lambda_.1} parent=1 // pred_region
      %432 = dma.done [#allocation21], 16
    $region293: #{_lambda_.1} parent=1 // pred_fallthru
      _
    // Predicated region
    $region294: #{_lambda_.1} parent=1 // pred_check
      _
    $region295: #{_lambda_.1} parent=1 // pred_check_branch
      %434 = sbr.rel (0) target = $region297
    $region296: #{_lambda_.1} parent=1 // pred_region
      %436 = dma.done [#allocation21], 16
    $region297: #{_lambda_.1} parent=1 // pred_fallthru
      _
    // Predicated region
    $region298: #{_lambda_.1} parent=1 // pred_check
      _
    $region299: #{_lambda_.1} parent=1 // pred_check_branch
      %438 = sbr.rel (0) target = $region301
    $region300: #{_lambda_.1} parent=1 // pred_region
      %440 = dma.done [#allocation24], 16
    $region301: #{_lambda_.1} parent=1 // pred_fallthru
      _
    %v442 = vld [vmem:[%s1] sm:$0xff]
    %v443 = vld [vmem:[%s3] sm:$0xff]
    %v444 = vld [vmem:[%s3 + $0x8] sm:$0xff]
    %v445 = vld [vmem:[%s5] sm:$0xff]
    %v446 = vld [vmem:[%s5 + $0x8] sm:$0xff]
    %v447 = vld [vmem:[%s7] sm:$0xf]
    %v448 = vld [vmem:[%s7 + $0x4] sm:$0xf]
    %v449 = vld [vmem:[%s9] sm:$0xf]
    %v450 = vld [vmem:[%s9 + $0x4] sm:$0xf]
    %v451 = vld [vmem:[%s11] sm:$0xf]
    %v452 = vld [vmem:[%s11 + $0x4] sm:$0xf]
    %v453 = vld [vmem:[%s13] sm:$0xf]
    %v454 = vld [vmem:[%s13 + $0x4] sm:$0xf]
    %v455 = vld [vmem:[%s15] sm:$0x3]
    %v456 = vld [vmem:[%s17] sm:$0xf]
    %v457 = vld [vmem:[%s17 + $0x4] sm:$0x3]
    %v458 = vld [vmem:[%s19] sm:$0x1]
    %v459 = vld [vmem:[%s21] sm:$0xf]
    %v460 = vld [vmem:[%s21 + $0x4] sm:$0xf]
    %v461 = vld [vmem:[%s21 + $0x8] sm:$0xf]
    %v462 = vld [vmem:[%s21 + $0xc] sm:$0xf]
    %v463 = vld [vmem:[%s23] sm:$0x1]
    %v464 = vld [vmem:[%s25] sm:$0xf]
    %v465 = vld [vmem:[%s25 + $0x4] sm:$0xf]
    %v466 = vld [vmem:[%s25 + $0x8] sm:$0xf]
    %v467 = vld [vmem:[%s25 + $0xc] sm:$0xf]
    %v468 = vld [vmem:[%s25 + $0x10] sm:$0xf]
    %v469 = vld [vmem:[%s25 + $0x14] sm:$0xf]
    %v470 = vld [vmem:[%s25 + $0x18] sm:$0xf]
    %v471 = vld [vmem:[%s25 + $0x1c] sm:$0xf]
    %v472 = vld [vmem:[%s27] sm:$0x1]
    %v473 = vld [vmem:[%s29] sm:$0x1]
    %v474 = vld [vmem:[%s31] sm:$0x1]
    %v475 = vld [vmem:[%s33] sm:$0xf]
    %v476 = vld [vmem:[%s33 + $0x4] sm:$0xf]
    %v477 = vld [vmem:[%s33 + $0x8] sm:$0xf]
    %v478 = vld [vmem:[%s33 + $0xc] sm:$0xf]
    %v479 = vld [vmem:[%s35] sm:$0xf]
    %v480 = vld [vmem:[%s35 + $0x4] sm:$0xf]
    %v481 = vld [vmem:[%s35 + $0x8] sm:$0xf]
    %v482 = vld [vmem:[%s35 + $0xc] sm:$0xf]
    %v483 = vld [vmem:[%s37] sm:$0xf]
    %v484 = vld [vmem:[%s37 + $0x4] sm:$0xf]
    %v485 = vld [vmem:[%s37 + $0x8] sm:$0xf]
    %v486 = vld [vmem:[%s37 + $0xc] sm:$0xf]
    %v487 = vld [vmem:[%s39] sm:$0x1]
    %v488 = vld [vmem:[%s41] sm:$0x1]
    %v489 = vld [vmem:[%s43] sm:$0x1]
    %v490 = vld [vmem:[%s45] sm:$0x1]
    %v491 = vld [vmem:[%s47] sm:$0x1]
    %v492 = vld [vmem:[%s49] sm:$0x1]
    %v493 = vld [vmem:[%s51] sm:$0x1]
    %v494 = vld [vmem:[%s53] sm:$0x1]
    %v495 = vld [vmem:[%s55] sm:$0xf]
    %v496 = vld [vmem:[%s55 + $0x4] sm:$0xf]
    %v497 = vld [vmem:[%s55 + $0x8] sm:$0xf]
    %v498 = vld [vmem:[%s55 + $0xc] sm:$0xf]
    %v499 = vld [vmem:[%s57] sm:$0xf]
    %v500 = vld [vmem:[%s57 + $0x4] sm:$0xf]
    %v501 = vld [vmem:[%s57 + $0x8] sm:$0xf]
    %v502 = vld [vmem:[%s57 + $0xc] sm:$0xf]
    %v503 = vld [vmem:[%s59] sm:$0x1]
    %v504 = vld [vmem:[%s61] sm:$0x1]
    %v505 = vld [vmem:[%s63] sm:$0x3]
    %v506 = vld [vmem:[%s65] sm:$0xf]
    %v507 = vld [vmem:[%s65 + $0x4] sm:$0x3]
    %v508 = vld [vmem:[%s67] sm:$0x1]
    %v509 = vld [vmem:[%s69] sm:$0x1]
    %v510 = vld [vmem:[%s71] sm:$0x1]
    %v511 = vld [vmem:[%s73] sm:$0xf]
    %v512 = vld [vmem:[%s73 + $0x4] sm:$0xf]
    %v513 = vld [vmem:[%s73 + $0x8] sm:$0xf]
    %v514 = vld [vmem:[%s73 + $0xc] sm:$0xf]
    %v515 = vld [vmem:[%s75] sm:$0x1]
    %v516 = vld [vmem:[%s77] sm:$0xf]
    %v517 = vld [vmem:[%s77 + $0x4] sm:$0xf]
    %v518 = vld [vmem:[%s77 + $0x8] sm:$0xf]
    %v519 = vld [vmem:[%s77 + $0xc] sm:$0xf]
    %v520 = vld [vmem:[%s77 + $0x10] sm:$0xf]
    %v521 = vld [vmem:[%s77 + $0x14] sm:$0xf]
    %v522 = vld [vmem:[%s77 + $0x18] sm:$0xf]
    %v523 = vld [vmem:[%s77 + $0x1c] sm:$0xf]
    %v524 = vld [vmem:[#allocation2] sm:$0x1]
    %v525 = vld [vmem:[#allocation5] sm:$0x1]
    %v526 = vld [vmem:[#allocation7] sm:$0x1]
    %v527 = vld [vmem:[#allocation8] sm:$0x1]
    %v528 = vld [vmem:[%s87] sm:$0xf]
    %v529 = vld [vmem:[%s87 + $0x4] sm:$0xf]
    %v530 = vld [vmem:[%s87 + $0x8] sm:$0xf]
    %v531 = vld [vmem:[%s87 + $0xc] sm:$0xf]
    %v532 = vld [vmem:[%s89] sm:$0xf]
    %v533 = vld [vmem:[%s89 + $0x4] sm:$0xf]
    %v534 = vld [vmem:[%s89 + $0x8] sm:$0xf]
    %v535 = vld [vmem:[%s89 + $0xc] sm:$0xf]
    %v536 = vld [vmem:[#allocation10] sm:$0x1]
    %v537 = vld [vmem:[#allocation11] sm:$0x1]
    %v538 = vld [vmem:[#allocation13] sm:$0x1]
    %v539 = vld [vmem:[%s97] sm:$0xf]
    %v540 = vld [vmem:[%s97 + $0x4] sm:$0xf]
    %v541 = vld [vmem:[%s97 + $0x8] sm:$0xf]
    %v542 = vld [vmem:[%s97 + $0xc] sm:$0xf]
    %v543 = vld [vmem:[#allocation14] sm:$0x1]
    %v544 = vld [vmem:[%s101] sm:$0xf]
    %v545 = vld [vmem:[%s101 + $0x4] sm:$0xf]
    %v546 = vld [vmem:[%s101 + $0x8] sm:$0xf]
    %v547 = vld [vmem:[%s101 + $0xc] sm:$0xf]
    %v548 = vld [vmem:[%s101 + $0x10] sm:$0xf]
    %v549 = vld [vmem:[%s101 + $0x14] sm:$0xf]
    %v550 = vld [vmem:[%s101 + $0x18] sm:$0xf]
    %v551 = vld [vmem:[%s101 + $0x1c] sm:$0xf]
    %v552 = vld [vmem:[#allocation16] sm:$0x1]
    %v553 = vld [vmem:[#allocation17] sm:$0x1]
    %v554 = vld [vmem:[#allocation19] sm:$0x1]
    %v555 = vld [vmem:[#allocation20] sm:$0x1]
    %v556 = vld [vmem:[%s111] sm:$0xf]
    %v557 = vld [vmem:[%s111 + $0x4] sm:$0xf]
    %v558 = vld [vmem:[%s111 + $0x8] sm:$0xf]
    %v559 = vld [vmem:[%s111 + $0xc] sm:$0xf]
    %v560 = vld [vmem:[%s113] sm:$0xf]
    %v561 = vld [vmem:[%s113 + $0x4] sm:$0xf]
    %v562 = vld [vmem:[%s113 + $0x8] sm:$0xf]
    %v563 = vld [vmem:[%s113 + $0xc] sm:$0xf]
    %v564 = vld [vmem:[#allocation22] sm:$0x1]
    %v565 = vld [vmem:[#allocation23] sm:$0x1]
    %v566 = vld [vmem:[%s119] sm:$0x1]
    %v567 = vld [vmem:[%s121] sm:$0xf]
    %v568 = vld [vmem:[%s121 + $0x4] sm:$0xf]
    %v569 = vld [vmem:[%s121 + $0x8] sm:$0xf]
    %v570 = vld [vmem:[%s121 + $0xc] sm:$0xf]
    %v573 = vunpack.c.l.b16 %v453
    %v574 = vunpack.c.l.b16 %v454
    %v575 = vpack.c.b16 %v574, %v573
    %vm576 = vcmask 31744
    %v578 = vsel %vm576, %v575, 0
    %vm580 = vcmask 1041408
    %v582 = vsel %vm580, %v505, 0
    %584 = vmatpush.bf16.msra.mxu0 0
    %585 = vmatpush.bf16.msra.mxu0 0
    %586 = vmatpush.bf16.msra.mxu0 0
    %587 = vmatpush.bf16.msra.mxu0 0
    %588 = vmatpush.bf16.msra.mxu0 0
    %589 = vmatpush.bf16.msra.mxu0 0
    %590 = vmatpush.bf16.msra.mxu0 0
    %591 = vmatpush.bf16.msra.mxu0 %v582
    %592 = vmatmul.bf16.gmra.mxu0 %v578
    %v593 = vpop.f32.mrf.mxu0
    %v594 = vadd.f32 0.0, %v593
    %v595 = vpop.f32.mrf.mxu0
    %v596 = vadd.f32 0.0, %v595
    %597 = vdwg.mxu0
    %v600 = vunpack.c.l.b16 %v449
    %v601 = vunpack.c.l.b16 %v450
    %v602 = vpack.c.b16 %v601, %v600
    %v605 = vunpack.c.l.b16 %v506
    %v606 = vunpack.c.l.b16 %v507
    %v607 = vpack.c.b16 %v606, %v605
    %vm608 = vcmask 97280
    %v610 = vsel %vm608, %v602, 0
    %vm612 = vcmask 1045504
    %v614 = vsel %vm612, %v607, 0
    %616 = vmatpush.bf16.msra.mxu0 0
    %617 = vmatpush.bf16.msra.mxu0 0
    %618 = vmatpush.bf16.msra.mxu0 0
    %619 = vmatpush.bf16.msra.mxu0 0
    %620 = vmatpush.bf16.msra.mxu0 0
    %621 = vmatpush.bf16.msra.mxu0 0
    %622 = vmatpush.bf16.msra.mxu0 0
    %623 = vmatpush.bf16.msra.mxu0 %v614
    %624 = vmatmul.bf16.gmra.mxu0 %v610
    %v625 = vpop.f32.mrf.mxu0
    %v626 = vadd.f32 %v594, %v625
    %v627 = vpop.f32.mrf.mxu0
    %v628 = vadd.f32 %v596, %v627
    %629 = vdwg.mxu0
    %v630 = vadd.f32 %v626, %v445
    %v631 = vadd.f32 %v628, %v446
    %v632 = vpack.c.bf16 %v631, %v630
    %v634 = vperm.slane %v509, 0
    %v640 = vunpack.c.l.b16 %v532
    %v641 = vunpack.c.l.b16 %v533
    %v642 = vunpack.c.l.b16 %v534
    %v643 = vunpack.c.l.b16 %v535
    %v644 = vpack.c.b16 %v641, %v640
    %v645 = vpack.c.b16 %v643, %v642
    %vm648 = vcmask 261120
    %v650 = vsel %vm648, %v632, 0
    %652 = vmatpush.bf16.msra.mxu0 0
    %653 = vmatpush.bf16.msra.mxu0 0
    %654 = vmatpush.bf16.msra.mxu0 0
    %655 = vmatpush.bf16.msra.mxu0 0
    %656 = vmatpush.bf16.msra.mxu0 0
    %657 = vmatpush.bf16.msra.mxu0 0
    %658 = vmatpush.bf16.msra.mxu0 %v645
    %659 = vmatpush.bf16.msra.mxu0 %v644
    %660 = vmatmul.bf16.gmra.mxu0 %v650
    %v661 = vpop.f32.mrf.mxu0
    %v662 = vadd.f32 %v634, %v661
    %v663 = vpop.f32.mrf.mxu0
    %v664 = vadd.f32 %v634, %v663
    %665 = vdwg.mxu0
    %v666 = vpack.c.bf16 %v662, %v662
    %v667 = vpack.c.bf16 %v664, %v664
    %v669 = vunpack.c.l.b16 %v666
    %v670 = vpack.c.b16 %v669, %v669
    %671 = vrot.lane.b32.xlu0 %v670, 96
    %v672 = vpop.permute.xlu0 %671
    %vm673 = vcmask 64512
    %v675 = vsel %vm673, %v666, 0
    %v678 = vsel %vm673, %v672, 0
    %680 = vmatpush.bf16.xpose.msra.mxu0 0
    %681 = vmatpush.bf16.xpose.msra.mxu0 0
    %682 = vmatpush.bf16.xpose.msra.mxu0 0
    %683 = vmatpush.bf16.xpose.msra.mxu0 0
    %684 = vmatpush.bf16.xpose.msra.mxu0 0
    %685 = vmatpush.bf16.xpose.msra.mxu0 0
    %686 = vmatpush.bf16.xpose.msra.mxu0 0
    %687 = vmatpush.bf16.xpose.msra.mxu0 %v678
    %688 = vmatmul.bf16.gmra.mxu0 %v675
    %v689 = vpop.f32.mrf.mxu0
    %v690 = vadd.f32 0.0, %v689
    %v691 = vpop.f32.mrf.mxu0
    %692 = vdwg.mxu0
    %v694 = vunpack.c.l.b16 %v667
    %v695 = vpack.c.b16 %v694, %v694
    %696 = vrot.lane.b32.xlu0 %v695, 96
    %v697 = vpop.permute.xlu0 %696
    %v699 = vsel %vm673, %v667, 0
    %v702 = vsel %vm673, %v697, 0
    %704 = vmatpush.bf16.xpose.msra.mxu0 0
    %705 = vmatpush.bf16.xpose.msra.mxu0 0
    %706 = vmatpush.bf16.xpose.msra.mxu0 0
    %707 = vmatpush.bf16.xpose.msra.mxu0 0
    %708 = vmatpush.bf16.xpose.msra.mxu0 0
    %709 = vmatpush.bf16.xpose.msra.mxu0 0
    %710 = vmatpush.bf16.xpose.msra.mxu0 0
    %711 = vmatpush.bf16.xpose.msra.mxu0 %v702
    %712 = vmatmul.bf16.gmra.mxu0 %v699
    %v713 = vpop.f32.mrf.mxu0
    %v714 = vadd.f32 0.0, %v713
    %v715 = vpop.f32.mrf.mxu0
    %716 = vdwg.mxu0
    %v717 = vmul.f32 %v690, 0.35355338
    %v718 = vmul.f32 %v714, 0.35355338
    %v719 = vsel %vm673, %v717, -inf
    %720 = vmax.xlane.f32.xlu0 %v719
    %v721 = vpop.xlane.xlu0 %720
    %v722 = vsel %vm673, %v718, -inf
    %723 = vmax.xlane.f32.xlu0 %v722
    %v724 = vpop.xlane.xlu0 %723
    %v725 = vsub.f32 %v717, %v721
    %v726 = vsub.f32 %v718, %v724
    %v727 = vmul.f32 %v725, 1.442695
    %v728 = vpow.pop %v727
    %v729 = vmul.f32 %v726, 1.442695
    %v730 = vpow.pop %v729
    %v731 = vsel %vm673, %v728, 0.0
    %732 = vadd.xlane.f32.xlu0 %v731
    %v733 = vpop.xlane.xlu0 %732
    %v734 = vsel %vm673, %v730, 0.0
    %735 = vadd.xlane.f32.xlu0 %v734
    %v736 = vpop.xlane.xlu0 %735
    %v737 = vrcp.pop %v733
    %v738 = vrcp.pop %v736
    %v739 = vmul.f32 %v728, %v737
    %v740 = vmul.f32 %v730, %v738
    %v741 = vpack.c.bf16 %v739, %v739
    %v742 = vpack.c.bf16 %v740, %v740
    %743 = vrot.lane.b32.xlu0 %v670, 64
    %v744 = vpop.permute.xlu0 %743
    %v746 = vsel %vm673, %v741, 0
    %vm748 = vcmask 1043456
    %v750 = vsel %vm748, %v744, 0
    %752 = vmatpush.bf16.msra.mxu0 0
    %753 = vmatpush.bf16.msra.mxu0 0
    %754 = vmatpush.bf16.msra.mxu0 0
    %755 = vmatpush.bf16.msra.mxu0 0
    %756 = vmatpush.bf16.msra.mxu0 0
    %757 = vmatpush.bf16.msra.mxu0 0
    %758 = vmatpush.bf16.msra.mxu0 0
    %759 = vmatpush.bf16.msra.mxu0 %v750
    %760 = vmatmul.bf16.gmra.mxu0 %v746
    %v761 = vpop.f32.mrf.mxu0
    %v762 = vadd.f32 0.0, %v761
    %v763 = vpop.f32.mrf.mxu0
    %764 = vdwg.mxu0
    %765 = vrot.lane.b32.xlu0 %v695, 64
    %v766 = vpop.permute.xlu0 %765
    %v768 = vsel %vm673, %v742, 0
    %v771 = vsel %vm748, %v766, 0
    %773 = vmatpush.bf16.msra.mxu0 0
    %774 = vmatpush.bf16.msra.mxu0 0
    %775 = vmatpush.bf16.msra.mxu0 0
    %776 = vmatpush.bf16.msra.mxu0 0
    %777 = vmatpush.bf16.msra.mxu0 0
    %778 = vmatpush.bf16.msra.mxu0 0
    %779 = vmatpush.bf16.msra.mxu0 0
    %780 = vmatpush.bf16.msra.mxu0 %v771
    %781 = vmatmul.bf16.gmra.mxu0 %v768
    %v782 = vpop.f32.mrf.mxu0
    %v783 = vadd.f32 0.0, %v782
    %v784 = vpop.f32.mrf.mxu0
    %785 = vdwg.mxu0
    %786 = vrot.lane.b32.xlu0 %v670, 120
    %v787 = vpop.permute.xlu0 %786
    %788 = vrot.lane.b32.xlu0 %v670, 88
    %v789 = vpop.permute.xlu0 %788
    %v791 = vsel %vm673, %v787, 0
    %v794 = vsel %vm673, %v789, 0
    %796 = vmatpush.bf16.xpose.msra.mxu0 0
    %797 = vmatpush.bf16.xpose.msra.mxu0 0
    %798 = vmatpush.bf16.xpose.msra.mxu0 0
    %799 = vmatpush.bf16.xpose.msra.mxu0 0
    %800 = vmatpush.bf16.xpose.msra.mxu0 0
    %801 = vmatpush.bf16.xpose.msra.mxu0 0
    %802 = vmatpush.bf16.xpose.msra.mxu0 0
    %803 = vmatpush.bf16.xpose.msra.mxu0 %v794
    %804 = vmatmul.bf16.gmra.mxu0 %v791
    %v805 = vpop.f32.mrf.mxu0
    %v806 = vadd.f32 0.0, %v805
    %v807 = vpop.f32.mrf.mxu0
    %808 = vdwg.mxu0
    %809 = vrot.lane.b32.xlu0 %v695, 120
    %v810 = vpop.permute.xlu0 %809
    %811 = vrot.lane.b32.xlu0 %v695, 88
    %v812 = vpop.permute.xlu0 %811
    %v814 = vsel %vm673, %v810, 0
    %v817 = vsel %vm673, %v812, 0
    %819 = vmatpush.bf16.xpose.msra.mxu0 0
    %820 = vmatpush.bf16.xpose.msra.mxu0 0
    %821 = vmatpush.bf16.xpose.msra.mxu0 0
    %822 = vmatpush.bf16.xpose.msra.mxu0 0
    %823 = vmatpush.bf16.xpose.msra.mxu0 0
    %824 = vmatpush.bf16.xpose.msra.mxu0 0
    %825 = vmatpush.bf16.xpose.msra.mxu0 0
    %826 = vmatpush.bf16.xpose.msra.mxu0 %v817
    %827 = vmatmul.bf16.gmra.mxu0 %v814
    %v828 = vpop.f32.mrf.mxu0
    %v829 = vadd.f32 0.0, %v828
    %v830 = vpop.f32.mrf.mxu0
    %831 = vdwg.mxu0
    %v832 = vmul.f32 %v806, 0.35355338
    %v833 = vmul.f32 %v829, 0.35355338
    %v834 = vsel %vm673, %v832, -inf
    %835 = vmax.xlane.f32.xlu0 %v834
    %v836 = vpop.xlane.xlu0 %835
    %v837 = vsel %vm673, %v833, -inf
    %838 = vmax.xlane.f32.xlu0 %v837
    %v839 = vpop.xlane.xlu0 %838
    %v840 = vsub.f32 %v832, %v836
    %v841 = vsub.f32 %v833, %v839
    %v842 = vmul.f32 %v840, 1.442695
    %v843 = vpow.pop %v842
    %v844 = vmul.f32 %v841, 1.442695
    %v845 = vpow.pop %v844
    %v846 = vsel %vm673, %v843, 0.0
    %847 = vadd.xlane.f32.xlu0 %v846
    %v848 = vpop.xlane.xlu0 %847
    %v849 = vsel %vm673, %v845, 0.0
    %850 = vadd.xlane.f32.xlu0 %v849
    %v851 = vpop.xlane.xlu0 %850
    %v852 = vrcp.pop %v848
    %v853 = vrcp.pop %v851
    %v854 = vmul.f32 %v843, %v852
    %v855 = vmul.f32 %v845, %v853
    %v856 = vpack.c.bf16 %v854, %v854
    %v857 = vpack.c.bf16 %v855, %v855
    %858 = vrot.lane.b32.xlu0 %v670, 56
    %v859 = vpop.permute.xlu0 %858
    %v861 = vsel %vm673, %v856, 0
    %v864 = vsel %vm748, %v859, 0
    %866 = vmatpush.bf16.msra.mxu0 0
    %867 = vmatpush.bf16.msra.mxu0 0
    %868 = vmatpush.bf16.msra.mxu0 0
    %869 = vmatpush.bf16.msra.mxu0 0
    %870 = vmatpush.bf16.msra.mxu0 0
    %871 = vmatpush.bf16.msra.mxu0 0
    %872 = vmatpush.bf16.msra.mxu0 0
    %873 = vmatpush.bf16.msra.mxu0 %v864
    %874 = vmatmul.bf16.gmra.mxu0 %v861
    %v875 = vpop.f32.mrf.mxu0
    %v876 = vadd.f32 0.0, %v875
    %v877 = vpop.f32.mrf.mxu0
    %878 = vdwg.mxu0
    %879 = vrot.lane.b32.xlu0 %v695, 56
    %v880 = vpop.permute.xlu0 %879
    %v882 = vsel %vm673, %v857, 0
    %v885 = vsel %vm748, %v880, 0
    %887 = vmatpush.bf16.msra.mxu0 0
    %888 = vmatpush.bf16.msra.mxu0 0
    %889 = vmatpush.bf16.msra.mxu0 0
    %890 = vmatpush.bf16.msra.mxu0 0
    %891 = vmatpush.bf16.msra.mxu0 0
    %892 = vmatpush.bf16.msra.mxu0 0
    %893 = vmatpush.bf16.msra.mxu0 0
    %894 = vmatpush.bf16.msra.mxu0 %v885
    %895 = vmatmul.bf16.gmra.mxu0 %v882
    %v896 = vpop.f32.mrf.mxu0
    %v897 = vadd.f32 0.0, %v896
    %v898 = vpop.f32.mrf.mxu0
    %899 = vdwg.mxu0
    %900 = vrot.lane.b32.xlu0 %v670, 112
    %v901 = vpop.permute.xlu0 %900
    %902 = vrot.lane.b32.xlu0 %v670, 80
    %v903 = vpop.permute.xlu0 %902
    %v905 = vsel %vm673, %v901, 0
    %v908 = vsel %vm673, %v903, 0
    %910 = vmatpush.bf16.xpose.msra.mxu0 0
    %911 = vmatpush.bf16.xpose.msra.mxu0 0
    %912 = vmatpush.bf16.xpose.msra.mxu0 0
    %913 = vmatpush.bf16.xpose.msra.mxu0 0
    %914 = vmatpush.bf16.xpose.msra.mxu0 0
    %915 = vmatpush.bf16.xpose.msra.mxu0 0
    %916 = vmatpush.bf16.xpose.msra.mxu0 0
    %917 = vmatpush.bf16.xpose.msra.mxu0 %v908
    %918 = vmatmul.bf16.gmra.mxu0 %v905
    %v919 = vpop.f32.mrf.mxu0
    %v920 = vadd.f32 0.0, %v919
    %v921 = vpop.f32.mrf.mxu0
    %922 = vdwg.mxu0
    %923 = vrot.lane.b32.xlu0 %v695, 112
    %v924 = vpop.permute.xlu0 %923
    %925 = vrot.lane.b32.xlu0 %v695, 80
    %v926 = vpop.permute.xlu0 %925
    %v928 = vsel %vm673, %v924, 0
    %v931 = vsel %vm673, %v926, 0
    %933 = vmatpush.bf16.xpose.msra.mxu0 0
    %934 = vmatpush.bf16.xpose.msra.mxu0 0
    %935 = vmatpush.bf16.xpose.msra.mxu0 0
    %936 = vmatpush.bf16.xpose.msra.mxu0 0
    %937 = vmatpush.bf16.xpose.msra.mxu0 0
    %938 = vmatpush.bf16.xpose.msra.mxu0 0
    %939 = vmatpush.bf16.xpose.msra.mxu0 0
    %940 = vmatpush.bf16.xpose.msra.mxu0 %v931
    %941 = vmatmul.bf16.gmra.mxu0 %v928
    %v942 = vpop.f32.mrf.mxu0
    %v943 = vadd.f32 0.0, %v942
    %v944 = vpop.f32.mrf.mxu0
    %945 = vdwg.mxu0
    %v946 = vmul.f32 %v920, 0.35355338
    %v947 = vmul.f32 %v943, 0.35355338
    %v948 = vsel %vm673, %v946, -inf
    %949 = vmax.xlane.f32.xlu0 %v948
    %v950 = vpop.xlane.xlu0 %949
    %v951 = vsel %vm673, %v947, -inf
    %952 = vmax.xlane.f32.xlu0 %v951
    %v953 = vpop.xlane.xlu0 %952
    %v954 = vsub.f32 %v946, %v950
    %v955 = vsub.f32 %v947, %v953
    %v956 = vmul.f32 %v954, 1.442695
    %v957 = vpow.pop %v956
    %v958 = vmul.f32 %v955, 1.442695
    %v959 = vpow.pop %v958
    %v960 = vsel %vm673, %v957, 0.0
    %961 = vadd.xlane.f32.xlu0 %v960
    %v962 = vpop.xlane.xlu0 %961
    %v963 = vsel %vm673, %v959, 0.0
    %964 = vadd.xlane.f32.xlu0 %v963
    %v965 = vpop.xlane.xlu0 %964
    %v966 = vrcp.pop %v962
    %v967 = vrcp.pop %v965
    %v968 = vmul.f32 %v957, %v966
    %v969 = vmul.f32 %v959, %v967
    %v970 = vpack.c.bf16 %v968, %v968
    %v971 = vpack.c.bf16 %v969, %v969
    %972 = vrot.lane.b32.xlu0 %v670, 48
    %v973 = vpop.permute.xlu0 %972
    %v975 = vsel %vm673, %v970, 0
    %v978 = vsel %vm748, %v973, 0
    %980 = vmatpush.bf16.msra.mxu0 0
    %981 = vmatpush.bf16.msra.mxu0 0
    %982 = vmatpush.bf16.msra.mxu0 0
    %983 = vmatpush.bf16.msra.mxu0 0
    %984 = vmatpush.bf16.msra.mxu0 0
    %985 = vmatpush.bf16.msra.mxu0 0
    %986 = vmatpush.bf16.msra.mxu0 0
    %987 = vmatpush.bf16.msra.mxu0 %v978
    %988 = vmatmul.bf16.gmra.mxu0 %v975
    %v989 = vpop.f32.mrf.mxu0
    %v990 = vadd.f32 0.0, %v989
    %v991 = vpop.f32.mrf.mxu0
    %992 = vdwg.mxu0
    %993 = vrot.lane.b32.xlu0 %v695, 48
    %v994 = vpop.permute.xlu0 %993
    %v996 = vsel %vm673, %v971, 0
    %v999 = vsel %vm748, %v994, 0
    %1001 = vmatpush.bf16.msra.mxu0 0
    %1002 = vmatpush.bf16.msra.mxu0 0
    %1003 = vmatpush.bf16.msra.mxu0 0
    %1004 = vmatpush.bf16.msra.mxu0 0
    %1005 = vmatpush.bf16.msra.mxu0 0
    %1006 = vmatpush.bf16.msra.mxu0 0
    %1007 = vmatpush.bf16.msra.mxu0 0
    %1008 = vmatpush.bf16.msra.mxu0 %v999
    %1009 = vmatmul.bf16.gmra.mxu0 %v996
    %v1010 = vpop.f32.mrf.mxu0
    %v1011 = vadd.f32 0.0, %v1010
    %v1012 = vpop.f32.mrf.mxu0
    %1013 = vdwg.mxu0
    %1014 = vrot.lane.b32.xlu0 %v670, 104
    %v1015 = vpop.permute.xlu0 %1014
    %1016 = vrot.lane.b32.xlu0 %v670, 72
    %v1017 = vpop.permute.xlu0 %1016
    %v1019 = vsel %vm673, %v1015, 0
    %v1022 = vsel %vm673, %v1017, 0
    %1024 = vmatpush.bf16.xpose.msra.mxu0 0
    %1025 = vmatpush.bf16.xpose.msra.mxu0 0
    %1026 = vmatpush.bf16.xpose.msra.mxu0 0
    %1027 = vmatpush.bf16.xpose.msra.mxu0 0
    %1028 = vmatpush.bf16.xpose.msra.mxu0 0
    %1029 = vmatpush.bf16.xpose.msra.mxu0 0
    %1030 = vmatpush.bf16.xpose.msra.mxu0 0
    %1031 = vmatpush.bf16.xpose.msra.mxu0 %v1022
    %1032 = vmatmul.bf16.gmra.mxu0 %v1019
    %v1033 = vpop.f32.mrf.mxu0
    %v1034 = vadd.f32 0.0, %v1033
    %v1035 = vpop.f32.mrf.mxu0
    %1036 = vdwg.mxu0
    %1037 = vrot.lane.b32.xlu0 %v695, 104
    %v1038 = vpop.permute.xlu0 %1037
    %1039 = vrot.lane.b32.xlu0 %v695, 72
    %v1040 = vpop.permute.xlu0 %1039
    %v1042 = vsel %vm673, %v1038, 0
    %v1045 = vsel %vm673, %v1040, 0
    %1047 = vmatpush.bf16.xpose.msra.mxu0 0
    %1048 = vmatpush.bf16.xpose.msra.mxu0 0
    %1049 = vmatpush.bf16.xpose.msra.mxu0 0
    %1050 = vmatpush.bf16.xpose.msra.mxu0 0
    %1051 = vmatpush.bf16.xpose.msra.mxu0 0
    %1052 = vmatpush.bf16.xpose.msra.mxu0 0
    %1053 = vmatpush.bf16.xpose.msra.mxu0 0
    %1054 = vmatpush.bf16.xpose.msra.mxu0 %v1045
    %1055 = vmatmul.bf16.gmra.mxu0 %v1042
    %v1056 = vpop.f32.mrf.mxu0
    %v1057 = vadd.f32 0.0, %v1056
    %v1058 = vpop.f32.mrf.mxu0
    %1059 = vdwg.mxu0
    %v1060 = vmul.f32 %v1034, 0.35355338
    %v1061 = vmul.f32 %v1057, 0.35355338
    %v1062 = vsel %vm673, %v1060, -inf
    %1063 = vmax.xlane.f32.xlu0 %v1062
    %v1064 = vpop.xlane.xlu0 %1063
    %v1065 = vsel %vm673, %v1061, -inf
    %1066 = vmax.xlane.f32.xlu0 %v1065
    %v1067 = vpop.xlane.xlu0 %1066
    %v1068 = vsub.f32 %v1060, %v1064
    %v1069 = vsub.f32 %v1061, %v1067
    %v1070 = vmul.f32 %v1068, 1.442695
    %v1071 = vpow.pop %v1070
    %v1072 = vmul.f32 %v1069, 1.442695
    %v1073 = vpow.pop %v1072
    %v1074 = vsel %vm673, %v1071, 0.0
    %1075 = vadd.xlane.f32.xlu0 %v1074
    %v1076 = vpop.xlane.xlu0 %1075
    %v1077 = vsel %vm673, %v1073, 0.0
    %1078 = vadd.xlane.f32.xlu0 %v1077
    %v1079 = vpop.xlane.xlu0 %1078
    %v1080 = vrcp.pop %v1076
    %v1081 = vrcp.pop %v1079
    %v1082 = vmul.f32 %v1071, %v1080
    %v1083 = vmul.f32 %v1073, %v1081
    %v1084 = vpack.c.bf16 %v1082, %v1082
    %v1085 = vpack.c.bf16 %v1083, %v1083
    %1086 = vrot.lane.b32.xlu0 %v670, 40
    %v1087 = vpop.permute.xlu0 %1086
    %v1089 = vsel %vm673, %v1084, 0
    %v1092 = vsel %vm748, %v1087, 0
    %1094 = vmatpush.bf16.msra.mxu0 0
    %1095 = vmatpush.bf16.msra.mxu0 0
    %1096 = vmatpush.bf16.msra.mxu0 0
    %1097 = vmatpush.bf16.msra.mxu0 0
    %1098 = vmatpush.bf16.msra.mxu0 0
    %1099 = vmatpush.bf16.msra.mxu0 0
    %1100 = vmatpush.bf16.msra.mxu0 0
    %1101 = vmatpush.bf16.msra.mxu0 %v1092
    %1102 = vmatmul.bf16.gmra.mxu0 %v1089
    %v1103 = vpop.f32.mrf.mxu0
    %v1104 = vadd.f32 0.0, %v1103
    %v1105 = vpop.f32.mrf.mxu0
    %1106 = vdwg.mxu0
    %1107 = vrot.lane.b32.xlu0 %v695, 40
    %v1108 = vpop.permute.xlu0 %1107
    %v1110 = vsel %vm673, %v1085, 0
    %v1113 = vsel %vm748, %v1108, 0
    %1115 = vmatpush.bf16.msra.mxu0 0
    %1116 = vmatpush.bf16.msra.mxu0 0
    %1117 = vmatpush.bf16.msra.mxu0 0
    %1118 = vmatpush.bf16.msra.mxu0 0
    %1119 = vmatpush.bf16.msra.mxu0 0
    %1120 = vmatpush.bf16.msra.mxu0 0
    %1121 = vmatpush.bf16.msra.mxu0 0
    %1122 = vmatpush.bf16.msra.mxu0 %v1113
    %1123 = vmatmul.bf16.gmra.mxu0 %v1110
    %v1124 = vpop.f32.mrf.mxu0
    %v1125 = vadd.f32 0.0, %v1124
    %v1126 = vpop.f32.mrf.mxu0
    %1127 = vdwg.mxu0
    %1130 = vrot.lane.b32.xlu0 %v876, 8
    %v1131 = vpop.permute.xlu0 %1130
    %1132 = vrot.lane.b32.xlu0 %v897, 8
    %v1133 = vpop.permute.xlu0 %1132
    %1138 = vrot.lane.b32.xlu0 %v990, 16
    %v1139 = vpop.permute.xlu0 %1138
    %1140 = vrot.lane.b32.xlu0 %v1011, 16
    %v1141 = vpop.permute.xlu0 %1140
    %1146 = vrot.lane.b32.xlu0 %v1104, 24
    %v1147 = vpop.permute.xlu0 %1146
    %1148 = vrot.lane.b32.xlu0 %v1125, 24
    %v1149 = vpop.permute.xlu0 %1148
    %v1152 = vsel %vm673, %v762, %v1131
    %v1153 = vsel %vm673, %v783, %v1133
    %vm1154 = vcmask 130048
    %v1155 = vsel %vm1154, %v1152, %v1139
    %v1156 = vsel %vm1154, %v1153, %v1141
    %vm1157 = vcmask 195584
    %v1158 = vsel %vm1157, %v1155, %v1147
    %v1159 = vsel %vm1157, %v1156, %v1149
    %v1160 = vpack.c.bf16 %v1159, %v1158
    %v1162 = vperm.slane %v508, 0
    %v1168 = vunpack.c.l.b16 %v528
    %v1169 = vunpack.c.l.b16 %v529
    %v1170 = vunpack.c.l.b16 %v530
    %v1171 = vunpack.c.l.b16 %v531
    %v1172 = vpack.c.b16 %v1169, %v1168
    %v1173 = vpack.c.b16 %v1171, %v1170
    %v1177 = vsel %vm648, %v1160, 0
    %1179 = vmatpush.bf16.msra.mxu0 0
    %1180 = vmatpush.bf16.msra.mxu0 0
    %1181 = vmatpush.bf16.msra.mxu0 0
    %1182 = vmatpush.bf16.msra.mxu0 0
    %1183 = vmatpush.bf16.msra.mxu0 0
    %1184 = vmatpush.bf16.msra.mxu0 0
    %1185 = vmatpush.bf16.msra.mxu0 %v1173
    %1186 = vmatpush.bf16.msra.mxu0 %v1172
    %1187 = vmatmul.bf16.gmra.mxu0 %v1177
    %v1188 = vpop.f32.mrf.mxu0
    %v1189 = vadd.f32 %v1162, %v1188
    %v1190 = vpop.f32.mrf.mxu0
    %v1191 = vadd.f32 %v1162, %v1190
    %1192 = vdwg.mxu0
    %v1193 = vadd.f32 %v630, %v1189
    %v1194 = vadd.f32 %v631, %v1191
    %v1195 = vsel %vm648, %v1193, 0.0
    %1196 = vadd.xlane.f32.xlu0 %v1195
    %v1197 = vpop.xlane.xlu0 %1196
    %v1198 = vsel %vm648, %v1194, 0.0
    %1199 = vadd.xlane.f32.xlu0 %v1198
    %v1200 = vpop.xlane.xlu0 %1199
    %v1201 = vrcp.pop 32.0
    %v1202 = vmul.f32 32.0, %v1201
    %v1203 = vsub.f32 1.0, %v1202
    %v1204 = vmul.f32 %v1201, %v1203
    %v1205 = vadd.f32 %v1201, %v1204
    %vm1206 = vweird.f32 %v1201
    %v1207 = vsel %vm1206, %v1201, %v1205
    %v1208 = vmul.f32 %v1197, %v1207
    %v1209 = vmul.f32 %v1200, %v1207
    %v1210 = vsub.f32 %v1193, %v1208
    %v1211 = vsub.f32 %v1194, %v1209
    %v1212 = vmul.f32 %v1210, %v1210
    %v1213 = vmul.f32 %v1211, %v1211
    %v1214 = vsel %vm648, %v1212, 0.0
    %1215 = vadd.xlane.f32.xlu0 %v1214
    %v1216 = vpop.xlane.xlu0 %1215
    %v1217 = vsel %vm648, %v1213, 0.0
    %1218 = vadd.xlane.f32.xlu0 %v1217
    %v1219 = vpop.xlane.xlu0 %1218
    %v1220 = vmul.f32 %v1216, %v1207
    %v1221 = vmul.f32 %v1219, %v1207
    %v1222 = vadd.f32 %v1220, 1e-05
    %v1223 = vadd.f32 %v1221, 1e-05
    %v1224 = vrsqrt.pop %v1222
    %v1225 = vmul.f32 %v1224, %v1222
    %v1226 = vmul.f32 %v1225, %v1224
    %v1227 = vmul.f32 0.5, %v1226
    %v1228 = vsub.f32 1.5, %v1227
    %v1229 = vmul.f32 %v1224, %v1228
    %vm1230 = vweird.f32 %v1222
    %vm1231 = vweird.f32 %v1224
    %vm1232 = vmor %vm1230, %vm1231
    %v1233 = vsel %vm1232, %v1224, %v1229
    %v1234 = vrsqrt.pop %v1223
    %v1235 = vmul.f32 %v1234, %v1223
    %v1236 = vmul.f32 %v1235, %v1234
    %v1237 = vmul.f32 0.5, %v1236
    %v1238 = vsub.f32 1.5, %v1237
    %v1239 = vmul.f32 %v1234, %v1238
    %vm1240 = vweird.f32 %v1223
    %vm1241 = vweird.f32 %v1234
    %vm1242 = vmor %vm1240, %vm1241
    %v1243 = vsel %vm1242, %v1234, %v1239
    %v1244 = vmul.f32 %v1210, %v1233
    %v1245 = vmul.f32 %v1211, %v1243
    %v1247 = vperm.slane %v525, 0
    %v1249 = vmul.f32 %v1244, %v1247
    %v1250 = vmul.f32 %v1245, %v1247
    %v1252 = vperm.slane %v524, 0
    %v1254 = vadd.f32 %v1249, %v1252
    %v1255 = vadd.f32 %v1250, %v1252
    %v1256 = vpack.c.bf16 %v1255, %v1254
    %v1258 = vperm.slane %v510, 0
    %v1264 = vunpack.c.l.b16 %v511
    %v1265 = vunpack.c.l.b16 %v512
    %v1266 = vunpack.c.l.b16 %v513
    %v1267 = vunpack.c.l.b16 %v514
    %v1268 = vpack.c.b16 %v1265, %v1264
    %v1269 = vpack.c.b16 %v1267, %v1266
    %v1273 = vsel %vm648, %v1256, 0
    %1275 = vmatpush.bf16.msra.mxu0 0
    %1276 = vmatpush.bf16.msra.mxu0 0
    %1277 = vmatpush.bf16.msra.mxu0 0
    %1278 = vmatpush.bf16.msra.mxu0 0
    %1279 = vmatpush.bf16.msra.mxu0 0
    %1280 = vmatpush.bf16.msra.mxu0 0
    %1281 = vmatpush.bf16.msra.mxu0 %v1269
    %1282 = vmatpush.bf16.msra.mxu0 %v1268
    %1283 = vmatmul.bf16.gmra.mxu0 %v1273
    %v1284 = vpop.f32.mrf.mxu0
    %v1285 = vadd.f32 %v1258, %v1284
    %v1286 = vpop.f32.mrf.mxu0
    %v1287 = vadd.f32 %v1258, %v1286
    %1288 = vdwg.mxu0
    %v1289 = vmax.f32 %v1285, 0.0
    %v1290 = vmax.f32 %v1287, 0.0
    %v1291 = vpack.c.bf16 %v1290, %v1289
    %v1293 = vperm.slane %v515, 0
    %v1303 = vunpack.c.l.b16 %v516
    %v1304 = vunpack.c.l.b16 %v517
    %v1305 = vunpack.c.l.b16 %v518
    %v1306 = vunpack.c.l.b16 %v519
    %v1307 = vunpack.c.l.b16 %v520
    %v1308 = vunpack.c.l.b16 %v521
    %v1309 = vunpack.c.l.b16 %v522
    %v1310 = vunpack.c.l.b16 %v523
    %v1311 = vpack.c.b16 %v1304, %v1303
    %v1312 = vpack.c.b16 %v1306, %v1305
    %v1313 = vpack.c.b16 %v1308, %v1307
    %v1314 = vpack.c.b16 %v1310, %v1309
    %vm1319 = vcmask 523264
    %v1321 = vsel %vm1319, %v1291, 0
    %1323 = vmatpush.bf16.msra.mxu0 0
    %1324 = vmatpush.bf16.msra.mxu0 0
    %1325 = vmatpush.bf16.msra.mxu0 0
    %1326 = vmatpush.bf16.msra.mxu0 0
    %1327 = vmatpush.bf16.msra.mxu0 %v1314
    %1328 = vmatpush.bf16.msra.mxu0 %v1313
    %1329 = vmatpush.bf16.msra.mxu0 %v1312
    %1330 = vmatpush.bf16.msra.mxu0 %v1311
    %1331 = vmatmul.bf16.gmra.mxu0 %v1321
    %v1332 = vpop.f32.mrf.mxu0
    %v1333 = vadd.f32 %v1293, %v1332
    %v1334 = vpop.f32.mrf.mxu0
    %v1335 = vadd.f32 %v1293, %v1334
    %1336 = vdwg.mxu0
    %v1337 = vadd.f32 %v1254, %v1333
    %v1338 = vadd.f32 %v1255, %v1335
    %v1339 = vsel %vm648, %v1337, 0.0
    %1340 = vadd.xlane.f32.xlu0 %v1339
    %v1341 = vpop.xlane.xlu0 %1340
    %v1342 = vsel %vm648, %v1338, 0.0
    %1343 = vadd.xlane.f32.xlu0 %v1342
    %v1344 = vpop.xlane.xlu0 %1343
    %v1345 = vmul.f32 %v1341, %v1207
    %v1346 = vmul.f32 %v1344, %v1207
    %v1347 = vsub.f32 %v1337, %v1345
    %v1348 = vsub.f32 %v1338, %v1346
    %v1349 = vmul.f32 %v1347, %v1347
    %v1350 = vmul.f32 %v1348, %v1348
    %v1351 = vsel %vm648, %v1349, 0.0
    %1352 = vadd.xlane.f32.xlu0 %v1351
    %v1353 = vpop.xlane.xlu0 %1352
    %v1354 = vsel %vm648, %v1350, 0.0
    %1355 = vadd.xlane.f32.xlu0 %v1354
    %v1356 = vpop.xlane.xlu0 %1355
    %v1357 = vmul.f32 %v1353, %v1207
    %v1358 = vmul.f32 %v1356, %v1207
    %v1359 = vadd.f32 %v1357, 1e-05
    %v1360 = vadd.f32 %v1358, 1e-05
    %v1361 = vrsqrt.pop %v1359
    %v1362 = vmul.f32 %v1361, %v1359
    %v1363 = vmul.f32 %v1362, %v1361
    %v1364 = vmul.f32 0.5, %v1363
    %v1365 = vsub.f32 1.5, %v1364
    %v1366 = vmul.f32 %v1361, %v1365
    %vm1367 = vweird.f32 %v1359
    %vm1368 = vweird.f32 %v1361
    %vm1369 = vmor %vm1367, %vm1368
    %v1370 = vsel %vm1369, %v1361, %v1366
    %v1371 = vrsqrt.pop %v1360
    %v1372 = vmul.f32 %v1371, %v1360
    %v1373 = vmul.f32 %v1372, %v1371
    %v1374 = vmul.f32 0.5, %v1373
    %v1375 = vsub.f32 1.5, %v1374
    %v1376 = vmul.f32 %v1371, %v1375
    %vm1377 = vweird.f32 %v1360
    %vm1378 = vweird.f32 %v1371
    %vm1379 = vmor %vm1377, %vm1378
    %v1380 = vsel %vm1379, %v1371, %v1376
    %v1381 = vmul.f32 %v1347, %v1370
    %v1382 = vmul.f32 %v1348, %v1380
    %v1384 = vperm.slane %v527, 0
    %v1386 = vmul.f32 %v1381, %v1384
    %v1387 = vmul.f32 %v1382, %v1384
    %v1389 = vperm.slane %v526, 0
    %v1391 = vadd.f32 %v1386, %v1389
    %v1392 = vadd.f32 %v1387, %v1389
    %v1393 = vpack.c.bf16 %v1392, %v1391
    %v1395 = vperm.slane %v537, 0
    %v1401 = vunpack.c.l.b16 %v560
    %v1402 = vunpack.c.l.b16 %v561
    %v1403 = vunpack.c.l.b16 %v562
    %v1404 = vunpack.c.l.b16 %v563
    %v1405 = vpack.c.b16 %v1402, %v1401
    %v1406 = vpack.c.b16 %v1404, %v1403
    %v1410 = vsel %vm648, %v1393, 0
    %1412 = vmatpush.bf16.msra.mxu0 0
    %1413 = vmatpush.bf16.msra.mxu0 0
    %1414 = vmatpush.bf16.msra.mxu0 0
    %1415 = vmatpush.bf16.msra.mxu0 0
    %1416 = vmatpush.bf16.msra.mxu0 0
    %1417 = vmatpush.bf16.msra.mxu0 0
    %1418 = vmatpush.bf16.msra.mxu0 %v1406
    %1419 = vmatpush.bf16.msra.mxu0 %v1405
    %1420 = vmatmul.bf16.gmra.mxu0 %v1410
    %v1421 = vpop.f32.mrf.mxu0
    %v1422 = vadd.f32 %v1395, %v1421
    %v1423 = vpop.f32.mrf.mxu0
    %v1424 = vadd.f32 %v1395, %v1423
    %1425 = vdwg.mxu0
    %v1426 = vpack.c.bf16 %v1422, %v1422
    %v1427 = vpack.c.bf16 %v1424, %v1424
    %v1429 = vunpack.c.l.b16 %v1426
    %v1430 = vpack.c.b16 %v1429, %v1429
    %1431 = vrot.lane.b32.xlu0 %v1430, 96
    %v1432 = vpop.permute.xlu0 %1431
    %v1434 = vsel %vm673, %v1426, 0
    %v1437 = vsel %vm673, %v1432, 0
    %1439 = vmatpush.bf16.xpose.msra.mxu0 0
    %1440 = vmatpush.bf16.xpose.msra.mxu0 0
    %1441 = vmatpush.bf16.xpose.msra.mxu0 0
    %1442 = vmatpush.bf16.xpose.msra.mxu0 0
    %1443 = vmatpush.bf16.xpose.msra.mxu0 0
    %1444 = vmatpush.bf16.xpose.msra.mxu0 0
    %1445 = vmatpush.bf16.xpose.msra.mxu0 0
    %1446 = vmatpush.bf16.xpose.msra.mxu0 %v1437
    %1447 = vmatmul.bf16.gmra.mxu0 %v1434
    %v1448 = vpop.f32.mrf.mxu0
    %v1449 = vadd.f32 0.0, %v1448
    %v1450 = vpop.f32.mrf.mxu0
    %1451 = vdwg.mxu0
    %v1453 = vunpack.c.l.b16 %v1427
    %v1454 = vpack.c.b16 %v1453, %v1453
    %1455 = vrot.lane.b32.xlu0 %v1454, 96
    %v1456 = vpop.permute.xlu0 %1455
    %v1458 = vsel %vm673, %v1427, 0
    %v1461 = vsel %vm673, %v1456, 0
    %1463 = vmatpush.bf16.xpose.msra.mxu0 0
    %1464 = vmatpush.bf16.xpose.msra.mxu0 0
    %1465 = vmatpush.bf16.xpose.msra.mxu0 0
    %1466 = vmatpush.bf16.xpose.msra.mxu0 0
    %1467 = vmatpush.bf16.xpose.msra.mxu0 0
    %1468 = vmatpush.bf16.xpose.msra.mxu0 0
    %1469 = vmatpush.bf16.xpose.msra.mxu0 0
    %1470 = vmatpush.bf16.xpose.msra.mxu0 %v1461
    %1471 = vmatmul.bf16.gmra.mxu0 %v1458
    %v1472 = vpop.f32.mrf.mxu0
    %v1473 = vadd.f32 0.0, %v1472
    %v1474 = vpop.f32.mrf.mxu0
    %1475 = vdwg.mxu0
    %v1476 = vmul.f32 %v1449, 0.35355338
    %v1477 = vmul.f32 %v1473, 0.35355338
    %v1478 = vsel %vm673, %v1476, -inf
    %1479 = vmax.xlane.f32.xlu0 %v1478
    %v1480 = vpop.xlane.xlu0 %1479
    %v1481 = vsel %vm673, %v1477, -inf
    %1482 = vmax.xlane.f32.xlu0 %v1481
    %v1483 = vpop.xlane.xlu0 %1482
    %v1484 = vsub.f32 %v1476, %v1480
    %v1485 = vsub.f32 %v1477, %v1483
    %v1486 = vmul.f32 %v1484, 1.442695
    %v1487 = vpow.pop %v1486
    %v1488 = vmul.f32 %v1485, 1.442695
    %v1489 = vpow.pop %v1488
    %v1490 = vsel %vm673, %v1487, 0.0
    %1491 = vadd.xlane.f32.xlu0 %v1490
    %v1492 = vpop.xlane.xlu0 %1491
    %v1493 = vsel %vm673, %v1489, 0.0
    %1494 = vadd.xlane.f32.xlu0 %v1493
    %v1495 = vpop.xlane.xlu0 %1494
    %v1496 = vrcp.pop %v1492
    %v1497 = vrcp.pop %v1495
    %v1498 = vmul.f32 %v1487, %v1496
    %v1499 = vmul.f32 %v1489, %v1497
    %v1500 = vpack.c.bf16 %v1498, %v1498
    %v1501 = vpack.c.bf16 %v1499, %v1499
    %1502 = vrot.lane.b32.xlu0 %v1430, 64
    %v1503 = vpop.permute.xlu0 %1502
    %v1505 = vsel %vm673, %v1500, 0
    %v1508 = vsel %vm748, %v1503, 0
    %1510 = vmatpush.bf16.msra.mxu0 0
    %1511 = vmatpush.bf16.msra.mxu0 0
    %1512 = vmatpush.bf16.msra.mxu0 0
    %1513 = vmatpush.bf16.msra.mxu0 0
    %1514 = vmatpush.bf16.msra.mxu0 0
    %1515 = vmatpush.bf16.msra.mxu0 0
    %1516 = vmatpush.bf16.msra.mxu0 0
    %1517 = vmatpush.bf16.msra.mxu0 %v1508
    %1518 = vmatmul.bf16.gmra.mxu0 %v1505
    %v1519 = vpop.f32.mrf.mxu0
    %v1520 = vadd.f32 0.0, %v1519
    %v1521 = vpop.f32.mrf.mxu0
    %1522 = vdwg.mxu0
    %1523 = vrot.lane.b32.xlu0 %v1454, 64
    %v1524 = vpop.permute.xlu0 %1523
    %v1526 = vsel %vm673, %v1501, 0
    %v1529 = vsel %vm748, %v1524, 0
    %1531 = vmatpush.bf16.msra.mxu0 0
    %1532 = vmatpush.bf16.msra.mxu0 0
    %1533 = vmatpush.bf16.msra.mxu0 0
    %1534 = vmatpush.bf16.msra.mxu0 0
    %1535 = vmatpush.bf16.msra.mxu0 0
    %1536 = vmatpush.bf16.msra.mxu0 0
    %1537 = vmatpush.bf16.msra.mxu0 0
    %1538 = vmatpush.bf16.msra.mxu0 %v1529
    %1539 = vmatmul.bf16.gmra.mxu0 %v1526
    %v1540 = vpop.f32.mrf.mxu0
    %v1541 = vadd.f32 0.0, %v1540
    %v1542 = vpop.f32.mrf.mxu0
    %1543 = vdwg.mxu0
    %1544 = vrot.lane.b32.xlu0 %v1430, 120
    %v1545 = vpop.permute.xlu0 %1544
    %1546 = vrot.lane.b32.xlu0 %v1430, 88
    %v1547 = vpop.permute.xlu0 %1546
    %v1549 = vsel %vm673, %v1545, 0
    %v1552 = vsel %vm673, %v1547, 0
    %1554 = vmatpush.bf16.xpose.msra.mxu0 0
    %1555 = vmatpush.bf16.xpose.msra.mxu0 0
    %1556 = vmatpush.bf16.xpose.msra.mxu0 0
    %1557 = vmatpush.bf16.xpose.msra.mxu0 0
    %1558 = vmatpush.bf16.xpose.msra.mxu0 0
    %1559 = vmatpush.bf16.xpose.msra.mxu0 0
    %1560 = vmatpush.bf16.xpose.msra.mxu0 0
    %1561 = vmatpush.bf16.xpose.msra.mxu0 %v1552
    %1562 = vmatmul.bf16.gmra.mxu0 %v1549
    %v1563 = vpop.f32.mrf.mxu0
    %v1564 = vadd.f32 0.0, %v1563
    %v1565 = vpop.f32.mrf.mxu0
    %1566 = vdwg.mxu0
    %1567 = vrot.lane.b32.xlu0 %v1454, 120
    %v1568 = vpop.permute.xlu0 %1567
    %1569 = vrot.lane.b32.xlu0 %v1454, 88
    %v1570 = vpop.permute.xlu0 %1569
    %v1572 = vsel %vm673, %v1568, 0
    %v1575 = vsel %vm673, %v1570, 0
    %1577 = vmatpush.bf16.xpose.msra.mxu0 0
    %1578 = vmatpush.bf16.xpose.msra.mxu0 0
    %1579 = vmatpush.bf16.xpose.msra.mxu0 0
    %1580 = vmatpush.bf16.xpose.msra.mxu0 0
    %1581 = vmatpush.bf16.xpose.msra.mxu0 0
    %1582 = vmatpush.bf16.xpose.msra.mxu0 0
    %1583 = vmatpush.bf16.xpose.msra.mxu0 0
    %1584 = vmatpush.bf16.xpose.msra.mxu0 %v1575
    %1585 = vmatmul.bf16.gmra.mxu0 %v1572
    %v1586 = vpop.f32.mrf.mxu0
    %v1587 = vadd.f32 0.0, %v1586
    %v1588 = vpop.f32.mrf.mxu0
    %1589 = vdwg.mxu0
    %v1590 = vmul.f32 %v1564, 0.35355338
    %v1591 = vmul.f32 %v1587, 0.35355338
    %v1592 = vsel %vm673, %v1590, -inf
    %1593 = vmax.xlane.f32.xlu0 %v1592
    %v1594 = vpop.xlane.xlu0 %1593
    %v1595 = vsel %vm673, %v1591, -inf
    %1596 = vmax.xlane.f32.xlu0 %v1595
    %v1597 = vpop.xlane.xlu0 %1596
    %v1598 = vsub.f32 %v1590, %v1594
    %v1599 = vsub.f32 %v1591, %v1597
    %v1600 = vmul.f32 %v1598, 1.442695
    %v1601 = vpow.pop %v1600
    %v1602 = vmul.f32 %v1599, 1.442695
    %v1603 = vpow.pop %v1602
    %v1604 = vsel %vm673, %v1601, 0.0
    %1605 = vadd.xlane.f32.xlu0 %v1604
    %v1606 = vpop.xlane.xlu0 %1605
    %v1607 = vsel %vm673, %v1603, 0.0
    %1608 = vadd.xlane.f32.xlu0 %v1607
    %v1609 = vpop.xlane.xlu0 %1608
    %v1610 = vrcp.pop %v1606
    %v1611 = vrcp.pop %v1609
    %v1612 = vmul.f32 %v1601, %v1610
    %v1613 = vmul.f32 %v1603, %v1611
    %v1614 = vpack.c.bf16 %v1612, %v1612
    %v1615 = vpack.c.bf16 %v1613, %v1613
    %1616 = vrot.lane.b32.xlu0 %v1430, 56
    %v1617 = vpop.permute.xlu0 %1616
    %v1619 = vsel %vm673, %v1614, 0
    %v1622 = vsel %vm748, %v1617, 0
    %1624 = vmatpush.bf16.msra.mxu0 0
    %1625 = vmatpush.bf16.msra.mxu0 0
    %1626 = vmatpush.bf16.msra.mxu0 0
    %1627 = vmatpush.bf16.msra.mxu0 0
    %1628 = vmatpush.bf16.msra.mxu0 0
    %1629 = vmatpush.bf16.msra.mxu0 0
    %1630 = vmatpush.bf16.msra.mxu0 0
    %1631 = vmatpush.bf16.msra.mxu0 %v1622
    %1632 = vmatmul.bf16.gmra.mxu0 %v1619
    %v1633 = vpop.f32.mrf.mxu0
    %v1634 = vadd.f32 0.0, %v1633
    %v1635 = vpop.f32.mrf.mxu0
    %1636 = vdwg.mxu0
    %1637 = vrot.lane.b32.xlu0 %v1454, 56
    %v1638 = vpop.permute.xlu0 %1637
    %v1640 = vsel %vm673, %v1615, 0
    %v1643 = vsel %vm748, %v1638, 0
    %1645 = vmatpush.bf16.msra.mxu0 0
    %1646 = vmatpush.bf16.msra.mxu0 0
    %1647 = vmatpush.bf16.msra.mxu0 0
    %1648 = vmatpush.bf16.msra.mxu0 0
    %1649 = vmatpush.bf16.msra.mxu0 0
    %1650 = vmatpush.bf16.msra.mxu0 0
    %1651 = vmatpush.bf16.msra.mxu0 0
    %1652 = vmatpush.bf16.msra.mxu0 %v1643
    %1653 = vmatmul.bf16.gmra.mxu0 %v1640
    %v1654 = vpop.f32.mrf.mxu0
    %v1655 = vadd.f32 0.0, %v1654
    %v1656 = vpop.f32.mrf.mxu0
    %1657 = vdwg.mxu0
    %1658 = vrot.lane.b32.xlu0 %v1430, 112
    %v1659 = vpop.permute.xlu0 %1658
    %1660 = vrot.lane.b32.xlu0 %v1430, 80
    %v1661 = vpop.permute.xlu0 %1660
    %v1663 = vsel %vm673, %v1659, 0
    %v1666 = vsel %vm673, %v1661, 0
    %1668 = vmatpush.bf16.xpose.msra.mxu0 0
    %1669 = vmatpush.bf16.xpose.msra.mxu0 0
    %1670 = vmatpush.bf16.xpose.msra.mxu0 0
    %1671 = vmatpush.bf16.xpose.msra.mxu0 0
    %1672 = vmatpush.bf16.xpose.msra.mxu0 0
    %1673 = vmatpush.bf16.xpose.msra.mxu0 0
    %1674 = vmatpush.bf16.xpose.msra.mxu0 0
    %1675 = vmatpush.bf16.xpose.msra.mxu0 %v1666
    %1676 = vmatmul.bf16.gmra.mxu0 %v1663
    %v1677 = vpop.f32.mrf.mxu0
    %v1678 = vadd.f32 0.0, %v1677
    %v1679 = vpop.f32.mrf.mxu0
    %1680 = vdwg.mxu0
    %1681 = vrot.lane.b32.xlu0 %v1454, 112
    %v1682 = vpop.permute.xlu0 %1681
    %1683 = vrot.lane.b32.xlu0 %v1454, 80
    %v1684 = vpop.permute.xlu0 %1683
    %v1686 = vsel %vm673, %v1682, 0
    %v1689 = vsel %vm673, %v1684, 0
    %1691 = vmatpush.bf16.xpose.msra.mxu0 0
    %1692 = vmatpush.bf16.xpose.msra.mxu0 0
    %1693 = vmatpush.bf16.xpose.msra.mxu0 0
    %1694 = vmatpush.bf16.xpose.msra.mxu0 0
    %1695 = vmatpush.bf16.xpose.msra.mxu0 0
    %1696 = vmatpush.bf16.xpose.msra.mxu0 0
    %1697 = vmatpush.bf16.xpose.msra.mxu0 0
    %1698 = vmatpush.bf16.xpose.msra.mxu0 %v1689
    %1699 = vmatmul.bf16.gmra.mxu0 %v1686
    %v1700 = vpop.f32.mrf.mxu0
    %v1701 = vadd.f32 0.0, %v1700
    %v1702 = vpop.f32.mrf.mxu0
    %1703 = vdwg.mxu0
    %v1704 = vmul.f32 %v1678, 0.35355338
    %v1705 = vmul.f32 %v1701, 0.35355338
    %v1706 = vsel %vm673, %v1704, -inf
    %1707 = vmax.xlane.f32.xlu0 %v1706
    %v1708 = vpop.xlane.xlu0 %1707
    %v1709 = vsel %vm673, %v1705, -inf
    %1710 = vmax.xlane.f32.xlu0 %v1709
    %v1711 = vpop.xlane.xlu0 %1710
    %v1712 = vsub.f32 %v1704, %v1708
    %v1713 = vsub.f32 %v1705, %v1711
    %v1714 = vmul.f32 %v1712, 1.442695
    %v1715 = vpow.pop %v1714
    %v1716 = vmul.f32 %v1713, 1.442695
    %v1717 = vpow.pop %v1716
    %v1718 = vsel %vm673, %v1715, 0.0
    %1719 = vadd.xlane.f32.xlu0 %v1718
    %v1720 = vpop.xlane.xlu0 %1719
    %v1721 = vsel %vm673, %v1717, 0.0
    %1722 = vadd.xlane.f32.xlu0 %v1721
    %v1723 = vpop.xlane.xlu0 %1722
    %v1724 = vrcp.pop %v1720
    %v1725 = vrcp.pop %v1723
    %v1726 = vmul.f32 %v1715, %v1724
    %v1727 = vmul.f32 %v1717, %v1725
    %v1728 = vpack.c.bf16 %v1726, %v1726
    %v1729 = vpack.c.bf16 %v1727, %v1727
    %1730 = vrot.lane.b32.xlu0 %v1430, 48
    %v1731 = vpop.permute.xlu0 %1730
    %v1733 = vsel %vm673, %v1728, 0
    %v1736 = vsel %vm748, %v1731, 0
    %1738 = vmatpush.bf16.msra.mxu0 0
    %1739 = vmatpush.bf16.msra.mxu0 0
    %1740 = vmatpush.bf16.msra.mxu0 0
    %1741 = vmatpush.bf16.msra.mxu0 0
    %1742 = vmatpush.bf16.msra.mxu0 0
    %1743 = vmatpush.bf16.msra.mxu0 0
    %1744 = vmatpush.bf16.msra.mxu0 0
    %1745 = vmatpush.bf16.msra.mxu0 %v1736
    %1746 = vmatmul.bf16.gmra.mxu0 %v1733
    %v1747 = vpop.f32.mrf.mxu0
    %v1748 = vadd.f32 0.0, %v1747
    %v1749 = vpop.f32.mrf.mxu0
    %1750 = vdwg.mxu0
    %1751 = vrot.lane.b32.xlu0 %v1454, 48
    %v1752 = vpop.permute.xlu0 %1751
    %v1754 = vsel %vm673, %v1729, 0
    %v1757 = vsel %vm748, %v1752, 0
    %1759 = vmatpush.bf16.msra.mxu0 0
    %1760 = vmatpush.bf16.msra.mxu0 0
    %1761 = vmatpush.bf16.msra.mxu0 0
    %1762 = vmatpush.bf16.msra.mxu0 0
    %1763 = vmatpush.bf16.msra.mxu0 0
    %1764 = vmatpush.bf16.msra.mxu0 0
    %1765 = vmatpush.bf16.msra.mxu0 0
    %1766 = vmatpush.bf16.msra.mxu0 %v1757
    %1767 = vmatmul.bf16.gmra.mxu0 %v1754
    %v1768 = vpop.f32.mrf.mxu0
    %v1769 = vadd.f32 0.0, %v1768
    %v1770 = vpop.f32.mrf.mxu0
    %1771 = vdwg.mxu0
    %1772 = vrot.lane.b32.xlu0 %v1430, 104
    %v1773 = vpop.permute.xlu0 %1772
    %1774 = vrot.lane.b32.xlu0 %v1430, 72
    %v1775 = vpop.permute.xlu0 %1774
    %v1777 = vsel %vm673, %v1773, 0
    %v1780 = vsel %vm673, %v1775, 0
    %1782 = vmatpush.bf16.xpose.msra.mxu0 0
    %1783 = vmatpush.bf16.xpose.msra.mxu0 0
    %1784 = vmatpush.bf16.xpose.msra.mxu0 0
    %1785 = vmatpush.bf16.xpose.msra.mxu0 0
    %1786 = vmatpush.bf16.xpose.msra.mxu0 0
    %1787 = vmatpush.bf16.xpose.msra.mxu0 0
    %1788 = vmatpush.bf16.xpose.msra.mxu0 0
    %1789 = vmatpush.bf16.xpose.msra.mxu0 %v1780
    %1790 = vmatmul.bf16.gmra.mxu0 %v1777
    %v1791 = vpop.f32.mrf.mxu0
    %v1792 = vadd.f32 0.0, %v1791
    %v1793 = vpop.f32.mrf.mxu0
    %1794 = vdwg.mxu0
    %1795 = vrot.lane.b32.xlu0 %v1454, 104
    %v1796 = vpop.permute.xlu0 %1795
    %1797 = vrot.lane.b32.xlu0 %v1454, 72
    %v1798 = vpop.permute.xlu0 %1797
    %v1800 = vsel %vm673, %v1796, 0
    %v1803 = vsel %vm673, %v1798, 0
    %1805 = vmatpush.bf16.xpose.msra.mxu0 0
    %1806 = vmatpush.bf16.xpose.msra.mxu0 0
    %1807 = vmatpush.bf16.xpose.msra.mxu0 0
    %1808 = vmatpush.bf16.xpose.msra.mxu0 0
    %1809 = vmatpush.bf16.xpose.msra.mxu0 0
    %1810 = vmatpush.bf16.xpose.msra.mxu0 0
    %1811 = vmatpush.bf16.xpose.msra.mxu0 0
    %1812 = vmatpush.bf16.xpose.msra.mxu0 %v1803
    %1813 = vmatmul.bf16.gmra.mxu0 %v1800
    %v1814 = vpop.f32.mrf.mxu0
    %v1815 = vadd.f32 0.0, %v1814
    %v1816 = vpop.f32.mrf.mxu0
    %1817 = vdwg.mxu0
    %v1818 = vmul.f32 %v1792, 0.35355338
    %v1819 = vmul.f32 %v1815, 0.35355338
    %v1820 = vsel %vm673, %v1818, -inf
    %1821 = vmax.xlane.f32.xlu0 %v1820
    %v1822 = vpop.xlane.xlu0 %1821
    %v1823 = vsel %vm673, %v1819, -inf
    %1824 = vmax.xlane.f32.xlu0 %v1823
    %v1825 = vpop.xlane.xlu0 %1824
    %v1826 = vsub.f32 %v1818, %v1822
    %v1827 = vsub.f32 %v1819, %v1825
    %v1828 = vmul.f32 %v1826, 1.442695
    %v1829 = vpow.pop %v1828
    %v1830 = vmul.f32 %v1827, 1.442695
    %v1831 = vpow.pop %v1830
    %v1832 = vsel %vm673, %v1829, 0.0
    %1833 = vadd.xlane.f32.xlu0 %v1832
    %v1834 = vpop.xlane.xlu0 %1833
    %v1835 = vsel %vm673, %v1831, 0.0
    %1836 = vadd.xlane.f32.xlu0 %v1835
    %v1837 = vpop.xlane.xlu0 %1836
    %v1838 = vrcp.pop %v1834
    %v1839 = vrcp.pop %v1837
    %v1840 = vmul.f32 %v1829, %v1838
    %v1841 = vmul.f32 %v1831, %v1839
    %v1842 = vpack.c.bf16 %v1840, %v1840
    %v1843 = vpack.c.bf16 %v1841, %v1841
    %1844 = vrot.lane.b32.xlu0 %v1430, 40
    %v1845 = vpop.permute.xlu0 %1844
    %v1847 = vsel %vm673, %v1842, 0
    %v1850 = vsel %vm748, %v1845, 0
    %1852 = vmatpush.bf16.msra.mxu0 0
    %1853 = vmatpush.bf16.msra.mxu0 0
    %1854 = vmatpush.bf16.msra.mxu0 0
    %1855 = vmatpush.bf16.msra.mxu0 0
    %1856 = vmatpush.bf16.msra.mxu0 0
    %1857 = vmatpush.bf16.msra.mxu0 0
    %1858 = vmatpush.bf16.msra.mxu0 0
    %1859 = vmatpush.bf16.msra.mxu0 %v1850
    %1860 = vmatmul.bf16.gmra.mxu0 %v1847
    %v1861 = vpop.f32.mrf.mxu0
    %v1862 = vadd.f32 0.0, %v1861
    %v1863 = vpop.f32.mrf.mxu0
    %1864 = vdwg.mxu0
    %1865 = vrot.lane.b32.xlu0 %v1454, 40
    %v1866 = vpop.permute.xlu0 %1865
    %v1868 = vsel %vm673, %v1843, 0
    %v1871 = vsel %vm748, %v1866, 0
    %1873 = vmatpush.bf16.msra.mxu0 0
    %1874 = vmatpush.bf16.msra.mxu0 0
    %1875 = vmatpush.bf16.msra.mxu0 0
    %1876 = vmatpush.bf16.msra.mxu0 0
    %1877 = vmatpush.bf16.msra.mxu0 0
    %1878 = vmatpush.bf16.msra.mxu0 0
    %1879 = vmatpush.bf16.msra.mxu0 0
    %1880 = vmatpush.bf16.msra.mxu0 %v1871
    %1881 = vmatmul.bf16.gmra.mxu0 %v1868
    %v1882 = vpop.f32.mrf.mxu0
    %v1883 = vadd.f32 0.0, %v1882
    %v1884 = vpop.f32.mrf.mxu0
    %1885 = vdwg.mxu0
    %1888 = vrot.lane.b32.xlu0 %v1634, 8
    %v1889 = vpop.permute.xlu0 %1888
    %1890 = vrot.lane.b32.xlu0 %v1655, 8
    %v1891 = vpop.permute.xlu0 %1890
    %1896 = vrot.lane.b32.xlu0 %v1748, 16
    %v1897 = vpop.permute.xlu0 %1896
    %1898 = vrot.lane.b32.xlu0 %v1769, 16
    %v1899 = vpop.permute.xlu0 %1898
    %1904 = vrot.lane.b32.xlu0 %v1862, 24
    %v1905 = vpop.permute.xlu0 %1904
    %1906 = vrot.lane.b32.xlu0 %v1883, 24
    %v1907 = vpop.permute.xlu0 %1906
    %v1910 = vsel %vm673, %v1520, %v1889
    %v1911 = vsel %vm673, %v1541, %v1891
    %v1912 = vsel %vm1154, %v1910, %v1897
    %v1913 = vsel %vm1154, %v1911, %v1899
    %v1914 = vsel %vm1157, %v1912, %v1905
    %v1915 = vsel %vm1157, %v1913, %v1907
    %v1916 = vpack.c.bf16 %v1915, %v1914
    %v1918 = vperm.slane %v536, 0
    %v1924 = vunpack.c.l.b16 %v556
    %v1925 = vunpack.c.l.b16 %v557
    %v1926 = vunpack.c.l.b16 %v558
    %v1927 = vunpack.c.l.b16 %v559
    %v1928 = vpack.c.b16 %v1925, %v1924
    %v1929 = vpack.c.b16 %v1927, %v1926
    %v1933 = vsel %vm648, %v1916, 0
    %1935 = vmatpush.bf16.msra.mxu0 0
    %1936 = vmatpush.bf16.msra.mxu0 0
    %1937 = vmatpush.bf16.msra.mxu0 0
    %1938 = vmatpush.bf16.msra.mxu0 0
    %1939 = vmatpush.bf16.msra.mxu0 0
    %1940 = vmatpush.bf16.msra.mxu0 0
    %1941 = vmatpush.bf16.msra.mxu0 %v1929
    %1942 = vmatpush.bf16.msra.mxu0 %v1928
    %1943 = vmatmul.bf16.gmra.mxu0 %v1933
    %v1944 = vpop.f32.mrf.mxu0
    %v1945 = vadd.f32 %v1918, %v1944
    %v1946 = vpop.f32.mrf.mxu0
    %v1947 = vadd.f32 %v1918, %v1946
    %1948 = vdwg.mxu0
    %v1949 = vadd.f32 %v1391, %v1945
    %v1950 = vadd.f32 %v1392, %v1947
    %v1951 = vsel %vm648, %v1949, 0.0
    %1952 = vadd.xlane.f32.xlu0 %v1951
    %v1953 = vpop.xlane.xlu0 %1952
    %v1954 = vsel %vm648, %v1950, 0.0
    %1955 = vadd.xlane.f32.xlu0 %v1954
    %v1956 = vpop.xlane.xlu0 %1955
    %v1957 = vmul.f32 %v1953, %v1207
    %v1958 = vmul.f32 %v1956, %v1207
    %v1959 = vsub.f32 %v1949, %v1957
    %v1960 = vsub.f32 %v1950, %v1958
    %v1961 = vmul.f32 %v1959, %v1959
    %v1962 = vmul.f32 %v1960, %v1960
    %v1963 = vsel %vm648, %v1961, 0.0
    %1964 = vadd.xlane.f32.xlu0 %v1963
    %v1965 = vpop.xlane.xlu0 %1964
    %v1966 = vsel %vm648, %v1962, 0.0
    %1967 = vadd.xlane.f32.xlu0 %v1966
    %v1968 = vpop.xlane.xlu0 %1967
    %v1969 = vmul.f32 %v1965, %v1207
    %v1970 = vmul.f32 %v1968, %v1207
    %v1971 = vadd.f32 %v1969, 1e-05
    %v1972 = vadd.f32 %v1970, 1e-05
    %v1973 = vrsqrt.pop %v1971
    %v1974 = vmul.f32 %v1973, %v1971
    %v1975 = vmul.f32 %v1974, %v1973
    %v1976 = vmul.f32 0.5, %v1975
    %v1977 = vsub.f32 1.5, %v1976
    %v1978 = vmul.f32 %v1973, %v1977
    %vm1979 = vweird.f32 %v1971
    %vm1980 = vweird.f32 %v1973
    %vm1981 = vmor %vm1979, %vm1980
    %v1982 = vsel %vm1981, %v1973, %v1978
    %v1983 = vrsqrt.pop %v1972
    %v1984 = vmul.f32 %v1983, %v1972
    %v1985 = vmul.f32 %v1984, %v1983
    %v1986 = vmul.f32 0.5, %v1985
    %v1987 = vsub.f32 1.5, %v1986
    %v1988 = vmul.f32 %v1983, %v1987
    %vm1989 = vweird.f32 %v1972
    %vm1990 = vweird.f32 %v1983
    %vm1991 = vmor %vm1989, %vm1990
    %v1992 = vsel %vm1991, %v1983, %v1988
    %v1993 = vmul.f32 %v1959, %v1982
    %v1994 = vmul.f32 %v1960, %v1992
    %v1996 = vperm.slane %v553, 0
    %v1998 = vmul.f32 %v1993, %v1996
    %v1999 = vmul.f32 %v1994, %v1996
    %v2001 = vperm.slane %v552, 0
    %v2003 = vadd.f32 %v1998, %v2001
    %v2004 = vadd.f32 %v1999, %v2001
    %v2005 = vpack.c.bf16 %v2004, %v2003
    %v2007 = vperm.slane %v538, 0
    %v2013 = vunpack.c.l.b16 %v539
    %v2014 = vunpack.c.l.b16 %v540
    %v2015 = vunpack.c.l.b16 %v541
    %v2016 = vunpack.c.l.b16 %v542
    %v2017 = vpack.c.b16 %v2014, %v2013
    %v2018 = vpack.c.b16 %v2016, %v2015
    %v2022 = vsel %vm648, %v2005, 0
    %2024 = vmatpush.bf16.msra.mxu0 0
    %2025 = vmatpush.bf16.msra.mxu0 0
    %2026 = vmatpush.bf16.msra.mxu0 0
    %2027 = vmatpush.bf16.msra.mxu0 0
    %2028 = vmatpush.bf16.msra.mxu0 0
    %2029 = vmatpush.bf16.msra.mxu0 0
    %2030 = vmatpush.bf16.msra.mxu0 %v2018
    %2031 = vmatpush.bf16.msra.mxu0 %v2017
    %2032 = vmatmul.bf16.gmra.mxu0 %v2022
    %v2033 = vpop.f32.mrf.mxu0
    %v2034 = vadd.f32 %v2007, %v2033
    %v2035 = vpop.f32.mrf.mxu0
    %v2036 = vadd.f32 %v2007, %v2035
    %2037 = vdwg.mxu0
    %v2038 = vmax.f32 %v2034, 0.0
    %v2039 = vmax.f32 %v2036, 0.0
    %v2040 = vpack.c.bf16 %v2039, %v2038
    %v2042 = vperm.slane %v543, 0
    %v2052 = vunpack.c.l.b16 %v544
    %v2053 = vunpack.c.l.b16 %v545
    %v2054 = vunpack.c.l.b16 %v546
    %v2055 = vunpack.c.l.b16 %v547
    %v2056 = vunpack.c.l.b16 %v548
    %v2057 = vunpack.c.l.b16 %v549
    %v2058 = vunpack.c.l.b16 %v550
    %v2059 = vunpack.c.l.b16 %v551
    %v2060 = vpack.c.b16 %v2053, %v2052
    %v2061 = vpack.c.b16 %v2055, %v2054
    %v2062 = vpack.c.b16 %v2057, %v2056
    %v2063 = vpack.c.b16 %v2059, %v2058
    %v2069 = vsel %vm1319, %v2040, 0
    %2071 = vmatpush.bf16.msra.mxu0 0
    %2072 = vmatpush.bf16.msra.mxu0 0
    %2073 = vmatpush.bf16.msra.mxu0 0
    %2074 = vmatpush.bf16.msra.mxu0 0
    %2075 = vmatpush.bf16.msra.mxu0 %v2063
    %2076 = vmatpush.bf16.msra.mxu0 %v2062
    %2077 = vmatpush.bf16.msra.mxu0 %v2061
    %2078 = vmatpush.bf16.msra.mxu0 %v2060
    %2079 = vmatmul.bf16.gmra.mxu0 %v2069
    %v2080 = vpop.f32.mrf.mxu0
    %v2081 = vadd.f32 %v2042, %v2080
    %v2082 = vpop.f32.mrf.mxu0
    %v2083 = vadd.f32 %v2042, %v2082
    %2084 = vdwg.mxu0
    %v2085 = vadd.f32 %v2003, %v2081
    %v2086 = vadd.f32 %v2004, %v2083
    %v2087 = vsel %vm648, %v2085, 0.0
    %2088 = vadd.xlane.f32.xlu0 %v2087
    %v2089 = vpop.xlane.xlu0 %2088
    %v2090 = vsel %vm648, %v2086, 0.0
    %2091 = vadd.xlane.f32.xlu0 %v2090
    %v2092 = vpop.xlane.xlu0 %2091
    %v2093 = vmul.f32 %v2089, %v1207
    %v2094 = vmul.f32 %v2092, %v1207
    %v2095 = vsub.f32 %v2085, %v2093
    %v2096 = vsub.f32 %v2086, %v2094
    %v2097 = vmul.f32 %v2095, %v2095
    %v2098 = vmul.f32 %v2096, %v2096
    %v2099 = vsel %vm648, %v2097, 0.0
    %2100 = vadd.xlane.f32.xlu0 %v2099
    %v2101 = vpop.xlane.xlu0 %2100
    %v2102 = vsel %vm648, %v2098, 0.0
    %2103 = vadd.xlane.f32.xlu0 %v2102
    %v2104 = vpop.xlane.xlu0 %2103
    %v2105 = vmul.f32 %v2101, %v1207
    %v2106 = vmul.f32 %v2104, %v1207
    %v2107 = vadd.f32 %v2105, 1e-05
    %v2108 = vadd.f32 %v2106, 1e-05
    %v2109 = vrsqrt.pop %v2107
    %v2110 = vmul.f32 %v2109, %v2107
    %v2111 = vmul.f32 %v2110, %v2109
    %v2112 = vmul.f32 0.5, %v2111
    %v2113 = vsub.f32 1.5, %v2112
    %v2114 = vmul.f32 %v2109, %v2113
    %vm2115 = vweird.f32 %v2107
    %vm2116 = vweird.f32 %v2109
    %vm2117 = vmor %vm2115, %vm2116
    %v2118 = vsel %vm2117, %v2109, %v2114
    %v2119 = vrsqrt.pop %v2108
    %v2120 = vmul.f32 %v2119, %v2108
    %v2121 = vmul.f32 %v2120, %v2119
    %v2122 = vmul.f32 0.5, %v2121
    %v2123 = vsub.f32 1.5, %v2122
    %v2124 = vmul.f32 %v2119, %v2123
    %vm2125 = vweird.f32 %v2108
    %vm2126 = vweird.f32 %v2119
    %vm2127 = vmor %vm2125, %vm2126
    %v2128 = vsel %vm2127, %v2119, %v2124
    %v2129 = vmul.f32 %v2095, %v2118
    %v2130 = vmul.f32 %v2096, %v2128
    %v2132 = vperm.slane %v555, 0
    %v2134 = vmul.f32 %v2129, %v2132
    %v2135 = vmul.f32 %v2130, %v2132
    %v2137 = vperm.slane %v554, 0
    %v2139 = vadd.f32 %v2134, %v2137
    %v2140 = vadd.f32 %v2135, %v2137
    %v2141 = vsel %vm648, %v2139, 0.0
    %2142 = vadd.xlane.f32.xlu0 %v2141
    %v2143 = vpop.xlane.xlu0 %2142
    %v2144 = vsel %vm648, %v2140, 0.0
    %2145 = vadd.xlane.f32.xlu0 %v2144
    %v2146 = vpop.xlane.xlu0 %2145
    %v2147 = vmul.f32 %v2143, %v1207
    %v2148 = vmul.f32 %v2146, %v1207
    %v2149 = vsub.f32 %v2139, %v2147
    %v2150 = vsub.f32 %v2140, %v2148
    %v2151 = vmul.f32 %v2149, %v2149
    %v2152 = vmul.f32 %v2150, %v2150
    %v2153 = vsel %vm648, %v2151, 0.0
    %2154 = vadd.xlane.f32.xlu0 %v2153
    %v2155 = vpop.xlane.xlu0 %2154
    %v2156 = vsel %vm648, %v2152, 0.0
    %2157 = vadd.xlane.f32.xlu0 %v2156
    %v2158 = vpop.xlane.xlu0 %2157
    %v2159 = vmul.f32 %v2155, %v1207
    %v2160 = vmul.f32 %v2158, %v1207
    %v2161 = vadd.f32 %v2159, 1e-05
    %v2162 = vadd.f32 %v2160, 1e-05
    %v2163 = vrsqrt.pop %v2161
    %v2164 = vmul.f32 %v2163, %v2161
    %v2165 = vmul.f32 %v2164, %v2163
    %v2166 = vmul.f32 0.5, %v2165
    %v2167 = vsub.f32 1.5, %v2166
    %v2168 = vmul.f32 %v2163, %v2167
    %vm2169 = vweird.f32 %v2161
    %vm2170 = vweird.f32 %v2163
    %vm2171 = vmor %vm2169, %vm2170
    %v2172 = vsel %vm2171, %v2163, %v2168
    %v2173 = vrsqrt.pop %v2162
    %v2174 = vmul.f32 %v2173, %v2162
    %v2175 = vmul.f32 %v2174, %v2173
    %v2176 = vmul.f32 0.5, %v2175
    %v2177 = vsub.f32 1.5, %v2176
    %v2178 = vmul.f32 %v2173, %v2177
    %vm2179 = vweird.f32 %v2162
    %vm2180 = vweird.f32 %v2173
    %vm2181 = vmor %vm2179, %vm2180
    %v2182 = vsel %vm2181, %v2173, %v2178
    %v2183 = vmul.f32 %v2149, %v2172
    %v2184 = vmul.f32 %v2150, %v2182
    %v2186 = vperm.slane %v565, 0
    %v2188 = vmul.f32 %v2183, %v2186
    %v2189 = vmul.f32 %v2184, %v2186
    %v2191 = vperm.slane %v564, 0
    %v2193 = vadd.f32 %v2188, %v2191
    %v2194 = vadd.f32 %v2189, %v2191
    %v2197 = vunpack.c.l.b16 %v451
    %v2198 = vunpack.c.l.b16 %v452
    %v2199 = vpack.c.b16 %v2198, %v2197
    %v2201 = vsel %vm576, %v2199, 0
    %v2204 = vsel %vm580, %v455, 0
    %2206 = vmatpush.bf16.msra.mxu0 0
    %2207 = vmatpush.bf16.msra.mxu0 0
    %2208 = vmatpush.bf16.msra.mxu0 0
    %2209 = vmatpush.bf16.msra.mxu0 0
    %2210 = vmatpush.bf16.msra.mxu0 0
    %2211 = vmatpush.bf16.msra.mxu0 0
    %2212 = vmatpush.bf16.msra.mxu0 0
    %2213 = vmatpush.bf16.msra.mxu0 %v2204
    %2214 = vmatmul.bf16.gmra.mxu0 %v2201
    %v2215 = vpop.f32.mrf.mxu0
    %v2216 = vadd.f32 0.0, %v2215
    %v2217 = vpop.f32.mrf.mxu0
    %v2218 = vadd.f32 0.0, %v2217
    %2219 = vdwg.mxu0
    %v2222 = vunpack.c.l.b16 %v447
    %v2223 = vunpack.c.l.b16 %v448
    %v2224 = vpack.c.b16 %v2223, %v2222
    %v2227 = vunpack.c.l.b16 %v456
    %v2228 = vunpack.c.l.b16 %v457
    %v2229 = vpack.c.b16 %v2228, %v2227
    %v2231 = vsel %vm608, %v2224, 0
    %v2234 = vsel %vm612, %v2229, 0
    %2236 = vmatpush.bf16.msra.mxu0 0
    %2237 = vmatpush.bf16.msra.mxu0 0
    %2238 = vmatpush.bf16.msra.mxu0 0
    %2239 = vmatpush.bf16.msra.mxu0 0
    %2240 = vmatpush.bf16.msra.mxu0 0
    %2241 = vmatpush.bf16.msra.mxu0 0
    %2242 = vmatpush.bf16.msra.mxu0 0
    %2243 = vmatpush.bf16.msra.mxu0 %v2234
    %2244 = vmatmul.bf16.gmra.mxu0 %v2231
    %v2245 = vpop.f32.mrf.mxu0
    %v2246 = vadd.f32 %v2216, %v2245
    %v2247 = vpop.f32.mrf.mxu0
    %v2248 = vadd.f32 %v2218, %v2247
    %2249 = vdwg.mxu0
    %v2250 = vadd.f32 %v2246, %v443
    %v2251 = vadd.f32 %v2248, %v444
    %v2252 = vpack.c.bf16 %v2251, %v2250
    %v2254 = vperm.slane %v494, 0
    %v2260 = vunpack.c.l.b16 %v499
    %v2261 = vunpack.c.l.b16 %v500
    %v2262 = vunpack.c.l.b16 %v501
    %v2263 = vunpack.c.l.b16 %v502
    %v2264 = vpack.c.b16 %v2261, %v2260
    %v2265 = vpack.c.b16 %v2263, %v2262
    %v2269 = vsel %vm648, %v2252, 0
    %2271 = vmatpush.bf16.msra.mxu0 0
    %2272 = vmatpush.bf16.msra.mxu0 0
    %2273 = vmatpush.bf16.msra.mxu0 0
    %2274 = vmatpush.bf16.msra.mxu0 0
    %2275 = vmatpush.bf16.msra.mxu0 0
    %2276 = vmatpush.bf16.msra.mxu0 0
    %2277 = vmatpush.bf16.msra.mxu0 %v2265
    %2278 = vmatpush.bf16.msra.mxu0 %v2264
    %2279 = vmatmul.bf16.gmra.mxu0 %v2269
    %v2280 = vpop.f32.mrf.mxu0
    %v2281 = vadd.f32 %v2254, %v2280
    %v2282 = vpop.f32.mrf.mxu0
    %v2283 = vadd.f32 %v2254, %v2282
    %2284 = vdwg.mxu0
    %v2285 = vpack.c.bf16 %v2281, %v2281
    %v2286 = vpack.c.bf16 %v2283, %v2283
    %v2288 = vunpack.c.l.b16 %v2285
    %v2289 = vpack.c.b16 %v2288, %v2288
    %2290 = vrot.lane.b32.xlu0 %v2289, 96
    %v2291 = vpop.permute.xlu0 %2290
    %v2293 = vsel %vm673, %v2285, 0
    %v2296 = vsel %vm673, %v2291, 0
    %2298 = vmatpush.bf16.xpose.msra.mxu0 0
    %2299 = vmatpush.bf16.xpose.msra.mxu0 0
    %2300 = vmatpush.bf16.xpose.msra.mxu0 0
    %2301 = vmatpush.bf16.xpose.msra.mxu0 0
    %2302 = vmatpush.bf16.xpose.msra.mxu0 0
    %2303 = vmatpush.bf16.xpose.msra.mxu0 0
    %2304 = vmatpush.bf16.xpose.msra.mxu0 0
    %2305 = vmatpush.bf16.xpose.msra.mxu0 %v2296
    %2306 = vmatmul.bf16.gmra.mxu0 %v2293
    %v2307 = vpop.f32.mrf.mxu0
    %v2308 = vadd.f32 0.0, %v2307
    %v2309 = vpop.f32.mrf.mxu0
    %2310 = vdwg.mxu0
    %v2312 = vunpack.c.l.b16 %v2286
    %v2313 = vpack.c.b16 %v2312, %v2312
    %2314 = vrot.lane.b32.xlu0 %v2313, 96
    %v2315 = vpop.permute.xlu0 %2314
    %v2317 = vsel %vm673, %v2286, 0
    %v2320 = vsel %vm673, %v2315, 0
    %2322 = vmatpush.bf16.xpose.msra.mxu0 0
    %2323 = vmatpush.bf16.xpose.msra.mxu0 0
    %2324 = vmatpush.bf16.xpose.msra.mxu0 0
    %2325 = vmatpush.bf16.xpose.msra.mxu0 0
    %2326 = vmatpush.bf16.xpose.msra.mxu0 0
    %2327 = vmatpush.bf16.xpose.msra.mxu0 0
    %2328 = vmatpush.bf16.xpose.msra.mxu0 0
    %2329 = vmatpush.bf16.xpose.msra.mxu0 %v2320
    %2330 = vmatmul.bf16.gmra.mxu0 %v2317
    %v2331 = vpop.f32.mrf.mxu0
    %v2332 = vadd.f32 0.0, %v2331
    %v2333 = vpop.f32.mrf.mxu0
    %2334 = vdwg.mxu0
    %v2335 = vmul.f32 %v2308, 0.35355338
    %v2336 = vmul.f32 %v2332, 0.35355338
    %v2337 = vadd.f32 %v2335, %v442
    %v2338 = vadd.f32 %v2336, %v442
    %v2339 = vsel %vm673, %v2337, -inf
    %2340 = vmax.xlane.f32.xlu0 %v2339
    %v2341 = vpop.xlane.xlu0 %2340
    %v2342 = vsel %vm673, %v2338, -inf
    %2343 = vmax.xlane.f32.xlu0 %v2342
    %v2344 = vpop.xlane.xlu0 %2343
    %v2345 = vsub.f32 %v2337, %v2341
    %v2346 = vsub.f32 %v2338, %v2344
    %v2347 = vmul.f32 %v2345, 1.442695
    %v2348 = vpow.pop %v2347
    %v2349 = vmul.f32 %v2346, 1.442695
    %v2350 = vpow.pop %v2349
    %v2351 = vsel %vm673, %v2348, 0.0
    %2352 = vadd.xlane.f32.xlu0 %v2351
    %v2353 = vpop.xlane.xlu0 %2352
    %v2354 = vsel %vm673, %v2350, 0.0
    %2355 = vadd.xlane.f32.xlu0 %v2354
    %v2356 = vpop.xlane.xlu0 %2355
    %v2357 = vrcp.pop %v2353
    %v2358 = vrcp.pop %v2356
    %v2359 = vmul.f32 %v2348, %v2357
    %v2360 = vmul.f32 %v2350, %v2358
    %v2361 = vpack.c.bf16 %v2359, %v2359
    %v2362 = vpack.c.bf16 %v2360, %v2360
    %2363 = vrot.lane.b32.xlu0 %v2289, 64
    %v2364 = vpop.permute.xlu0 %2363
    %v2366 = vsel %vm673, %v2361, 0
    %v2369 = vsel %vm748, %v2364, 0
    %2371 = vmatpush.bf16.msra.mxu0 0
    %2372 = vmatpush.bf16.msra.mxu0 0
    %2373 = vmatpush.bf16.msra.mxu0 0
    %2374 = vmatpush.bf16.msra.mxu0 0
    %2375 = vmatpush.bf16.msra.mxu0 0
    %2376 = vmatpush.bf16.msra.mxu0 0
    %2377 = vmatpush.bf16.msra.mxu0 0
    %2378 = vmatpush.bf16.msra.mxu0 %v2369
    %2379 = vmatmul.bf16.gmra.mxu0 %v2366
    %v2380 = vpop.f32.mrf.mxu0
    %v2381 = vadd.f32 0.0, %v2380
    %v2382 = vpop.f32.mrf.mxu0
    %2383 = vdwg.mxu0
    %2384 = vrot.lane.b32.xlu0 %v2313, 64
    %v2385 = vpop.permute.xlu0 %2384
    %v2387 = vsel %vm673, %v2362, 0
    %v2390 = vsel %vm748, %v2385, 0
    %2392 = vmatpush.bf16.msra.mxu0 0
    %2393 = vmatpush.bf16.msra.mxu0 0
    %2394 = vmatpush.bf16.msra.mxu0 0
    %2395 = vmatpush.bf16.msra.mxu0 0
    %2396 = vmatpush.bf16.msra.mxu0 0
    %2397 = vmatpush.bf16.msra.mxu0 0
    %2398 = vmatpush.bf16.msra.mxu0 0
    %2399 = vmatpush.bf16.msra.mxu0 %v2390
    %2400 = vmatmul.bf16.gmra.mxu0 %v2387
    %v2401 = vpop.f32.mrf.mxu0
    %v2402 = vadd.f32 0.0, %v2401
    %v2403 = vpop.f32.mrf.mxu0
    %2404 = vdwg.mxu0
    %2405 = vrot.lane.b32.xlu0 %v2289, 120
    %v2406 = vpop.permute.xlu0 %2405
    %2407 = vrot.lane.b32.xlu0 %v2289, 88
    %v2408 = vpop.permute.xlu0 %2407
    %v2410 = vsel %vm673, %v2406, 0
    %v2413 = vsel %vm673, %v2408, 0
    %2415 = vmatpush.bf16.xpose.msra.mxu0 0
    %2416 = vmatpush.bf16.xpose.msra.mxu0 0
    %2417 = vmatpush.bf16.xpose.msra.mxu0 0
    %2418 = vmatpush.bf16.xpose.msra.mxu0 0
    %2419 = vmatpush.bf16.xpose.msra.mxu0 0
    %2420 = vmatpush.bf16.xpose.msra.mxu0 0
    %2421 = vmatpush.bf16.xpose.msra.mxu0 0
    %2422 = vmatpush.bf16.xpose.msra.mxu0 %v2413
    %2423 = vmatmul.bf16.gmra.mxu0 %v2410
    %v2424 = vpop.f32.mrf.mxu0
    %v2425 = vadd.f32 0.0, %v2424
    %v2426 = vpop.f32.mrf.mxu0
    %2427 = vdwg.mxu0
    %2428 = vrot.lane.b32.xlu0 %v2313, 120
    %v2429 = vpop.permute.xlu0 %2428
    %2430 = vrot.lane.b32.xlu0 %v2313, 88
    %v2431 = vpop.permute.xlu0 %2430
    %v2433 = vsel %vm673, %v2429, 0
    %v2436 = vsel %vm673, %v2431, 0
    %2438 = vmatpush.bf16.xpose.msra.mxu0 0
    %2439 = vmatpush.bf16.xpose.msra.mxu0 0
    %2440 = vmatpush.bf16.xpose.msra.mxu0 0
    %2441 = vmatpush.bf16.xpose.msra.mxu0 0
    %2442 = vmatpush.bf16.xpose.msra.mxu0 0
    %2443 = vmatpush.bf16.xpose.msra.mxu0 0
    %2444 = vmatpush.bf16.xpose.msra.mxu0 0
    %2445 = vmatpush.bf16.xpose.msra.mxu0 %v2436
    %2446 = vmatmul.bf16.gmra.mxu0 %v2433
    %v2447 = vpop.f32.mrf.mxu0
    %v2448 = vadd.f32 0.0, %v2447
    %v2449 = vpop.f32.mrf.mxu0
    %2450 = vdwg.mxu0
    %v2451 = vmul.f32 %v2425, 0.35355338
    %v2452 = vmul.f32 %v2448, 0.35355338
    %v2453 = vadd.f32 %v2451, %v442
    %v2454 = vadd.f32 %v2452, %v442
    %v2455 = vsel %vm673, %v2453, -inf
    %2456 = vmax.xlane.f32.xlu0 %v2455
    %v2457 = vpop.xlane.xlu0 %2456
    %v2458 = vsel %vm673, %v2454, -inf
    %2459 = vmax.xlane.f32.xlu0 %v2458
    %v2460 = vpop.xlane.xlu0 %2459
    %v2461 = vsub.f32 %v2453, %v2457
    %v2462 = vsub.f32 %v2454, %v2460
    %v2463 = vmul.f32 %v2461, 1.442695
    %v2464 = vpow.pop %v2463
    %v2465 = vmul.f32 %v2462, 1.442695
    %v2466 = vpow.pop %v2465
    %v2467 = vsel %vm673, %v2464, 0.0
    %2468 = vadd.xlane.f32.xlu0 %v2467
    %v2469 = vpop.xlane.xlu0 %2468
    %v2470 = vsel %vm673, %v2466, 0.0
    %2471 = vadd.xlane.f32.xlu0 %v2470
    %v2472 = vpop.xlane.xlu0 %2471
    %v2473 = vrcp.pop %v2469
    %v2474 = vrcp.pop %v2472
    %v2475 = vmul.f32 %v2464, %v2473
    %v2476 = vmul.f32 %v2466, %v2474
    %v2477 = vpack.c.bf16 %v2475, %v2475
    %v2478 = vpack.c.bf16 %v2476, %v2476
    %2479 = vrot.lane.b32.xlu0 %v2289, 56
    %v2480 = vpop.permute.xlu0 %2479
    %v2482 = vsel %vm673, %v2477, 0
    %v2485 = vsel %vm748, %v2480, 0
    %2487 = vmatpush.bf16.msra.mxu0 0
    %2488 = vmatpush.bf16.msra.mxu0 0
    %2489 = vmatpush.bf16.msra.mxu0 0
    %2490 = vmatpush.bf16.msra.mxu0 0
    %2491 = vmatpush.bf16.msra.mxu0 0
    %2492 = vmatpush.bf16.msra.mxu0 0
    %2493 = vmatpush.bf16.msra.mxu0 0
    %2494 = vmatpush.bf16.msra.mxu0 %v2485
    %2495 = vmatmul.bf16.gmra.mxu0 %v2482
    %v2496 = vpop.f32.mrf.mxu0
    %v2497 = vadd.f32 0.0, %v2496
    %v2498 = vpop.f32.mrf.mxu0
    %2499 = vdwg.mxu0
    %2500 = vrot.lane.b32.xlu0 %v2313, 56
    %v2501 = vpop.permute.xlu0 %2500
    %v2503 = vsel %vm673, %v2478, 0
    %v2506 = vsel %vm748, %v2501, 0
    %2508 = vmatpush.bf16.msra.mxu0 0
    %2509 = vmatpush.bf16.msra.mxu0 0
    %2510 = vmatpush.bf16.msra.mxu0 0
    %2511 = vmatpush.bf16.msra.mxu0 0
    %2512 = vmatpush.bf16.msra.mxu0 0
    %2513 = vmatpush.bf16.msra.mxu0 0
    %2514 = vmatpush.bf16.msra.mxu0 0
    %2515 = vmatpush.bf16.msra.mxu0 %v2506
    %2516 = vmatmul.bf16.gmra.mxu0 %v2503
    %v2517 = vpop.f32.mrf.mxu0
    %v2518 = vadd.f32 0.0, %v2517
    %v2519 = vpop.f32.mrf.mxu0
    %2520 = vdwg.mxu0
    %2521 = vrot.lane.b32.xlu0 %v2289, 112
    %v2522 = vpop.permute.xlu0 %2521
    %2523 = vrot.lane.b32.xlu0 %v2289, 80
    %v2524 = vpop.permute.xlu0 %2523
    %v2526 = vsel %vm673, %v2522, 0
    %v2529 = vsel %vm673, %v2524, 0
    %2531 = vmatpush.bf16.xpose.msra.mxu0 0
    %2532 = vmatpush.bf16.xpose.msra.mxu0 0
    %2533 = vmatpush.bf16.xpose.msra.mxu0 0
    %2534 = vmatpush.bf16.xpose.msra.mxu0 0
    %2535 = vmatpush.bf16.xpose.msra.mxu0 0
    %2536 = vmatpush.bf16.xpose.msra.mxu0 0
    %2537 = vmatpush.bf16.xpose.msra.mxu0 0
    %2538 = vmatpush.bf16.xpose.msra.mxu0 %v2529
    %2539 = vmatmul.bf16.gmra.mxu0 %v2526
    %v2540 = vpop.f32.mrf.mxu0
    %v2541 = vadd.f32 0.0, %v2540
    %v2542 = vpop.f32.mrf.mxu0
    %2543 = vdwg.mxu0
    %2544 = vrot.lane.b32.xlu0 %v2313, 112
    %v2545 = vpop.permute.xlu0 %2544
    %2546 = vrot.lane.b32.xlu0 %v2313, 80
    %v2547 = vpop.permute.xlu0 %2546
    %v2549 = vsel %vm673, %v2545, 0
    %v2552 = vsel %vm673, %v2547, 0
    %2554 = vmatpush.bf16.xpose.msra.mxu0 0
    %2555 = vmatpush.bf16.xpose.msra.mxu0 0
    %2556 = vmatpush.bf16.xpose.msra.mxu0 0
    %2557 = vmatpush.bf16.xpose.msra.mxu0 0
    %2558 = vmatpush.bf16.xpose.msra.mxu0 0
    %2559 = vmatpush.bf16.xpose.msra.mxu0 0
    %2560 = vmatpush.bf16.xpose.msra.mxu0 0
    %2561 = vmatpush.bf16.xpose.msra.mxu0 %v2552
    %2562 = vmatmul.bf16.gmra.mxu0 %v2549
    %v2563 = vpop.f32.mrf.mxu0
    %v2564 = vadd.f32 0.0, %v2563
    %v2565 = vpop.f32.mrf.mxu0
    %2566 = vdwg.mxu0
    %v2567 = vmul.f32 %v2541, 0.35355338
    %v2568 = vmul.f32 %v2564, 0.35355338
    %v2569 = vadd.f32 %v2567, %v442
    %v2570 = vadd.f32 %v2568, %v442
    %v2571 = vsel %vm673, %v2569, -inf
    %2572 = vmax.xlane.f32.xlu0 %v2571
    %v2573 = vpop.xlane.xlu0 %2572
    %v2574 = vsel %vm673, %v2570, -inf
    %2575 = vmax.xlane.f32.xlu0 %v2574
    %v2576 = vpop.xlane.xlu0 %2575
    %v2577 = vsub.f32 %v2569, %v2573
    %v2578 = vsub.f32 %v2570, %v2576
    %v2579 = vmul.f32 %v2577, 1.442695
    %v2580 = vpow.pop %v2579
    %v2581 = vmul.f32 %v2578, 1.442695
    %v2582 = vpow.pop %v2581
    %v2583 = vsel %vm673, %v2580, 0.0
    %2584 = vadd.xlane.f32.xlu0 %v2583
    %v2585 = vpop.xlane.xlu0 %2584
    %v2586 = vsel %vm673, %v2582, 0.0
    %2587 = vadd.xlane.f32.xlu0 %v2586
    %v2588 = vpop.xlane.xlu0 %2587
    %v2589 = vrcp.pop %v2585
    %v2590 = vrcp.pop %v2588
    %v2591 = vmul.f32 %v2580, %v2589
    %v2592 = vmul.f32 %v2582, %v2590
    %v2593 = vpack.c.bf16 %v2591, %v2591
    %v2594 = vpack.c.bf16 %v2592, %v2592
    %2595 = vrot.lane.b32.xlu0 %v2289, 48
    %v2596 = vpop.permute.xlu0 %2595
    %v2598 = vsel %vm673, %v2593, 0
    %v2601 = vsel %vm748, %v2596, 0
    %2603 = vmatpush.bf16.msra.mxu0 0
    %2604 = vmatpush.bf16.msra.mxu0 0
    %2605 = vmatpush.bf16.msra.mxu0 0
    %2606 = vmatpush.bf16.msra.mxu0 0
    %2607 = vmatpush.bf16.msra.mxu0 0
    %2608 = vmatpush.bf16.msra.mxu0 0
    %2609 = vmatpush.bf16.msra.mxu0 0
    %2610 = vmatpush.bf16.msra.mxu0 %v2601
    %2611 = vmatmul.bf16.gmra.mxu0 %v2598
    %v2612 = vpop.f32.mrf.mxu0
    %v2613 = vadd.f32 0.0, %v2612
    %v2614 = vpop.f32.mrf.mxu0
    %2615 = vdwg.mxu0
    %2616 = vrot.lane.b32.xlu0 %v2313, 48
    %v2617 = vpop.permute.xlu0 %2616
    %v2619 = vsel %vm673, %v2594, 0
    %v2622 = vsel %vm748, %v2617, 0
    %2624 = vmatpush.bf16.msra.mxu0 0
    %2625 = vmatpush.bf16.msra.mxu0 0
    %2626 = vmatpush.bf16.msra.mxu0 0
    %2627 = vmatpush.bf16.msra.mxu0 0
    %2628 = vmatpush.bf16.msra.mxu0 0
    %2629 = vmatpush.bf16.msra.mxu0 0
    %2630 = vmatpush.bf16.msra.mxu0 0
    %2631 = vmatpush.bf16.msra.mxu0 %v2622
    %2632 = vmatmul.bf16.gmra.mxu0 %v2619
    %v2633 = vpop.f32.mrf.mxu0
    %v2634 = vadd.f32 0.0, %v2633
    %v2635 = vpop.f32.mrf.mxu0
    %2636 = vdwg.mxu0
    %2637 = vrot.lane.b32.xlu0 %v2289, 104
    %v2638 = vpop.permute.xlu0 %2637
    %2639 = vrot.lane.b32.xlu0 %v2289, 72
    %v2640 = vpop.permute.xlu0 %2639
    %v2642 = vsel %vm673, %v2638, 0
    %v2645 = vsel %vm673, %v2640, 0
    %2647 = vmatpush.bf16.xpose.msra.mxu0 0
    %2648 = vmatpush.bf16.xpose.msra.mxu0 0
    %2649 = vmatpush.bf16.xpose.msra.mxu0 0
    %2650 = vmatpush.bf16.xpose.msra.mxu0 0
    %2651 = vmatpush.bf16.xpose.msra.mxu0 0
    %2652 = vmatpush.bf16.xpose.msra.mxu0 0
    %2653 = vmatpush.bf16.xpose.msra.mxu0 0
    %2654 = vmatpush.bf16.xpose.msra.mxu0 %v2645
    %2655 = vmatmul.bf16.gmra.mxu0 %v2642
    %v2656 = vpop.f32.mrf.mxu0
    %v2657 = vadd.f32 0.0, %v2656
    %v2658 = vpop.f32.mrf.mxu0
    %2659 = vdwg.mxu0
    %2660 = vrot.lane.b32.xlu0 %v2313, 104
    %v2661 = vpop.permute.xlu0 %2660
    %2662 = vrot.lane.b32.xlu0 %v2313, 72
    %v2663 = vpop.permute.xlu0 %2662
    %v2665 = vsel %vm673, %v2661, 0
    %v2668 = vsel %vm673, %v2663, 0
    %2670 = vmatpush.bf16.xpose.msra.mxu0 0
    %2671 = vmatpush.bf16.xpose.msra.mxu0 0
    %2672 = vmatpush.bf16.xpose.msra.mxu0 0
    %2673 = vmatpush.bf16.xpose.msra.mxu0 0
    %2674 = vmatpush.bf16.xpose.msra.mxu0 0
    %2675 = vmatpush.bf16.xpose.msra.mxu0 0
    %2676 = vmatpush.bf16.xpose.msra.mxu0 0
    %2677 = vmatpush.bf16.xpose.msra.mxu0 %v2668
    %2678 = vmatmul.bf16.gmra.mxu0 %v2665
    %v2679 = vpop.f32.mrf.mxu0
    %v2680 = vadd.f32 0.0, %v2679
    %v2681 = vpop.f32.mrf.mxu0
    %2682 = vdwg.mxu0
    %v2683 = vmul.f32 %v2657, 0.35355338
    %v2684 = vmul.f32 %v2680, 0.35355338
    %v2685 = vadd.f32 %v2683, %v442
    %v2686 = vadd.f32 %v2684, %v442
    %v2687 = vsel %vm673, %v2685, -inf
    %2688 = vmax.xlane.f32.xlu0 %v2687
    %v2689 = vpop.xlane.xlu0 %2688
    %v2690 = vsel %vm673, %v2686, -inf
    %2691 = vmax.xlane.f32.xlu0 %v2690
    %v2692 = vpop.xlane.xlu0 %2691
    %v2693 = vsub.f32 %v2685, %v2689
    %v2694 = vsub.f32 %v2686, %v2692
    %v2695 = vmul.f32 %v2693, 1.442695
    %v2696 = vpow.pop %v2695
    %v2697 = vmul.f32 %v2694, 1.442695
    %v2698 = vpow.pop %v2697
    %v2699 = vsel %vm673, %v2696, 0.0
    %2700 = vadd.xlane.f32.xlu0 %v2699
    %v2701 = vpop.xlane.xlu0 %2700
    %v2702 = vsel %vm673, %v2698, 0.0
    %2703 = vadd.xlane.f32.xlu0 %v2702
    %v2704 = vpop.xlane.xlu0 %2703
    %v2705 = vrcp.pop %v2701
    %v2706 = vrcp.pop %v2704
    %v2707 = vmul.f32 %v2696, %v2705
    %v2708 = vmul.f32 %v2698, %v2706
    %v2709 = vpack.c.bf16 %v2707, %v2707
    %v2710 = vpack.c.bf16 %v2708, %v2708
    %2711 = vrot.lane.b32.xlu0 %v2289, 40
    %v2712 = vpop.permute.xlu0 %2711
    %v2714 = vsel %vm673, %v2709, 0
    %v2717 = vsel %vm748, %v2712, 0
    %2719 = vmatpush.bf16.msra.mxu0 0
    %2720 = vmatpush.bf16.msra.mxu0 0
    %2721 = vmatpush.bf16.msra.mxu0 0
    %2722 = vmatpush.bf16.msra.mxu0 0
    %2723 = vmatpush.bf16.msra.mxu0 0
    %2724 = vmatpush.bf16.msra.mxu0 0
    %2725 = vmatpush.bf16.msra.mxu0 0
    %2726 = vmatpush.bf16.msra.mxu0 %v2717
    %2727 = vmatmul.bf16.gmra.mxu0 %v2714
    %v2728 = vpop.f32.mrf.mxu0
    %v2729 = vadd.f32 0.0, %v2728
    %v2730 = vpop.f32.mrf.mxu0
    %2731 = vdwg.mxu0
    %2732 = vrot.lane.b32.xlu0 %v2313, 40
    %v2733 = vpop.permute.xlu0 %2732
    %v2735 = vsel %vm673, %v2710, 0
    %v2738 = vsel %vm748, %v2733, 0
    %2740 = vmatpush.bf16.msra.mxu0 0
    %2741 = vmatpush.bf16.msra.mxu0 0
    %2742 = vmatpush.bf16.msra.mxu0 0
    %2743 = vmatpush.bf16.msra.mxu0 0
    %2744 = vmatpush.bf16.msra.mxu0 0
    %2745 = vmatpush.bf16.msra.mxu0 0
    %2746 = vmatpush.bf16.msra.mxu0 0
    %2747 = vmatpush.bf16.msra.mxu0 %v2738
    %2748 = vmatmul.bf16.gmra.mxu0 %v2735
    %v2749 = vpop.f32.mrf.mxu0
    %v2750 = vadd.f32 0.0, %v2749
    %v2751 = vpop.f32.mrf.mxu0
    %2752 = vdwg.mxu0
    %2755 = vrot.lane.b32.xlu0 %v2497, 8
    %v2756 = vpop.permute.xlu0 %2755
    %2757 = vrot.lane.b32.xlu0 %v2518, 8
    %v2758 = vpop.permute.xlu0 %2757
    %2763 = vrot.lane.b32.xlu0 %v2613, 16
    %v2764 = vpop.permute.xlu0 %2763
    %2765 = vrot.lane.b32.xlu0 %v2634, 16
    %v2766 = vpop.permute.xlu0 %2765
    %2771 = vrot.lane.b32.xlu0 %v2729, 24
    %v2772 = vpop.permute.xlu0 %2771
    %2773 = vrot.lane.b32.xlu0 %v2750, 24
    %v2774 = vpop.permute.xlu0 %2773
    %v2777 = vsel %vm673, %v2381, %v2756
    %v2778 = vsel %vm673, %v2402, %v2758
    %v2779 = vsel %vm1154, %v2777, %v2764
    %v2780 = vsel %vm1154, %v2778, %v2766
    %v2781 = vsel %vm1157, %v2779, %v2772
    %v2782 = vsel %vm1157, %v2780, %v2774
    %v2783 = vpack.c.bf16 %v2782, %v2781
    %v2785 = vperm.slane %v493, 0
    %v2791 = vunpack.c.l.b16 %v495
    %v2792 = vunpack.c.l.b16 %v496
    %v2793 = vunpack.c.l.b16 %v497
    %v2794 = vunpack.c.l.b16 %v498
    %v2795 = vpack.c.b16 %v2792, %v2791
    %v2796 = vpack.c.b16 %v2794, %v2793
    %v2800 = vsel %vm648, %v2783, 0
    %2802 = vmatpush.bf16.msra.mxu0 0
    %2803 = vmatpush.bf16.msra.mxu0 0
    %2804 = vmatpush.bf16.msra.mxu0 0
    %2805 = vmatpush.bf16.msra.mxu0 0
    %2806 = vmatpush.bf16.msra.mxu0 0
    %2807 = vmatpush.bf16.msra.mxu0 0
    %2808 = vmatpush.bf16.msra.mxu0 %v2796
    %2809 = vmatpush.bf16.msra.mxu0 %v2795
    %2810 = vmatmul.bf16.gmra.mxu0 %v2800
    %v2811 = vpop.f32.mrf.mxu0
    %v2812 = vadd.f32 %v2785, %v2811
    %v2813 = vpop.f32.mrf.mxu0
    %v2814 = vadd.f32 %v2785, %v2813
    %2815 = vdwg.mxu0
    %v2816 = vadd.f32 %v2250, %v2812
    %v2817 = vadd.f32 %v2251, %v2814
    %v2818 = vsel %vm648, %v2816, 0.0
    %2819 = vadd.xlane.f32.xlu0 %v2818
    %v2820 = vpop.xlane.xlu0 %2819
    %v2821 = vsel %vm648, %v2817, 0.0
    %2822 = vadd.xlane.f32.xlu0 %v2821
    %v2823 = vpop.xlane.xlu0 %2822
    %v2824 = vmul.f32 %v2820, %v1207
    %v2825 = vmul.f32 %v2823, %v1207
    %v2826 = vsub.f32 %v2816, %v2824
    %v2827 = vsub.f32 %v2817, %v2825
    %v2828 = vmul.f32 %v2826, %v2826
    %v2829 = vmul.f32 %v2827, %v2827
    %v2830 = vsel %vm648, %v2828, 0.0
    %2831 = vadd.xlane.f32.xlu0 %v2830
    %v2832 = vpop.xlane.xlu0 %2831
    %v2833 = vsel %vm648, %v2829, 0.0
    %2834 = vadd.xlane.f32.xlu0 %v2833
    %v2835 = vpop.xlane.xlu0 %2834
    %v2836 = vmul.f32 %v2832, %v1207
    %v2837 = vmul.f32 %v2835, %v1207
    %v2838 = vadd.f32 %v2836, 1e-05
    %v2839 = vadd.f32 %v2837, 1e-05
    %v2840 = vrsqrt.pop %v2838
    %v2841 = vmul.f32 %v2840, %v2838
    %v2842 = vmul.f32 %v2841, %v2840
    %v2843 = vmul.f32 0.5, %v2842
    %v2844 = vsub.f32 1.5, %v2843
    %v2845 = vmul.f32 %v2840, %v2844
    %vm2846 = vweird.f32 %v2838
    %vm2847 = vweird.f32 %v2840
    %vm2848 = vmor %vm2846, %vm2847
    %v2849 = vsel %vm2848, %v2840, %v2845
    %v2850 = vrsqrt.pop %v2839
    %v2851 = vmul.f32 %v2850, %v2839
    %v2852 = vmul.f32 %v2851, %v2850
    %v2853 = vmul.f32 0.5, %v2852
    %v2854 = vsub.f32 1.5, %v2853
    %v2855 = vmul.f32 %v2850, %v2854
    %vm2856 = vweird.f32 %v2839
    %vm2857 = vweird.f32 %v2850
    %vm2858 = vmor %vm2856, %vm2857
    %v2859 = vsel %vm2858, %v2850, %v2855
    %v2860 = vmul.f32 %v2826, %v2849
    %v2861 = vmul.f32 %v2827, %v2859
    %v2863 = vperm.slane %v488, 0
    %v2865 = vmul.f32 %v2860, %v2863
    %v2866 = vmul.f32 %v2861, %v2863
    %v2868 = vperm.slane %v487, 0
    %v2870 = vadd.f32 %v2865, %v2868
    %v2871 = vadd.f32 %v2866, %v2868
    %v2872 = vpack.c.bf16 %v2871, %v2870
    %v2874 = vperm.slane %v474, 0
    %v2880 = vunpack.c.l.b16 %v483
    %v2881 = vunpack.c.l.b16 %v484
    %v2882 = vunpack.c.l.b16 %v485
    %v2883 = vunpack.c.l.b16 %v486
    %v2884 = vpack.c.b16 %v2881, %v2880
    %v2885 = vpack.c.b16 %v2883, %v2882
    %v2889 = vsel %vm648, %v2872, 0
    %2891 = vmatpush.bf16.msra.mxu0 0
    %2892 = vmatpush.bf16.msra.mxu0 0
    %2893 = vmatpush.bf16.msra.mxu0 0
    %2894 = vmatpush.bf16.msra.mxu0 0
    %2895 = vmatpush.bf16.msra.mxu0 0
    %2896 = vmatpush.bf16.msra.mxu0 0
    %2897 = vmatpush.bf16.msra.mxu0 %v2885
    %2898 = vmatpush.bf16.msra.mxu0 %v2884
    %2899 = vmatmul.bf16.gmra.mxu0 %v2889
    %v2900 = vpop.f32.mrf.mxu0
    %v2901 = vadd.f32 %v2874, %v2900
    %v2902 = vpop.f32.mrf.mxu0
    %v2903 = vadd.f32 %v2874, %v2902
    %2904 = vdwg.mxu0
    %v2905 = vpack.c.bf16 %v2194, %v2193
    %v2907 = vperm.slane %v472, 0
    %v2913 = vunpack.c.l.b16 %v475
    %v2914 = vunpack.c.l.b16 %v476
    %v2915 = vunpack.c.l.b16 %v477
    %v2916 = vunpack.c.l.b16 %v478
    %v2917 = vpack.c.b16 %v2914, %v2913
    %v2918 = vpack.c.b16 %v2916, %v2915
    %v2922 = vsel %vm648, %v2905, 0
    %2924 = vmatpush.bf16.msra.mxu0 0
    %2925 = vmatpush.bf16.msra.mxu0 0
    %2926 = vmatpush.bf16.msra.mxu0 0
    %2927 = vmatpush.bf16.msra.mxu0 0
    %2928 = vmatpush.bf16.msra.mxu0 0
    %2929 = vmatpush.bf16.msra.mxu0 0
    %2930 = vmatpush.bf16.msra.mxu0 %v2918
    %2931 = vmatpush.bf16.msra.mxu0 %v2917
    %2932 = vmatmul.bf16.gmra.mxu0 %v2922
    %v2933 = vpop.f32.mrf.mxu0
    %v2934 = vadd.f32 %v2907, %v2933
    %v2935 = vpop.f32.mrf.mxu0
    %v2936 = vadd.f32 %v2907, %v2935
    %2937 = vdwg.mxu0
    %v2938 = vpack.c.bf16 %v2901, %v2901
    %v2939 = vpack.c.bf16 %v2903, %v2903
    %v2940 = vpack.c.bf16 %v2934, %v2934
    %v2941 = vpack.c.bf16 %v2936, %v2936
    %v2943 = vsel %vm673, %v2938, 0
    %v2946 = vsel %vm673, %v2940, 0
    %2948 = vmatpush.bf16.xpose.msra.mxu0 0
    %2949 = vmatpush.bf16.xpose.msra.mxu0 0
    %2950 = vmatpush.bf16.xpose.msra.mxu0 0
    %2951 = vmatpush.bf16.xpose.msra.mxu0 0
    %2952 = vmatpush.bf16.xpose.msra.mxu0 0
    %2953 = vmatpush.bf16.xpose.msra.mxu0 0
    %2954 = vmatpush.bf16.xpose.msra.mxu0 0
    %2955 = vmatpush.bf16.xpose.msra.mxu0 %v2946
    %2956 = vmatmul.bf16.gmra.mxu0 %v2943
    %v2957 = vpop.f32.mrf.mxu0
    %v2958 = vadd.f32 0.0, %v2957
    %v2959 = vpop.f32.mrf.mxu0
    %2960 = vdwg.mxu0
    %v2962 = vsel %vm673, %v2939, 0
    %v2965 = vsel %vm673, %v2941, 0
    %2967 = vmatpush.bf16.xpose.msra.mxu0 0
    %2968 = vmatpush.bf16.xpose.msra.mxu0 0
    %2969 = vmatpush.bf16.xpose.msra.mxu0 0
    %2970 = vmatpush.bf16.xpose.msra.mxu0 0
    %2971 = vmatpush.bf16.xpose.msra.mxu0 0
    %2972 = vmatpush.bf16.xpose.msra.mxu0 0
    %2973 = vmatpush.bf16.xpose.msra.mxu0 0
    %2974 = vmatpush.bf16.xpose.msra.mxu0 %v2965
    %2975 = vmatmul.bf16.gmra.mxu0 %v2962
    %v2976 = vpop.f32.mrf.mxu0
    %v2977 = vadd.f32 0.0, %v2976
    %v2978 = vpop.f32.mrf.mxu0
    %2979 = vdwg.mxu0
    %v2980 = vmul.f32 %v2958, 0.35355338
    %v2981 = vmul.f32 %v2977, 0.35355338
    %v2982 = vsel %vm673, %v2980, -inf
    %2983 = vmax.xlane.f32.xlu0 %v2982
    %v2984 = vpop.xlane.xlu0 %2983
    %v2985 = vsel %vm673, %v2981, -inf
    %2986 = vmax.xlane.f32.xlu0 %v2985
    %v2987 = vpop.xlane.xlu0 %2986
    %v2988 = vsub.f32 %v2980, %v2984
    %v2989 = vsub.f32 %v2981, %v2987
    %v2990 = vmul.f32 %v2988, 1.442695
    %v2991 = vpow.pop %v2990
    %v2992 = vmul.f32 %v2989, 1.442695
    %v2993 = vpow.pop %v2992
    %v2994 = vsel %vm673, %v2991, 0.0
    %2995 = vadd.xlane.f32.xlu0 %v2994
    %v2996 = vpop.xlane.xlu0 %2995
    %v2997 = vsel %vm673, %v2993, 0.0
    %2998 = vadd.xlane.f32.xlu0 %v2997
    %v2999 = vpop.xlane.xlu0 %2998
    %v3000 = vrcp.pop %v2996
    %v3001 = vrcp.pop %v2999
    %v3002 = vmul.f32 %v2991, %v3000
    %v3003 = vmul.f32 %v2993, %v3001
    %v3004 = vpack.c.bf16 %v3002, %v3002
    %v3005 = vpack.c.bf16 %v3003, %v3003
    %v3007 = vunpack.c.l.b16 %v2940
    %v3008 = vpack.c.b16 %v3007, %v3007
    %3009 = vrot.lane.b32.xlu0 %v3008, 96
    %v3010 = vpop.permute.xlu0 %3009
    %v3012 = vsel %vm673, %v3004, 0
    %v3015 = vsel %vm748, %v3010, 0
    %3017 = vmatpush.bf16.msra.mxu0 0
    %3018 = vmatpush.bf16.msra.mxu0 0
    %3019 = vmatpush.bf16.msra.mxu0 0
    %3020 = vmatpush.bf16.msra.mxu0 0
    %3021 = vmatpush.bf16.msra.mxu0 0
    %3022 = vmatpush.bf16.msra.mxu0 0
    %3023 = vmatpush.bf16.msra.mxu0 0
    %3024 = vmatpush.bf16.msra.mxu0 %v3015
    %3025 = vmatmul.bf16.gmra.mxu0 %v3012
    %v3026 = vpop.f32.mrf.mxu0
    %v3027 = vadd.f32 0.0, %v3026
    %v3028 = vpop.f32.mrf.mxu0
    %3029 = vdwg.mxu0
    %v3031 = vunpack.c.l.b16 %v2941
    %v3032 = vpack.c.b16 %v3031, %v3031
    %3033 = vrot.lane.b32.xlu0 %v3032, 96
    %v3034 = vpop.permute.xlu0 %3033
    %v3036 = vsel %vm673, %v3005, 0
    %v3039 = vsel %vm748, %v3034, 0
    %3041 = vmatpush.bf16.msra.mxu0 0
    %3042 = vmatpush.bf16.msra.mxu0 0
    %3043 = vmatpush.bf16.msra.mxu0 0
    %3044 = vmatpush.bf16.msra.mxu0 0
    %3045 = vmatpush.bf16.msra.mxu0 0
    %3046 = vmatpush.bf16.msra.mxu0 0
    %3047 = vmatpush.bf16.msra.mxu0 0
    %3048 = vmatpush.bf16.msra.mxu0 %v3039
    %3049 = vmatmul.bf16.gmra.mxu0 %v3036
    %v3050 = vpop.f32.mrf.mxu0
    %v3051 = vadd.f32 0.0, %v3050
    %v3052 = vpop.f32.mrf.mxu0
    %3053 = vdwg.mxu0
    %v3055 = vunpack.c.l.b16 %v2938
    %v3056 = vpack.c.b16 %v3055, %v3055
    %3057 = vrot.lane.b32.xlu0 %v3056, 120
    %v3058 = vpop.permute.xlu0 %3057
    %3059 = vrot.lane.b32.xlu0 %v3008, 120
    %v3060 = vpop.permute.xlu0 %3059
    %v3062 = vsel %vm673, %v3058, 0
    %v3065 = vsel %vm673, %v3060, 0
    %3067 = vmatpush.bf16.xpose.msra.mxu0 0
    %3068 = vmatpush.bf16.xpose.msra.mxu0 0
    %3069 = vmatpush.bf16.xpose.msra.mxu0 0
    %3070 = vmatpush.bf16.xpose.msra.mxu0 0
    %3071 = vmatpush.bf16.xpose.msra.mxu0 0
    %3072 = vmatpush.bf16.xpose.msra.mxu0 0
    %3073 = vmatpush.bf16.xpose.msra.mxu0 0
    %3074 = vmatpush.bf16.xpose.msra.mxu0 %v3065
    %3075 = vmatmul.bf16.gmra.mxu0 %v3062
    %v3076 = vpop.f32.mrf.mxu0
    %v3077 = vadd.f32 0.0, %v3076
    %v3078 = vpop.f32.mrf.mxu0
    %3079 = vdwg.mxu0
    %v3081 = vunpack.c.l.b16 %v2939
    %v3082 = vpack.c.b16 %v3081, %v3081
    %3083 = vrot.lane.b32.xlu0 %v3082, 120
    %v3084 = vpop.permute.xlu0 %3083
    %3085 = vrot.lane.b32.xlu0 %v3032, 120
    %v3086 = vpop.permute.xlu0 %3085
    %v3088 = vsel %vm673, %v3084, 0
    %v3091 = vsel %vm673, %v3086, 0
    %3093 = vmatpush.bf16.xpose.msra.mxu0 0
    %3094 = vmatpush.bf16.xpose.msra.mxu0 0
    %3095 = vmatpush.bf16.xpose.msra.mxu0 0
    %3096 = vmatpush.bf16.xpose.msra.mxu0 0
    %3097 = vmatpush.bf16.xpose.msra.mxu0 0
    %3098 = vmatpush.bf16.xpose.msra.mxu0 0
    %3099 = vmatpush.bf16.xpose.msra.mxu0 0
    %3100 = vmatpush.bf16.xpose.msra.mxu0 %v3091
    %3101 = vmatmul.bf16.gmra.mxu0 %v3088
    %v3102 = vpop.f32.mrf.mxu0
    %v3103 = vadd.f32 0.0, %v3102
    %v3104 = vpop.f32.mrf.mxu0
    %3105 = vdwg.mxu0
    %v3106 = vmul.f32 %v3077, 0.35355338
    %v3107 = vmul.f32 %v3103, 0.35355338
    %v3108 = vsel %vm673, %v3106, -inf
    %3109 = vmax.xlane.f32.xlu0 %v3108
    %v3110 = vpop.xlane.xlu0 %3109
    %v3111 = vsel %vm673, %v3107, -inf
    %3112 = vmax.xlane.f32.xlu0 %v3111
    %v3113 = vpop.xlane.xlu0 %3112
    %v3114 = vsub.f32 %v3106, %v3110
    %v3115 = vsub.f32 %v3107, %v3113
    %v3116 = vmul.f32 %v3114, 1.442695
    %v3117 = vpow.pop %v3116
    %v3118 = vmul.f32 %v3115, 1.442695
    %v3119 = vpow.pop %v3118
    %v3120 = vsel %vm673, %v3117, 0.0
    %3121 = vadd.xlane.f32.xlu0 %v3120
    %v3122 = vpop.xlane.xlu0 %3121
    %v3123 = vsel %vm673, %v3119, 0.0
    %3124 = vadd.xlane.f32.xlu0 %v3123
    %v3125 = vpop.xlane.xlu0 %3124
    %v3126 = vrcp.pop %v3122
    %v3127 = vrcp.pop %v3125
    %v3128 = vmul.f32 %v3117, %v3126
    %v3129 = vmul.f32 %v3119, %v3127
    %v3130 = vpack.c.bf16 %v3128, %v3128
    %v3131 = vpack.c.bf16 %v3129, %v3129
    %3132 = vrot.lane.b32.xlu0 %v3008, 88
    %v3133 = vpop.permute.xlu0 %3132
    %v3135 = vsel %vm673, %v3130, 0
    %v3138 = vsel %vm748, %v3133, 0
    %3140 = vmatpush.bf16.msra.mxu0 0
    %3141 = vmatpush.bf16.msra.mxu0 0
    %3142 = vmatpush.bf16.msra.mxu0 0
    %3143 = vmatpush.bf16.msra.mxu0 0
    %3144 = vmatpush.bf16.msra.mxu0 0
    %3145 = vmatpush.bf16.msra.mxu0 0
    %3146 = vmatpush.bf16.msra.mxu0 0
    %3147 = vmatpush.bf16.msra.mxu0 %v3138
    %3148 = vmatmul.bf16.gmra.mxu0 %v3135
    %v3149 = vpop.f32.mrf.mxu0
    %v3150 = vadd.f32 0.0, %v3149
    %v3151 = vpop.f32.mrf.mxu0
    %3152 = vdwg.mxu0
    %3153 = vrot.lane.b32.xlu0 %v3032, 88
    %v3154 = vpop.permute.xlu0 %3153
    %v3156 = vsel %vm673, %v3131, 0
    %v3159 = vsel %vm748, %v3154, 0
    %3161 = vmatpush.bf16.msra.mxu0 0
    %3162 = vmatpush.bf16.msra.mxu0 0
    %3163 = vmatpush.bf16.msra.mxu0 0
    %3164 = vmatpush.bf16.msra.mxu0 0
    %3165 = vmatpush.bf16.msra.mxu0 0
    %3166 = vmatpush.bf16.msra.mxu0 0
    %3167 = vmatpush.bf16.msra.mxu0 0
    %3168 = vmatpush.bf16.msra.mxu0 %v3159
    %3169 = vmatmul.bf16.gmra.mxu0 %v3156
    %v3170 = vpop.f32.mrf.mxu0
    %v3171 = vadd.f32 0.0, %v3170
    %v3172 = vpop.f32.mrf.mxu0
    %3173 = vdwg.mxu0
    %3174 = vrot.lane.b32.xlu0 %v3056, 112
    %v3175 = vpop.permute.xlu0 %3174
    %3176 = vrot.lane.b32.xlu0 %v3008, 112
    %v3177 = vpop.permute.xlu0 %3176
    %v3179 = vsel %vm673, %v3175, 0
    %v3182 = vsel %vm673, %v3177, 0
    %3184 = vmatpush.bf16.xpose.msra.mxu0 0
    %3185 = vmatpush.bf16.xpose.msra.mxu0 0
    %3186 = vmatpush.bf16.xpose.msra.mxu0 0
    %3187 = vmatpush.bf16.xpose.msra.mxu0 0
    %3188 = vmatpush.bf16.xpose.msra.mxu0 0
    %3189 = vmatpush.bf16.xpose.msra.mxu0 0
    %3190 = vmatpush.bf16.xpose.msra.mxu0 0
    %3191 = vmatpush.bf16.xpose.msra.mxu0 %v3182
    %3192 = vmatmul.bf16.gmra.mxu0 %v3179
    %v3193 = vpop.f32.mrf.mxu0
    %v3194 = vadd.f32 0.0, %v3193
    %v3195 = vpop.f32.mrf.mxu0
    %3196 = vdwg.mxu0
    %3197 = vrot.lane.b32.xlu0 %v3082, 112
    %v3198 = vpop.permute.xlu0 %3197
    %3199 = vrot.lane.b32.xlu0 %v3032, 112
    %v3200 = vpop.permute.xlu0 %3199
    %v3202 = vsel %vm673, %v3198, 0
    %v3205 = vsel %vm673, %v3200, 0
    %3207 = vmatpush.bf16.xpose.msra.mxu0 0
    %3208 = vmatpush.bf16.xpose.msra.mxu0 0
    %3209 = vmatpush.bf16.xpose.msra.mxu0 0
    %3210 = vmatpush.bf16.xpose.msra.mxu0 0
    %3211 = vmatpush.bf16.xpose.msra.mxu0 0
    %3212 = vmatpush.bf16.xpose.msra.mxu0 0
    %3213 = vmatpush.bf16.xpose.msra.mxu0 0
    %3214 = vmatpush.bf16.xpose.msra.mxu0 %v3205
    %3215 = vmatmul.bf16.gmra.mxu0 %v3202
    %v3216 = vpop.f32.mrf.mxu0
    %v3217 = vadd.f32 0.0, %v3216
    %v3218 = vpop.f32.mrf.mxu0
    %3219 = vdwg.mxu0
    %v3220 = vmul.f32 %v3194, 0.35355338
    %v3221 = vmul.f32 %v3217, 0.35355338
    %v3222 = vsel %vm673, %v3220, -inf
    %3223 = vmax.xlane.f32.xlu0 %v3222
    %v3224 = vpop.xlane.xlu0 %3223
    %v3225 = vsel %vm673, %v3221, -inf
    %3226 = vmax.xlane.f32.xlu0 %v3225
    %v3227 = vpop.xlane.xlu0 %3226
    %v3228 = vsub.f32 %v3220, %v3224
    %v3229 = vsub.f32 %v3221, %v3227
    %v3230 = vmul.f32 %v3228, 1.442695
    %v3231 = vpow.pop %v3230
    %v3232 = vmul.f32 %v3229, 1.442695
    %v3233 = vpow.pop %v3232
    %v3234 = vsel %vm673, %v3231, 0.0
    %3235 = vadd.xlane.f32.xlu0 %v3234
    %v3236 = vpop.xlane.xlu0 %3235
    %v3237 = vsel %vm673, %v3233, 0.0
    %3238 = vadd.xlane.f32.xlu0 %v3237
    %v3239 = vpop.xlane.xlu0 %3238
    %v3240 = vrcp.pop %v3236
    %v3241 = vrcp.pop %v3239
    %v3242 = vmul.f32 %v3231, %v3240
    %v3243 = vmul.f32 %v3233, %v3241
    %v3244 = vpack.c.bf16 %v3242, %v3242
    %v3245 = vpack.c.bf16 %v3243, %v3243
    %3246 = vrot.lane.b32.xlu0 %v3008, 80
    %v3247 = vpop.permute.xlu0 %3246
    %v3249 = vsel %vm673, %v3244, 0
    %v3252 = vsel %vm748, %v3247, 0
    %3254 = vmatpush.bf16.msra.mxu0 0
    %3255 = vmatpush.bf16.msra.mxu0 0
    %3256 = vmatpush.bf16.msra.mxu0 0
    %3257 = vmatpush.bf16.msra.mxu0 0
    %3258 = vmatpush.bf16.msra.mxu0 0
    %3259 = vmatpush.bf16.msra.mxu0 0
    %3260 = vmatpush.bf16.msra.mxu0 0
    %3261 = vmatpush.bf16.msra.mxu0 %v3252
    %3262 = vmatmul.bf16.gmra.mxu0 %v3249
    %v3263 = vpop.f32.mrf.mxu0
    %v3264 = vadd.f32 0.0, %v3263
    %v3265 = vpop.f32.mrf.mxu0
    %3266 = vdwg.mxu0
    %3267 = vrot.lane.b32.xlu0 %v3032, 80
    %v3268 = vpop.permute.xlu0 %3267
    %v3270 = vsel %vm673, %v3245, 0
    %v3273 = vsel %vm748, %v3268, 0
    %3275 = vmatpush.bf16.msra.mxu0 0
    %3276 = vmatpush.bf16.msra.mxu0 0
    %3277 = vmatpush.bf16.msra.mxu0 0
    %3278 = vmatpush.bf16.msra.mxu0 0
    %3279 = vmatpush.bf16.msra.mxu0 0
    %3280 = vmatpush.bf16.msra.mxu0 0
    %3281 = vmatpush.bf16.msra.mxu0 0
    %3282 = vmatpush.bf16.msra.mxu0 %v3273
    %3283 = vmatmul.bf16.gmra.mxu0 %v3270
    %v3284 = vpop.f32.mrf.mxu0
    %v3285 = vadd.f32 0.0, %v3284
    %v3286 = vpop.f32.mrf.mxu0
    %3287 = vdwg.mxu0
    %3288 = vrot.lane.b32.xlu0 %v3056, 104
    %v3289 = vpop.permute.xlu0 %3288
    %3290 = vrot.lane.b32.xlu0 %v3008, 104
    %v3291 = vpop.permute.xlu0 %3290
    %v3293 = vsel %vm673, %v3289, 0
    %v3296 = vsel %vm673, %v3291, 0
    %3298 = vmatpush.bf16.xpose.msra.mxu0 0
    %3299 = vmatpush.bf16.xpose.msra.mxu0 0
    %3300 = vmatpush.bf16.xpose.msra.mxu0 0
    %3301 = vmatpush.bf16.xpose.msra.mxu0 0
    %3302 = vmatpush.bf16.xpose.msra.mxu0 0
    %3303 = vmatpush.bf16.xpose.msra.mxu0 0
    %3304 = vmatpush.bf16.xpose.msra.mxu0 0
    %3305 = vmatpush.bf16.xpose.msra.mxu0 %v3296
    %3306 = vmatmul.bf16.gmra.mxu0 %v3293
    %v3307 = vpop.f32.mrf.mxu0
    %v3308 = vadd.f32 0.0, %v3307
    %v3309 = vpop.f32.mrf.mxu0
    %3310 = vdwg.mxu0
    %3311 = vrot.lane.b32.xlu0 %v3082, 104
    %v3312 = vpop.permute.xlu0 %3311
    %3313 = vrot.lane.b32.xlu0 %v3032, 104
    %v3314 = vpop.permute.xlu0 %3313
    %v3316 = vsel %vm673, %v3312, 0
    %v3319 = vsel %vm673, %v3314, 0
    %3321 = vmatpush.bf16.xpose.msra.mxu0 0
    %3322 = vmatpush.bf16.xpose.msra.mxu0 0
    %3323 = vmatpush.bf16.xpose.msra.mxu0 0
    %3324 = vmatpush.bf16.xpose.msra.mxu0 0
    %3325 = vmatpush.bf16.xpose.msra.mxu0 0
    %3326 = vmatpush.bf16.xpose.msra.mxu0 0
    %3327 = vmatpush.bf16.xpose.msra.mxu0 0
    %3328 = vmatpush.bf16.xpose.msra.mxu0 %v3319
    %3329 = vmatmul.bf16.gmra.mxu0 %v3316
    %v3330 = vpop.f32.mrf.mxu0
    %v3331 = vadd.f32 0.0, %v3330
    %v3332 = vpop.f32.mrf.mxu0
    %3333 = vdwg.mxu0
    %v3334 = vmul.f32 %v3308, 0.35355338
    %v3335 = vmul.f32 %v3331, 0.35355338
    %v3336 = vsel %vm673, %v3334, -inf
    %3337 = vmax.xlane.f32.xlu0 %v3336
    %v3338 = vpop.xlane.xlu0 %3337
    %v3339 = vsel %vm673, %v3335, -inf
    %3340 = vmax.xlane.f32.xlu0 %v3339
    %v3341 = vpop.xlane.xlu0 %3340
    %v3342 = vsub.f32 %v3334, %v3338
    %v3343 = vsub.f32 %v3335, %v3341
    %v3344 = vmul.f32 %v3342, 1.442695
    %v3345 = vpow.pop %v3344
    %v3346 = vmul.f32 %v3343, 1.442695
    %v3347 = vpow.pop %v3346
    %v3348 = vsel %vm673, %v3345, 0.0
    %3349 = vadd.xlane.f32.xlu0 %v3348
    %v3350 = vpop.xlane.xlu0 %3349
    %v3351 = vsel %vm673, %v3347, 0.0
    %3352 = vadd.xlane.f32.xlu0 %v3351
    %v3353 = vpop.xlane.xlu0 %3352
    %v3354 = vrcp.pop %v3350
    %v3355 = vrcp.pop %v3353
    %v3356 = vmul.f32 %v3345, %v3354
    %v3357 = vmul.f32 %v3347, %v3355
    %v3358 = vpack.c.bf16 %v3356, %v3356
    %v3359 = vpack.c.bf16 %v3357, %v3357
    %3360 = vrot.lane.b32.xlu0 %v3008, 72
    %v3361 = vpop.permute.xlu0 %3360
    %v3363 = vsel %vm673, %v3358, 0
    %v3366 = vsel %vm748, %v3361, 0
    %3368 = vmatpush.bf16.msra.mxu0 0
    %3369 = vmatpush.bf16.msra.mxu0 0
    %3370 = vmatpush.bf16.msra.mxu0 0
    %3371 = vmatpush.bf16.msra.mxu0 0
    %3372 = vmatpush.bf16.msra.mxu0 0
    %3373 = vmatpush.bf16.msra.mxu0 0
    %3374 = vmatpush.bf16.msra.mxu0 0
    %3375 = vmatpush.bf16.msra.mxu0 %v3366
    %3376 = vmatmul.bf16.gmra.mxu0 %v3363
    %v3377 = vpop.f32.mrf.mxu0
    %v3378 = vadd.f32 0.0, %v3377
    %v3379 = vpop.f32.mrf.mxu0
    %3380 = vdwg.mxu0
    %3381 = vrot.lane.b32.xlu0 %v3032, 72
    %v3382 = vpop.permute.xlu0 %3381
    %v3384 = vsel %vm673, %v3359, 0
    %v3387 = vsel %vm748, %v3382, 0
    %3389 = vmatpush.bf16.msra.mxu0 0
    %3390 = vmatpush.bf16.msra.mxu0 0
    %3391 = vmatpush.bf16.msra.mxu0 0
    %3392 = vmatpush.bf16.msra.mxu0 0
    %3393 = vmatpush.bf16.msra.mxu0 0
    %3394 = vmatpush.bf16.msra.mxu0 0
    %3395 = vmatpush.bf16.msra.mxu0 0
    %3396 = vmatpush.bf16.msra.mxu0 %v3387
    %3397 = vmatmul.bf16.gmra.mxu0 %v3384
    %v3398 = vpop.f32.mrf.mxu0
    %v3399 = vadd.f32 0.0, %v3398
    %v3400 = vpop.f32.mrf.mxu0
    %3401 = vdwg.mxu0
    %3404 = vrot.lane.b32.xlu0 %v3150, 8
    %v3405 = vpop.permute.xlu0 %3404
    %3406 = vrot.lane.b32.xlu0 %v3171, 8
    %v3407 = vpop.permute.xlu0 %3406
    %3412 = vrot.lane.b32.xlu0 %v3264, 16
    %v3413 = vpop.permute.xlu0 %3412
    %3414 = vrot.lane.b32.xlu0 %v3285, 16
    %v3415 = vpop.permute.xlu0 %3414
    %3420 = vrot.lane.b32.xlu0 %v3378, 24
    %v3421 = vpop.permute.xlu0 %3420
    %3422 = vrot.lane.b32.xlu0 %v3399, 24
    %v3423 = vpop.permute.xlu0 %3422
    %v3426 = vsel %vm673, %v3027, %v3405
    %v3427 = vsel %vm673, %v3051, %v3407
    %v3428 = vsel %vm1154, %v3426, %v3413
    %v3429 = vsel %vm1154, %v3427, %v3415
    %v3430 = vsel %vm1157, %v3428, %v3421
    %v3431 = vsel %vm1157, %v3429, %v3423
    %v3432 = vpack.c.bf16 %v3431, %v3430
    %v3434 = vperm.slane %v473, 0
    %v3440 = vunpack.c.l.b16 %v479
    %v3441 = vunpack.c.l.b16 %v480
    %v3442 = vunpack.c.l.b16 %v481
    %v3443 = vunpack.c.l.b16 %v482
    %v3444 = vpack.c.b16 %v3441, %v3440
    %v3445 = vpack.c.b16 %v3443, %v3442
    %v3449 = vsel %vm648, %v3432, 0
    %3451 = vmatpush.bf16.msra.mxu0 0
    %3452 = vmatpush.bf16.msra.mxu0 0
    %3453 = vmatpush.bf16.msra.mxu0 0
    %3454 = vmatpush.bf16.msra.mxu0 0
    %3455 = vmatpush.bf16.msra.mxu0 0
    %3456 = vmatpush.bf16.msra.mxu0 0
    %3457 = vmatpush.bf16.msra.mxu0 %v3445
    %3458 = vmatpush.bf16.msra.mxu0 %v3444
    %3459 = vmatmul.bf16.gmra.mxu0 %v3449
    %v3460 = vpop.f32.mrf.mxu0
    %v3461 = vadd.f32 %v3434, %v3460
    %v3462 = vpop.f32.mrf.mxu0
    %v3463 = vadd.f32 %v3434, %v3462
    %3464 = vdwg.mxu0
    %v3465 = vadd.f32 %v2870, %v3461
    %v3466 = vadd.f32 %v2871, %v3463
    %v3467 = vsel %vm648, %v3465, 0.0
    %3468 = vadd.xlane.f32.xlu0 %v3467
    %v3469 = vpop.xlane.xlu0 %3468
    %v3470 = vsel %vm648, %v3466, 0.0
    %3471 = vadd.xlane.f32.xlu0 %v3470
    %v3472 = vpop.xlane.xlu0 %3471
    %v3473 = vmul.f32 %v3469, %v1207
    %v3474 = vmul.f32 %v3472, %v1207
    %v3475 = vsub.f32 %v3465, %v3473
    %v3476 = vsub.f32 %v3466, %v3474
    %v3477 = vmul.f32 %v3475, %v3475
    %v3478 = vmul.f32 %v3476, %v3476
    %v3479 = vsel %vm648, %v3477, 0.0
    %3480 = vadd.xlane.f32.xlu0 %v3479
    %v3481 = vpop.xlane.xlu0 %3480
    %v3482 = vsel %vm648, %v3478, 0.0
    %3483 = vadd.xlane.f32.xlu0 %v3482
    %v3484 = vpop.xlane.xlu0 %3483
    %v3485 = vmul.f32 %v3481, %v1207
    %v3486 = vmul.f32 %v3484, %v1207
    %v3487 = vadd.f32 %v3485, 1e-05
    %v3488 = vadd.f32 %v3486, 1e-05
    %v3489 = vrsqrt.pop %v3487
    %v3490 = vmul.f32 %v3489, %v3487
    %v3491 = vmul.f32 %v3490, %v3489
    %v3492 = vmul.f32 0.5, %v3491
    %v3493 = vsub.f32 1.5, %v3492
    %v3494 = vmul.f32 %v3489, %v3493
    %vm3495 = vweird.f32 %v3487
    %vm3496 = vweird.f32 %v3489
    %vm3497 = vmor %vm3495, %vm3496
    %v3498 = vsel %vm3497, %v3489, %v3494
    %v3499 = vrsqrt.pop %v3488
    %v3500 = vmul.f32 %v3499, %v3488
    %v3501 = vmul.f32 %v3500, %v3499
    %v3502 = vmul.f32 0.5, %v3501
    %v3503 = vsub.f32 1.5, %v3502
    %v3504 = vmul.f32 %v3499, %v3503
    %vm3505 = vweird.f32 %v3488
    %vm3506 = vweird.f32 %v3499
    %vm3507 = vmor %vm3505, %vm3506
    %v3508 = vsel %vm3507, %v3499, %v3504
    %v3509 = vmul.f32 %v3475, %v3498
    %v3510 = vmul.f32 %v3476, %v3508
    %v3512 = vperm.slane %v490, 0
    %v3514 = vmul.f32 %v3509, %v3512
    %v3515 = vmul.f32 %v3510, %v3512
    %v3517 = vperm.slane %v489, 0
    %v3519 = vadd.f32 %v3514, %v3517
    %v3520 = vadd.f32 %v3515, %v3517
    %v3521 = vpack.c.bf16 %v3520, %v3519
    %v3523 = vperm.slane %v458, 0
    %v3529 = vunpack.c.l.b16 %v459
    %v3530 = vunpack.c.l.b16 %v460
    %v3531 = vunpack.c.l.b16 %v461
    %v3532 = vunpack.c.l.b16 %v462
    %v3533 = vpack.c.b16 %v3530, %v3529
    %v3534 = vpack.c.b16 %v3532, %v3531
    %v3538 = vsel %vm648, %v3521, 0
    %3540 = vmatpush.bf16.msra.mxu0 0
    %3541 = vmatpush.bf16.msra.mxu0 0
    %3542 = vmatpush.bf16.msra.mxu0 0
    %3543 = vmatpush.bf16.msra.mxu0 0
    %3544 = vmatpush.bf16.msra.mxu0 0
    %3545 = vmatpush.bf16.msra.mxu0 0
    %3546 = vmatpush.bf16.msra.mxu0 %v3534
    %3547 = vmatpush.bf16.msra.mxu0 %v3533
    %3548 = vmatmul.bf16.gmra.mxu0 %v3538
    %v3549 = vpop.f32.mrf.mxu0
    %v3550 = vadd.f32 %v3523, %v3549
    %v3551 = vpop.f32.mrf.mxu0
    %v3552 = vadd.f32 %v3523, %v3551
    %3553 = vdwg.mxu0
    %v3554 = vmax.f32 %v3550, 0.0
    %v3555 = vmax.f32 %v3552, 0.0
    %v3556 = vpack.c.bf16 %v3555, %v3554
    %v3558 = vperm.slane %v463, 0
    %v3568 = vunpack.c.l.b16 %v464
    %v3569 = vunpack.c.l.b16 %v465
    %v3570 = vunpack.c.l.b16 %v466
    %v3571 = vunpack.c.l.b16 %v467
    %v3572 = vunpack.c.l.b16 %v468
    %v3573 = vunpack.c.l.b16 %v469
    %v3574 = vunpack.c.l.b16 %v470
    %v3575 = vunpack.c.l.b16 %v471
    %v3576 = vpack.c.b16 %v3569, %v3568
    %v3577 = vpack.c.b16 %v3571, %v3570
    %v3578 = vpack.c.b16 %v3573, %v3572
    %v3579 = vpack.c.b16 %v3575, %v3574
    %v3585 = vsel %vm1319, %v3556, 0
    %3587 = vmatpush.bf16.msra.mxu0 0
    %3588 = vmatpush.bf16.msra.mxu0 0
    %3589 = vmatpush.bf16.msra.mxu0 0
    %3590 = vmatpush.bf16.msra.mxu0 0
    %3591 = vmatpush.bf16.msra.mxu0 %v3579
    %3592 = vmatpush.bf16.msra.mxu0 %v3578
    %3593 = vmatpush.bf16.msra.mxu0 %v3577
    %3594 = vmatpush.bf16.msra.mxu0 %v3576
    %3595 = vmatmul.bf16.gmra.mxu0 %v3585
    %v3596 = vpop.f32.mrf.mxu0
    %v3597 = vadd.f32 %v3558, %v3596
    %v3598 = vpop.f32.mrf.mxu0
    %v3599 = vadd.f32 %v3558, %v3598
    %3600 = vdwg.mxu0
    %v3601 = vadd.f32 %v3519, %v3597
    %v3602 = vadd.f32 %v3520, %v3599
    %v3603 = vsel %vm648, %v3601, 0.0
    %3604 = vadd.xlane.f32.xlu0 %v3603
    %v3605 = vpop.xlane.xlu0 %3604
    %v3606 = vsel %vm648, %v3602, 0.0
    %3607 = vadd.xlane.f32.xlu0 %v3606
    %v3608 = vpop.xlane.xlu0 %3607
    %v3609 = vmul.f32 %v3605, %v1207
    %v3610 = vmul.f32 %v3608, %v1207
    %v3611 = vsub.f32 %v3601, %v3609
    %v3612 = vsub.f32 %v3602, %v3610
    %v3613 = vmul.f32 %v3611, %v3611
    %v3614 = vmul.f32 %v3612, %v3612
    %v3615 = vsel %vm648, %v3613, 0.0
    %3616 = vadd.xlane.f32.xlu0 %v3615
    %v3617 = vpop.xlane.xlu0 %3616
    %v3618 = vsel %vm648, %v3614, 0.0
    %3619 = vadd.xlane.f32.xlu0 %v3618
    %v3620 = vpop.xlane.xlu0 %3619
    %v3621 = vmul.f32 %v3617, %v1207
    %v3622 = vmul.f32 %v3620, %v1207
    %v3623 = vadd.f32 %v3621, 1e-05
    %v3624 = vadd.f32 %v3622, 1e-05
    %v3625 = vrsqrt.pop %v3623
    %v3626 = vmul.f32 %v3625, %v3623
    %v3627 = vmul.f32 %v3626, %v3625
    %v3628 = vmul.f32 0.5, %v3627
    %v3629 = vsub.f32 1.5, %v3628
    %v3630 = vmul.f32 %v3625, %v3629
    %vm3631 = vweird.f32 %v3623
    %vm3632 = vweird.f32 %v3625
    %vm3633 = vmor %vm3631, %vm3632
    %v3634 = vsel %vm3633, %v3625, %v3630
    %v3635 = vrsqrt.pop %v3624
    %v3636 = vmul.f32 %v3635, %v3624
    %v3637 = vmul.f32 %v3636, %v3635
    %v3638 = vmul.f32 0.5, %v3637
    %v3639 = vsub.f32 1.5, %v3638
    %v3640 = vmul.f32 %v3635, %v3639
    %vm3641 = vweird.f32 %v3624
    %vm3642 = vweird.f32 %v3635
    %vm3643 = vmor %vm3641, %vm3642
    %v3644 = vsel %vm3643, %v3635, %v3640
    %v3645 = vmul.f32 %v3611, %v3634
    %v3646 = vmul.f32 %v3612, %v3644
    %v3648 = vperm.slane %v492, 0
    %v3650 = vmul.f32 %v3645, %v3648
    %v3651 = vmul.f32 %v3646, %v3648
    %v3653 = vperm.slane %v491, 0
    %v3655 = vadd.f32 %v3650, %v3653
    %v3656 = vadd.f32 %v3651, %v3653
    %v3657 = vsel %vm648, %v3655, 0.0
    %3658 = vadd.xlane.f32.xlu0 %v3657
    %v3659 = vpop.xlane.xlu0 %3658
    %v3660 = vsel %vm648, %v3656, 0.0
    %3661 = vadd.xlane.f32.xlu0 %v3660
    %v3662 = vpop.xlane.xlu0 %3661
    %v3663 = vmul.f32 %v3659, %v1207
    %v3664 = vmul.f32 %v3662, %v1207
    %v3665 = vsub.f32 %v3655, %v3663
    %v3666 = vsub.f32 %v3656, %v3664
    %v3667 = vmul.f32 %v3665, %v3665
    %v3668 = vmul.f32 %v3666, %v3666
    %v3669 = vsel %vm648, %v3667, 0.0
    %3670 = vadd.xlane.f32.xlu0 %v3669
    %v3671 = vpop.xlane.xlu0 %3670
    %v3672 = vsel %vm648, %v3668, 0.0
    %3673 = vadd.xlane.f32.xlu0 %v3672
    %v3674 = vpop.xlane.xlu0 %3673
    %v3675 = vmul.f32 %v3671, %v1207
    %v3676 = vmul.f32 %v3674, %v1207
    %v3677 = vadd.f32 %v3675, 1e-05
    %v3678 = vadd.f32 %v3676, 1e-05
    %v3679 = vrsqrt.pop %v3677
    %v3680 = vmul.f32 %v3679, %v3677
    %v3681 = vmul.f32 %v3680, %v3679
    %v3682 = vmul.f32 0.5, %v3681
    %v3683 = vsub.f32 1.5, %v3682
    %v3684 = vmul.f32 %v3679, %v3683
    %vm3685 = vweird.f32 %v3677
    %vm3686 = vweird.f32 %v3679
    %vm3687 = vmor %vm3685, %vm3686
    %v3688 = vsel %vm3687, %v3679, %v3684
    %v3689 = vrsqrt.pop %v3678
    %v3690 = vmul.f32 %v3689, %v3678
    %v3691 = vmul.f32 %v3690, %v3689
    %v3692 = vmul.f32 0.5, %v3691
    %v3693 = vsub.f32 1.5, %v3692
    %v3694 = vmul.f32 %v3689, %v3693
    %vm3695 = vweird.f32 %v3678
    %vm3696 = vweird.f32 %v3689
    %vm3697 = vmor %vm3695, %vm3696
    %v3698 = vsel %vm3697, %v3689, %v3694
    %v3699 = vmul.f32 %v3665, %v3688
    %v3700 = vmul.f32 %v3666, %v3698
    %v3702 = vperm.slane %v504, 0
    %v3704 = vmul.f32 %v3699, %v3702
    %v3705 = vmul.f32 %v3700, %v3702
    %v3707 = vperm.slane %v503, 0
    %v3709 = vadd.f32 %v3704, %v3707
    %v3710 = vadd.f32 %v3705, %v3707
    %v3711 = vpack.c.bf16 %v3709, %v3709
    %v3713 = vperm.slane %v566, 0
    %v3716 = vrot.slane %v3711, 2
    %v3721 = vunpack.c.l.b16 %v567
    %v3722 = vunpack.c.l.b16 %v568
    %v3723 = vunpack.c.l.b16 %v569
    %v3724 = vunpack.c.l.b16 %v570
    %v3725 = vpack.c.b16 %v3722, %v3721
    %v3726 = vpack.c.b16 %v3724, %v3723
    %v3730 = vsel %vm648, %v3716, 0
    %3732 = vmatpush.bf16.msra.mxu0 0
    %3733 = vmatpush.bf16.msra.mxu0 0
    %3734 = vmatpush.bf16.msra.mxu0 0
    %3735 = vmatpush.bf16.msra.mxu0 0
    %3736 = vmatpush.bf16.msra.mxu0 0
    %3737 = vmatpush.bf16.msra.mxu0 0
    %3738 = vmatpush.bf16.msra.mxu0 %v3726
    %3739 = vmatpush.bf16.msra.mxu0 %v3725
    %3740 = vmatmul.bf16.gmra.mxu0 %v3730
    %v3741 = vpop.f32.mrf.mxu0
    %v3742 = vadd.f32 %v3713, %v3741
    %v3743 = vpop.f32.mrf.mxu0
    %3744 = vdwg.mxu0
    %3745 = vst [vmem:[#allocation25] sm:$0xf] %v3742
    %v3746 = vpack.c.bf16 %v3710, %v3710
    %v3748 = vrot.slane %v3746, 2
    %v3750 = vsel %vm648, %v3748, 0
    %3752 = vmatpush.bf16.msra.mxu0 0
    %3753 = vmatpush.bf16.msra.mxu0 0
    %3754 = vmatpush.bf16.msra.mxu0 0
    %3755 = vmatpush.bf16.msra.mxu0 0
    %3756 = vmatpush.bf16.msra.mxu0 0
    %3757 = vmatpush.bf16.msra.mxu0 0
    %3758 = vmatpush.bf16.msra.mxu0 %v3726
    %3759 = vmatpush.bf16.msra.mxu0 %v3725
    %3760 = vmatmul.bf16.gmra.mxu0 %v3750
    %v3761 = vpop.f32.mrf.mxu0
    %v3762 = vadd.f32 %v3713, %v3761
    %v3763 = vpop.f32.mrf.mxu0
    %3764 = vdwg.mxu0
    %s3765 = scalar_lea.vmem [#allocation25], 4
    %3766 = vst [vmem:[%s3765] sm:$0xf] %v3762
    // Predicated region
    $region302: #{_lambda_.1} parent=1 // pred_check
      _
    $region303: #{_lambda_.1} parent=1 // pred_check_branch
      %3768 = sbr.rel (0) target = $region305
    $region304: #{_lambda_.1} parent=1 // pred_region
      %3770 = vsyncadd [#allocation4], 0
      %s3771 = sshll.u32 [#allocation25], 4
      %s3772 = int_to_ptr.vmem [resolvable:$true] %s3771
      %s3773 = sshll.u32 %s123, 4
      %s3774 = int_to_ptr.hbm [resolvable:$true] %s3773
      %3779 = dma.vmem_to_hbm [thread:$0]  %s3772, 128, %s3774, [#allocation4], 64, 64, 4
    $region305: #{_lambda_.1} parent=1 // pred_fallthru
      _
    // Predicated region
    $region306: #{_lambda_.1} parent=1 // pred_check
      _
    $region307: #{_lambda_.1} parent=1 // pred_check_branch
      %3781 = sbr.rel (0) target = $region309
    $region308: #{_lambda_.1} parent=1 // pred_region
      %3783 = dma.done [#allocation4], 128
    $region309: #{_lambda_.1} parent=1 // pred_fallthru
      _
    %3784 = vsyncpa [#allocation3], 1
    %3785 = vsyncpa [#allocation6], 1
    %3786 = vsyncpa [#allocation9], 1
    %3787 = vsyncpa [#allocation12], 1
    %3788 = vsyncpa [#allocation15], 1
    %3789 = vsyncpa [#allocation18], 1
    %3790 = vsyncpa [#allocation21], 1
    %3791 = vsyncpa [#allocation24], 1
    %3792 = vsyncpa [#allocation4], 1

</llo_original>
